<compile_context>
chip_gen: v5e
topology: v5e:2x2
jax: 0.10.0
libtpu: 0.0.40
codegen_flags: <defaults>
</compile_context>

<pallas_src>
import math

import jax
import jax.numpy as jnp
from jax.experimental import pallas as pl
from jax.experimental.pallas import tpu as pltpu

# ----------------------------- config ---------------------------------------
VOCAB = 1000
MAX_POS = 64
B, S = 2, 16
H = 128
N_LAYERS = 2
N_HEADS = 4
D_HEAD = H // N_HEADS          # 32
FFN = 512
N_CLASSES = 10
CLS_PAD = 128                  # classifier output padded to a full lane tile
LN_EPS = 1e-12
NEG_INF = float(jnp.finfo(jnp.float32).min)


# ----------------------------- fused kernel ---------------------------------
def distilbert_fused_kernel(
    x_ref, m_ref,
    emb_g_ref, emb_b_ref,
    wqkv_ref, bqkv_ref, wo_ref, bo_ref, ln1_g_ref, ln1_b_ref,
    wff1_ref, bff1_ref, wff2_ref, bff2_ref, ln2_g_ref, ln2_b_ref,
    pre_w_ref, pre_b_ref, clf_w_ref, clf_b_ref,
    o_ref,
):
    """One grid step = one batch element's full forward pass, x kept in VMEM."""

    def layer_norm(v, g, b):
        mu = jnp.mean(v, axis=-1, keepdims=True)
        vc = v - mu
        var = jnp.mean(vc * vc, axis=-1, keepdims=True)
        return vc * jax.lax.rsqrt(var + LN_EPS) * g + b

    def gelu(v):  # exact (erf) GELU, as in HF DistilBERT
        return 0.5 * v * (1.0 + jax.lax.erf(v * (1.0 / math.sqrt(2.0))))

    # Embedding LayerNorm (embedding dropout is identity at inference).
    x = layer_norm(x_ref[...], emb_g_ref[...], emb_b_ref[...])        # [S, H]

    # [1, S] key-axis mask, broadcast in-kernel over query rows.
    keep = m_ref[...][0] > 0.5

    scale = 1.0 / math.sqrt(D_HEAD)

    for l in range(N_LAYERS):                        # static unroll (2 layers)
        # ---- fused QKV projection: one [S,H] @ [H,3H] matmul ----
        qkv = (jnp.dot(x, wqkv_ref[l], preferred_element_type=jnp.float32)
               + bqkv_ref[l])                                          # [S, 3H]

        # ---- per-head attention on VMEM-resident slices ----
        ctx_heads = []
        for h in range(N_HEADS):
            lo = h * D_HEAD
            q = qkv[:, lo:lo + D_HEAD]                                 # [S, Dh]
            k = qkv[:, H + lo:H + lo + D_HEAD]
            v = qkv[:, 2 * H + lo:2 * H + lo + D_HEAD]
            s = jax.lax.dot_general(                                   # q @ k^T
                q, k, (((1,), (1,)), ((), ())),
                preferred_element_type=jnp.float32) * scale            # [S, S]
            # DistilBERT: scores.masked_fill(mask == 0, finfo.min)
            s = jnp.where(keep, s, NEG_INF)
            s = s - jnp.max(s, axis=-1, keepdims=True)
            p = jnp.exp(s)
            p = p * pl.reciprocal(jnp.sum(p, axis=-1, keepdims=True),
                                  approx=True)
            ctx_heads.append(
                jnp.dot(p, v, preferred_element_type=jnp.float32))     # [S, Dh]

        ctx = jnp.concatenate(ctx_heads, axis=-1)      # lane-dense [S, H]
        attn = (jnp.dot(ctx, wo_ref[l], preferred_element_type=jnp.float32)
                + bo_ref[l])
        x = layer_norm(attn + x, ln1_g_ref[l], ln1_b_ref[l])           # post-LN

        # ---- feed-forward ----
        hdn = gelu(jnp.dot(x, wff1_ref[l], preferred_element_type=jnp.float32)
                   + bff1_ref[l])                                      # [S, FFN]
        ffn = (jnp.dot(hdn, wff2_ref[l], preferred_element_type=jnp.float32)
               + bff2_ref[l])
        x = layer_norm(ffn + x, ln2_g_ref[l], ln2_b_ref[l])

    # ---- classification head ----
    # Computed for all S rows so the writeback is 8-sublane / 128-lane dense;
    # the wrapper keeps only the CLS row and the first N_CLASSES lanes.
    # dropout(0.1) is the identity at inference.
    pooled = jnp.tanh(
        jnp.dot(x, pre_w_ref[...], preferred_element_type=jnp.float32)
        + pre_b_ref[...])
    o_ref[...] = (jnp.dot(pooled, clf_w_ref[...],
                          preferred_element_type=jnp.float32)
                  + clf_b_ref[...])


# ----------------------------- parameters -----------------------------------
def _normal(key, shape, std=0.02):
    return (std * jax.random.normal(key, shape)).astype(jnp.float32)


def init_params(key):
    ks = iter(jax.random.split(key, 64))
    p = {
        "word_emb": _normal(next(ks), (VOCAB, H)),
        "pos_emb": _normal(next(ks), (MAX_POS, H)),
        "emb_ln_g": jnp.ones((1, H), jnp.float32),
        "emb_ln_b": jnp.zeros((1, H), jnp.float32),
        # stacked per-layer weights, fused QKV
        "wqkv": _normal(next(ks), (N_LAYERS, H, 3 * H)),
        "bqkv": jnp.zeros((N_LAYERS, 1, 3 * H), jnp.float32),
        "wo": _normal(next(ks), (N_LAYERS, H, H)),
        "bo": jnp.zeros((N_LAYERS, 1, H), jnp.float32),
        "ln1_g": jnp.ones((N_LAYERS, 1, H), jnp.float32),
        "ln1_b": jnp.zeros((N_LAYERS, 1, H), jnp.float32),
        "wff1": _normal(next(ks), (N_LAYERS, H, FFN)),
        "bff1": jnp.zeros((N_LAYERS, 1, FFN), jnp.float32),
        "wff2": _normal(next(ks), (N_LAYERS, FFN, H)),
        "bff2": jnp.zeros((N_LAYERS, 1, H), jnp.float32),
        "ln2_g": jnp.ones((N_LAYERS, 1, H), jnp.float32),
        "ln2_b": jnp.zeros((N_LAYERS, 1, H), jnp.float32),
        # classification head (classifier lane-padded to 128)
        "pre_w": _normal(next(ks), (H, H)),
        "pre_b": jnp.zeros((1, H), jnp.float32),
    }
    clf_w = _normal(next(ks), (H, N_CLASSES))
    p["clf_w_pad"] = jnp.pad(clf_w, ((0, 0), (0, CLS_PAD - N_CLASSES)))
    p["clf_b_pad"] = jnp.zeros((1, CLS_PAD), jnp.float32)
    return p


# ----------------------------- forward --------------------------------------
def distilbert_class_forward(params, input_ids, attention_mask, token_type_ids):
    # token_type_ids accepted to mirror the PyTorch signature but unused:
    # DistilBertModel has no token-type embeddings.
    del token_type_ids
    b, s = input_ids.shape

    # Embedding gather stays in JAX (data-dependent gather = glue); everything
    # after it runs inside the single fused Pallas kernel.
    pos_ids = jnp.arange(s, dtype=jnp.int32)
    emb = (jnp.take(params["word_emb"], input_ids, axis=0)
           + jnp.take(params["pos_emb"], pos_ids, axis=0)[None, :, :])
    x = emb.reshape(b * s, H).astype(jnp.float32)
    mask = attention_mask.astype(jnp.float32).reshape(b, 1, s)

    vmem = pl.BlockSpec(memory_space=pltpu.MemorySpace.VMEM)  # weights: whole-array resident
    logits_all = pl.pallas_call(
        distilbert_fused_kernel,
        out_shape=jax.ShapeDtypeStruct((b * s, CLS_PAD), jnp.float32),
        grid=(b,),
        in_specs=[
            pl.BlockSpec((s, H), lambda i: (i, 0)),        # per-batch hidden rows
            pl.BlockSpec((1, 1, s), lambda i: (i, 0, 0)),  # per-batch mask row
        ] + [vmem] * 18,
        out_specs=pl.BlockSpec((s, CLS_PAD), lambda i: (i, 0)),
        compiler_params=pltpu.CompilerParams(
            dimension_semantics=("parallel",)),            # batch across TCs on v7x
    )(x, mask,
      params["emb_ln_g"], params["emb_ln_b"],
      params["wqkv"], params["bqkv"], params["wo"], params["bo"],
      params["ln1_g"], params["ln1_b"],
      params["wff1"], params["bff1"], params["wff2"], params["bff2"],
      params["ln2_g"], params["ln2_b"],
      params["pre_w"], params["pre_b"],
      params["clf_w_pad"], params["clf_b_pad"])

    # CLS row per batch element, first N_CLASSES lanes of the padded output.
    return logits_all.reshape(b, s, CLS_PAD)[:, 0, :N_CLASSES]


# ----------------------------- main ------------------------------------------
if __name__ == "__main__":
    root = jax.random.PRNGKey(0)
    params = init_params(root)

    k_ids = jax.random.fold_in(root, 1000)
    input_ids = jax.random.randint(k_ids, (B, S), 0, VOCAB, dtype=jnp.int32)
    attention_mask = jnp.ones((B, S), dtype=jnp.float32)
    # exercise masking (keep >=1 valid position per row so softmax is finite)
    attention_mask = attention_mask.at[1, S - 4:].set(0.0)
    token_type_ids = jnp.zeros((B, S), dtype=jnp.int32)

    fwd = jax.jit(distilbert_class_forward)
    logits = fwd(params, input_ids, attention_mask, token_type_ids)
    logits = jax.block_until_ready(logits)

    assert logits.shape == (B, N_CLASSES) and logits.dtype == jnp.float32
    assert bool(jnp.all(jnp.isfinite(logits)))
    print("KERNEL_OK")
</pallas_src>

<mosaic_0001>
module attributes {stable_mosaic.version = 11 : i64} {
  func.func @distilbert_fused_kernel(%arg0: i32, %arg1: memref<16x128xf32, #tpu.memory_space<vmem>>, %arg2: memref<1x1x16xf32, #tpu.memory_space<vmem>>, %arg3: memref<1x128xf32, #tpu.memory_space<vmem>>, %arg4: memref<1x128xf32, #tpu.memory_space<vmem>>, %arg5: memref<2x128x384xf32, #tpu.memory_space<vmem>>, %arg6: memref<2x1x384xf32, #tpu.memory_space<vmem>>, %arg7: memref<2x128x128xf32, #tpu.memory_space<vmem>>, %arg8: memref<2x1x128xf32, #tpu.memory_space<vmem>>, %arg9: memref<2x1x128xf32, #tpu.memory_space<vmem>>, %arg10: memref<2x1x128xf32, #tpu.memory_space<vmem>>, %arg11: memref<2x128x512xf32, #tpu.memory_space<vmem>>, %arg12: memref<2x1x512xf32, #tpu.memory_space<vmem>>, %arg13: memref<2x512x128xf32, #tpu.memory_space<vmem>>, %arg14: memref<2x1x128xf32, #tpu.memory_space<vmem>>, %arg15: memref<2x1x128xf32, #tpu.memory_space<vmem>>, %arg16: memref<2x1x128xf32, #tpu.memory_space<vmem>>, %arg17: memref<128x128xf32, #tpu.memory_space<vmem>>, %arg18: memref<1x128xf32, #tpu.memory_space<vmem>>, %arg19: memref<128x128xf32, #tpu.memory_space<vmem>>, %arg20: memref<1x128xf32, #tpu.memory_space<vmem>>, %arg21: memref<16x128xf32, #tpu.memory_space<vmem>>) attributes {dimension_semantics = [#tpu.dimension_semantics<parallel>], iteration_bounds = array<i64: 2>, scalar_prefetch = 0 : i64, scratch_operands = 0 : i64, tpu.core_type = #tpu.core_type<tc>, window_params = [{transform_indices = @transform_0, window_bounds = array<i64: 16, 128>}, {transform_indices = @transform_1, window_bounds = array<i64: 1, 1, 16>}, {pipeline_mode = #tpu.pipeline_mode<synchronous>, transform_indices = @transform_2, window_bounds = array<i64: 1, 128>}, {pipeline_mode = #tpu.pipeline_mode<synchronous>, transform_indices = @transform_3, window_bounds = array<i64: 1, 128>}, {pipeline_mode = #tpu.pipeline_mode<synchronous>, transform_indices = @transform_4, window_bounds = array<i64: 2, 128, 384>}, {pipeline_mode = #tpu.pipeline_mode<synchronous>, transform_indices = @transform_5, window_bounds = array<i64: 2, 1, 384>}, {pipeline_mode = #tpu.pipeline_mode<synchronous>, transform_indices = @transform_6, window_bounds = array<i64: 2, 128, 128>}, {pipeline_mode = #tpu.pipeline_mode<synchronous>, transform_indices = @transform_7, window_bounds = array<i64: 2, 1, 128>}, {pipeline_mode = #tpu.pipeline_mode<synchronous>, transform_indices = @transform_8, window_bounds = array<i64: 2, 1, 128>}, {pipeline_mode = #tpu.pipeline_mode<synchronous>, transform_indices = @transform_9, window_bounds = array<i64: 2, 1, 128>}, {pipeline_mode = #tpu.pipeline_mode<synchronous>, transform_indices = @transform_10, window_bounds = array<i64: 2, 128, 512>}, {pipeline_mode = #tpu.pipeline_mode<synchronous>, transform_indices = @transform_11, window_bounds = array<i64: 2, 1, 512>}, {pipeline_mode = #tpu.pipeline_mode<synchronous>, transform_indices = @transform_12, window_bounds = array<i64: 2, 512, 128>}, {pipeline_mode = #tpu.pipeline_mode<synchronous>, transform_indices = @transform_13, window_bounds = array<i64: 2, 1, 128>}, {pipeline_mode = #tpu.pipeline_mode<synchronous>, transform_indices = @transform_14, window_bounds = array<i64: 2, 1, 128>}, {pipeline_mode = #tpu.pipeline_mode<synchronous>, transform_indices = @transform_15, window_bounds = array<i64: 2, 1, 128>}, {pipeline_mode = #tpu.pipeline_mode<synchronous>, transform_indices = @transform_16, window_bounds = array<i64: 128, 128>}, {pipeline_mode = #tpu.pipeline_mode<synchronous>, transform_indices = @transform_17, window_bounds = array<i64: 1, 128>}, {pipeline_mode = #tpu.pipeline_mode<synchronous>, transform_indices = @transform_18, window_bounds = array<i64: 128, 128>}, {pipeline_mode = #tpu.pipeline_mode<synchronous>, transform_indices = @transform_19, window_bounds = array<i64: 1, 128>}, {transform_indices = @transform_20, window_bounds = array<i64: 16, 128>}]} {
    %c0 = arith.constant 0 : index
    %c0_0 = arith.constant 0 : index
    %0 = vector.load %arg1[%c0, %c0_0] : memref<16x128xf32, #tpu.memory_space<vmem>>, vector<16x128xf32>
    %c0_1 = arith.constant 0 : index
    %c0_2 = arith.constant 0 : index
    %1 = vector.load %arg3[%c0_1, %c0_2] : memref<1x128xf32, #tpu.memory_space<vmem>>, vector<1x128xf32>
    %c0_3 = arith.constant 0 : index
    %c0_4 = arith.constant 0 : index
    %2 = vector.load %arg4[%c0_3, %c0_4] : memref<1x128xf32, #tpu.memory_space<vmem>>, vector<1x128xf32>
    %cst = arith.constant dense<0.000000e+00> : vector<16xf32>
    %3 = vector.multi_reduction <add>, %0, %cst [1] : vector<16x128xf32> to vector<16xf32>
    %4 = vector.shape_cast %3 : vector<16xf32> to vector<16x1xf32>
    %cst_5 = arith.constant 1.280000e+02 : f32
    %5 = vector.broadcast %cst_5 : f32 to vector<16x1xf32>
    %6 = arith.divf %4, %5 : vector<16x1xf32>
    %7 = vector.broadcast %6 : vector<16x1xf32> to vector<16x128xf32>
    %8 = arith.subf %0, %7 : vector<16x128xf32>
    %9 = arith.mulf %8, %8 : vector<16x128xf32>
    %cst_6 = arith.constant dense<0.000000e+00> : vector<16xf32>
    %10 = vector.multi_reduction <add>, %9, %cst_6 [1] : vector<16x128xf32> to vector<16xf32>
    %11 = vector.shape_cast %10 : vector<16xf32> to vector<16x1xf32>
    %cst_7 = arith.constant 1.280000e+02 : f32
    %12 = vector.broadcast %cst_7 : f32 to vector<16x1xf32>
    %13 = arith.divf %11, %12 : vector<16x1xf32>
    %cst_8 = arith.constant 9.99999996E-13 : f32
    %14 = vector.broadcast %cst_8 : f32 to vector<16x1xf32>
    %15 = arith.addf %13, %14 : vector<16x1xf32>
    %16 = math.rsqrt %15 : vector<16x1xf32>
    %17 = vector.broadcast %16 : vector<16x1xf32> to vector<16x128xf32>
    %18 = arith.mulf %8, %17 : vector<16x128xf32>
    %19 = vector.broadcast %1 : vector<1x128xf32> to vector<16x128xf32>
    %20 = arith.mulf %18, %19 : vector<16x128xf32>
    %21 = vector.broadcast %2 : vector<1x128xf32> to vector<16x128xf32>
    %22 = arith.addf %20, %21 : vector<16x128xf32>
    %c0_9 = arith.constant 0 : index
    %c0_10 = arith.constant 0 : index
    %c0_11 = arith.constant 0 : index
    %23 = vector.load %arg2[%c0_9, %c0_10, %c0_11] : memref<1x1x16xf32, #tpu.memory_space<vmem>>, vector<1x1x16xf32>
    %24 = vector.shape_cast %23 : vector<1x1x16xf32> to vector<1x16xf32>
    %cst_12 = arith.constant 5.000000e-01 : f32
    %25 = vector.broadcast %cst_12 : f32 to vector<1x16xf32>
    %26 = arith.cmpf ogt, %24, %25 : vector<1x16xf32>
    %c0_13 = arith.constant 0 : index
    %c0_14 = arith.constant 0 : index
    %c0_15 = arith.constant 0 : index
    %27 = vector.load %arg5[%c0_13, %c0_14, %c0_15] : memref<2x128x384xf32, #tpu.memory_space<vmem>>, vector<1x128x384xf32>
    %28 = vector.shape_cast %27 : vector<1x128x384xf32> to vector<128x384xf32>
    %cst_16 = arith.constant dense<0.000000e+00> : vector<16x384xf32>
    %29 = tpu.matmul %22, %28, %cst_16 {dimension_numbers = #tpu.dot_dimension_numbers<[1], [0], [0], [1], [0, 0, 1, 1], [], []>} : vector<16x128xf32>, vector<128x384xf32>, vector<16x384xf32> -> vector<16x384xf32>
    %c0_17 = arith.constant 0 : index
    %c0_18 = arith.constant 0 : index
    %c0_19 = arith.constant 0 : index
    %30 = vector.load %arg6[%c0_17, %c0_18, %c0_19] : memref<2x1x384xf32, #tpu.memory_space<vmem>>, vector<1x1x384xf32>
    %31 = vector.shape_cast %30 : vector<1x1x384xf32> to vector<1x384xf32>
    %32 = vector.broadcast %31 : vector<1x384xf32> to vector<16x384xf32>
    %33 = arith.addf %29, %32 : vector<16x384xf32>
    %34 = vector.extract_strided_slice %33 {offsets = [0, 0], sizes = [16, 32], strides = [1, 1]} : vector<16x384xf32> to vector<16x32xf32>
    %35 = vector.extract_strided_slice %33 {offsets = [0, 128], sizes = [16, 32], strides = [1, 1]} : vector<16x384xf32> to vector<16x32xf32>
    %36 = vector.extract_strided_slice %33 {offsets = [0, 256], sizes = [16, 32], strides = [1, 1]} : vector<16x384xf32> to vector<16x32xf32>
    %cst_20 = arith.constant dense<0.000000e+00> : vector<16x16xf32>
    %37 = tpu.matmul %34, %35, %cst_20 {dimension_numbers = #tpu.dot_dimension_numbers<[1], [1], [0], [0], [0, 0, 1, 0], [], []>} : vector<16x32xf32>, vector<16x32xf32>, vector<16x16xf32> -> vector<16x16xf32>
    %cst_21 = arith.constant 0.176776692 : f32
    %38 = vector.broadcast %cst_21 : f32 to vector<16x16xf32>
    %39 = arith.mulf %37, %38 : vector<16x16xf32>
    %cst_22 = arith.constant -3.40282347E+38 : f32
    %40 = vector.shape_cast %26 : vector<1x16xi1> to vector<1x16xi1>
    %41 = vector.broadcast %40 : vector<1x16xi1> to vector<16x16xi1>
    %42 = vector.broadcast %cst_22 : f32 to vector<16x16xf32>
    %43 = arith.select %41, %39, %42 : vector<16x16xi1>, vector<16x16xf32>
    %cst_23 = arith.constant dense<0xFF800000> : vector<16xf32>
    %44 = vector.multi_reduction <maximumf>, %43, %cst_23 [1] : vector<16x16xf32> to vector<16xf32>
    %45 = vector.shape_cast %44 : vector<16xf32> to vector<16x1xf32>
    %46 = vector.broadcast %45 : vector<16x1xf32> to vector<16x16xf32>
    %47 = arith.subf %43, %46 : vector<16x16xf32>
    %48 = math.exp %47 : vector<16x16xf32>
    %cst_24 = arith.constant dense<0.000000e+00> : vector<16xf32>
    %49 = vector.multi_reduction <add>, %48, %cst_24 [1] : vector<16x16xf32> to vector<16xf32>
    %50 = vector.shape_cast %49 : vector<16xf32> to vector<16x1xf32>
    %51 = tpu.reciprocal %50 {approx = true} : vector<16x1xf32> -> vector<16x1xf32>
    %52 = vector.broadcast %51 : vector<16x1xf32> to vector<16x16xf32>
    %53 = arith.mulf %48, %52 : vector<16x16xf32>
    %cst_25 = arith.constant dense<0.000000e+00> : vector<16x32xf32>
    %54 = tpu.matmul %53, %36, %cst_25 {dimension_numbers = #tpu.dot_dimension_numbers<[1], [0], [0], [1], [0, 0, 1, 1], [], []>} : vector<16x16xf32>, vector<16x32xf32>, vector<16x32xf32> -> vector<16x32xf32>
    %55 = vector.extract_strided_slice %33 {offsets = [0, 32], sizes = [16, 32], strides = [1, 1]} : vector<16x384xf32> to vector<16x32xf32>
    %56 = vector.extract_strided_slice %33 {offsets = [0, 160], sizes = [16, 32], strides = [1, 1]} : vector<16x384xf32> to vector<16x32xf32>
    %57 = vector.extract_strided_slice %33 {offsets = [0, 288], sizes = [16, 32], strides = [1, 1]} : vector<16x384xf32> to vector<16x32xf32>
    %cst_26 = arith.constant dense<0.000000e+00> : vector<16x16xf32>
    %58 = tpu.matmul %55, %56, %cst_26 {dimension_numbers = #tpu.dot_dimension_numbers<[1], [1], [0], [0], [0, 0, 1, 0], [], []>} : vector<16x32xf32>, vector<16x32xf32>, vector<16x16xf32> -> vector<16x16xf32>
    %cst_27 = arith.constant 0.176776692 : f32
    %59 = vector.broadcast %cst_27 : f32 to vector<16x16xf32>
    %60 = arith.mulf %58, %59 : vector<16x16xf32>
    %cst_28 = arith.constant -3.40282347E+38 : f32
    %61 = vector.shape_cast %26 : vector<1x16xi1> to vector<1x16xi1>
    %62 = vector.broadcast %61 : vector<1x16xi1> to vector<16x16xi1>
    %63 = vector.broadcast %cst_28 : f32 to vector<16x16xf32>
    %64 = arith.select %62, %60, %63 : vector<16x16xi1>, vector<16x16xf32>
    %cst_29 = arith.constant dense<0xFF800000> : vector<16xf32>
    %65 = vector.multi_reduction <maximumf>, %64, %cst_29 [1] : vector<16x16xf32> to vector<16xf32>
    %66 = vector.shape_cast %65 : vector<16xf32> to vector<16x1xf32>
    %67 = vector.broadcast %66 : vector<16x1xf32> to vector<16x16xf32>
    %68 = arith.subf %64, %67 : vector<16x16xf32>
    %69 = math.exp %68 : vector<16x16xf32>
    %cst_30 = arith.constant dense<0.000000e+00> : vector<16xf32>
    %70 = vector.multi_reduction <add>, %69, %cst_30 [1] : vector<16x16xf32> to vector<16xf32>
    %71 = vector.shape_cast %70 : vector<16xf32> to vector<16x1xf32>
    %72 = tpu.reciprocal %71 {approx = true} : vector<16x1xf32> -> vector<16x1xf32>
    %73 = vector.broadcast %72 : vector<16x1xf32> to vector<16x16xf32>
    %74 = arith.mulf %69, %73 : vector<16x16xf32>
    %cst_31 = arith.constant dense<0.000000e+00> : vector<16x32xf32>
    %75 = tpu.matmul %74, %57, %cst_31 {dimension_numbers = #tpu.dot_dimension_numbers<[1], [0], [0], [1], [0, 0, 1, 1], [], []>} : vector<16x16xf32>, vector<16x32xf32>, vector<16x32xf32> -> vector<16x32xf32>
    %76 = vector.extract_strided_slice %33 {offsets = [0, 64], sizes = [16, 32], strides = [1, 1]} : vector<16x384xf32> to vector<16x32xf32>
    %77 = vector.extract_strided_slice %33 {offsets = [0, 192], sizes = [16, 32], strides = [1, 1]} : vector<16x384xf32> to vector<16x32xf32>
    %78 = vector.extract_strided_slice %33 {offsets = [0, 320], sizes = [16, 32], strides = [1, 1]} : vector<16x384xf32> to vector<16x32xf32>
    %cst_32 = arith.constant dense<0.000000e+00> : vector<16x16xf32>
    %79 = tpu.matmul %76, %77, %cst_32 {dimension_numbers = #tpu.dot_dimension_numbers<[1], [1], [0], [0], [0, 0, 1, 0], [], []>} : vector<16x32xf32>, vector<16x32xf32>, vector<16x16xf32> -> vector<16x16xf32>
    %cst_33 = arith.constant 0.176776692 : f32
    %80 = vector.broadcast %cst_33 : f32 to vector<16x16xf32>
    %81 = arith.mulf %79, %80 : vector<16x16xf32>
    %cst_34 = arith.constant -3.40282347E+38 : f32
    %82 = vector.shape_cast %26 : vector<1x16xi1> to vector<1x16xi1>
    %83 = vector.broadcast %82 : vector<1x16xi1> to vector<16x16xi1>
    %84 = vector.broadcast %cst_34 : f32 to vector<16x16xf32>
    %85 = arith.select %83, %81, %84 : vector<16x16xi1>, vector<16x16xf32>
    %cst_35 = arith.constant dense<0xFF800000> : vector<16xf32>
    %86 = vector.multi_reduction <maximumf>, %85, %cst_35 [1] : vector<16x16xf32> to vector<16xf32>
    %87 = vector.shape_cast %86 : vector<16xf32> to vector<16x1xf32>
    %88 = vector.broadcast %87 : vector<16x1xf32> to vector<16x16xf32>
    %89 = arith.subf %85, %88 : vector<16x16xf32>
    %90 = math.exp %89 : vector<16x16xf32>
    %cst_36 = arith.constant dense<0.000000e+00> : vector<16xf32>
    %91 = vector.multi_reduction <add>, %90, %cst_36 [1] : vector<16x16xf32> to vector<16xf32>
    %92 = vector.shape_cast %91 : vector<16xf32> to vector<16x1xf32>
    %93 = tpu.reciprocal %92 {approx = true} : vector<16x1xf32> -> vector<16x1xf32>
    %94 = vector.broadcast %93 : vector<16x1xf32> to vector<16x16xf32>
    %95 = arith.mulf %90, %94 : vector<16x16xf32>
    %cst_37 = arith.constant dense<0.000000e+00> : vector<16x32xf32>
    %96 = tpu.matmul %95, %78, %cst_37 {dimension_numbers = #tpu.dot_dimension_numbers<[1], [0], [0], [1], [0, 0, 1, 1], [], []>} : vector<16x16xf32>, vector<16x32xf32>, vector<16x32xf32> -> vector<16x32xf32>
    %97 = vector.extract_strided_slice %33 {offsets = [0, 96], sizes = [16, 32], strides = [1, 1]} : vector<16x384xf32> to vector<16x32xf32>
    %98 = vector.extract_strided_slice %33 {offsets = [0, 224], sizes = [16, 32], strides = [1, 1]} : vector<16x384xf32> to vector<16x32xf32>
    %99 = vector.extract_strided_slice %33 {offsets = [0, 352], sizes = [16, 32], strides = [1, 1]} : vector<16x384xf32> to vector<16x32xf32>
    %cst_38 = arith.constant dense<0.000000e+00> : vector<16x16xf32>
    %100 = tpu.matmul %97, %98, %cst_38 {dimension_numbers = #tpu.dot_dimension_numbers<[1], [1], [0], [0], [0, 0, 1, 0], [], []>} : vector<16x32xf32>, vector<16x32xf32>, vector<16x16xf32> -> vector<16x16xf32>
    %cst_39 = arith.constant 0.176776692 : f32
    %101 = vector.broadcast %cst_39 : f32 to vector<16x16xf32>
    %102 = arith.mulf %100, %101 : vector<16x16xf32>
    %cst_40 = arith.constant -3.40282347E+38 : f32
    %103 = vector.shape_cast %26 : vector<1x16xi1> to vector<1x16xi1>
    %104 = vector.broadcast %103 : vector<1x16xi1> to vector<16x16xi1>
    %105 = vector.broadcast %cst_40 : f32 to vector<16x16xf32>
    %106 = arith.select %104, %102, %105 : vector<16x16xi1>, vector<16x16xf32>
    %cst_41 = arith.constant dense<0xFF800000> : vector<16xf32>
    %107 = vector.multi_reduction <maximumf>, %106, %cst_41 [1] : vector<16x16xf32> to vector<16xf32>
    %108 = vector.shape_cast %107 : vector<16xf32> to vector<16x1xf32>
    %109 = vector.broadcast %108 : vector<16x1xf32> to vector<16x16xf32>
    %110 = arith.subf %106, %109 : vector<16x16xf32>
    %111 = math.exp %110 : vector<16x16xf32>
    %cst_42 = arith.constant dense<0.000000e+00> : vector<16xf32>
    %112 = vector.multi_reduction <add>, %111, %cst_42 [1] : vector<16x16xf32> to vector<16xf32>
    %113 = vector.shape_cast %112 : vector<16xf32> to vector<16x1xf32>
    %114 = tpu.reciprocal %113 {approx = true} : vector<16x1xf32> -> vector<16x1xf32>
    %115 = vector.broadcast %114 : vector<16x1xf32> to vector<16x16xf32>
    %116 = arith.mulf %111, %115 : vector<16x16xf32>
    %cst_43 = arith.constant dense<0.000000e+00> : vector<16x32xf32>
    %117 = tpu.matmul %116, %99, %cst_43 {dimension_numbers = #tpu.dot_dimension_numbers<[1], [0], [0], [1], [0, 0, 1, 1], [], []>} : vector<16x16xf32>, vector<16x32xf32>, vector<16x32xf32> -> vector<16x32xf32>
    %118 = tpu.concatenate %54, %75, %96, %117 in 1 : vector<16x32xf32>, vector<16x32xf32>, vector<16x32xf32>, vector<16x32xf32> -> vector<16x128xf32>
    %c0_44 = arith.constant 0 : index
    %c0_45 = arith.constant 0 : index
    %c0_46 = arith.constant 0 : index
    %119 = vector.load %arg7[%c0_44, %c0_45, %c0_46] : memref<2x128x128xf32, #tpu.memory_space<vmem>>, vector<1x128x128xf32>
    %120 = vector.shape_cast %119 : vector<1x128x128xf32> to vector<128x128xf32>
    %cst_47 = arith.constant dense<0.000000e+00> : vector<16x128xf32>
    %121 = tpu.matmul %118, %120, %cst_47 {dimension_numbers = #tpu.dot_dimension_numbers<[1], [0], [0], [1], [0, 0, 1, 1], [], []>} : vector<16x128xf32>, vector<128x128xf32>, vector<16x128xf32> -> vector<16x128xf32>
    %c0_48 = arith.constant 0 : index
    %c0_49 = arith.constant 0 : index
    %c0_50 = arith.constant 0 : index
    %122 = vector.load %arg8[%c0_48, %c0_49, %c0_50] : memref<2x1x128xf32, #tpu.memory_space<vmem>>, vector<1x1x128xf32>
    %123 = vector.shape_cast %122 : vector<1x1x128xf32> to vector<1x128xf32>
    %124 = vector.broadcast %123 : vector<1x128xf32> to vector<16x128xf32>
    %125 = arith.addf %121, %124 : vector<16x128xf32>
    %126 = arith.addf %125, %22 : vector<16x128xf32>
    %c0_51 = arith.constant 0 : index
    %c0_52 = arith.constant 0 : index
    %c0_53 = arith.constant 0 : index
    %127 = vector.load %arg9[%c0_51, %c0_52, %c0_53] : memref<2x1x128xf32, #tpu.memory_space<vmem>>, vector<1x1x128xf32>
    %128 = vector.shape_cast %127 : vector<1x1x128xf32> to vector<1x128xf32>
    %c0_54 = arith.constant 0 : index
    %c0_55 = arith.constant 0 : index
    %c0_56 = arith.constant 0 : index
    %129 = vector.load %arg10[%c0_54, %c0_55, %c0_56] : memref<2x1x128xf32, #tpu.memory_space<vmem>>, vector<1x1x128xf32>
    %130 = vector.shape_cast %129 : vector<1x1x128xf32> to vector<1x128xf32>
    %cst_57 = arith.constant dense<0.000000e+00> : vector<16xf32>
    %131 = vector.multi_reduction <add>, %126, %cst_57 [1] : vector<16x128xf32> to vector<16xf32>
    %132 = vector.shape_cast %131 : vector<16xf32> to vector<16x1xf32>
    %cst_58 = arith.constant 1.280000e+02 : f32
    %133 = vector.broadcast %cst_58 : f32 to vector<16x1xf32>
    %134 = arith.divf %132, %133 : vector<16x1xf32>
    %135 = vector.broadcast %134 : vector<16x1xf32> to vector<16x128xf32>
    %136 = arith.subf %126, %135 : vector<16x128xf32>
    %137 = arith.mulf %136, %136 : vector<16x128xf32>
    %cst_59 = arith.constant dense<0.000000e+00> : vector<16xf32>
    %138 = vector.multi_reduction <add>, %137, %cst_59 [1] : vector<16x128xf32> to vector<16xf32>
    %139 = vector.shape_cast %138 : vector<16xf32> to vector<16x1xf32>
    %cst_60 = arith.constant 1.280000e+02 : f32
    %140 = vector.broadcast %cst_60 : f32 to vector<16x1xf32>
    %141 = arith.divf %139, %140 : vector<16x1xf32>
    %cst_61 = arith.constant 9.99999996E-13 : f32
    %142 = vector.broadcast %cst_61 : f32 to vector<16x1xf32>
    %143 = arith.addf %141, %142 : vector<16x1xf32>
    %144 = math.rsqrt %143 : vector<16x1xf32>
    %145 = vector.broadcast %144 : vector<16x1xf32> to vector<16x128xf32>
    %146 = arith.mulf %136, %145 : vector<16x128xf32>
    %147 = vector.broadcast %128 : vector<1x128xf32> to vector<16x128xf32>
    %148 = arith.mulf %146, %147 : vector<16x128xf32>
    %149 = vector.broadcast %130 : vector<1x128xf32> to vector<16x128xf32>
    %150 = arith.addf %148, %149 : vector<16x128xf32>
    %c0_62 = arith.constant 0 : index
    %c0_63 = arith.constant 0 : index
    %c0_64 = arith.constant 0 : index
    %151 = vector.load %arg11[%c0_62, %c0_63, %c0_64] : memref<2x128x512xf32, #tpu.memory_space<vmem>>, vector<1x128x512xf32>
    %152 = vector.shape_cast %151 : vector<1x128x512xf32> to vector<128x512xf32>
    %cst_65 = arith.constant dense<0.000000e+00> : vector<16x512xf32>
    %153 = tpu.matmul %150, %152, %cst_65 {dimension_numbers = #tpu.dot_dimension_numbers<[1], [0], [0], [1], [0, 0, 1, 1], [], []>} : vector<16x128xf32>, vector<128x512xf32>, vector<16x512xf32> -> vector<16x512xf32>
    %c0_66 = arith.constant 0 : index
    %c0_67 = arith.constant 0 : index
    %c0_68 = arith.constant 0 : index
    %154 = vector.load %arg12[%c0_66, %c0_67, %c0_68] : memref<2x1x512xf32, #tpu.memory_space<vmem>>, vector<1x1x512xf32>
    %155 = vector.shape_cast %154 : vector<1x1x512xf32> to vector<1x512xf32>
    %156 = vector.broadcast %155 : vector<1x512xf32> to vector<16x512xf32>
    %157 = arith.addf %153, %156 : vector<16x512xf32>
    %cst_69 = arith.constant 5.000000e-01 : f32
    %158 = vector.broadcast %cst_69 : f32 to vector<16x512xf32>
    %159 = arith.mulf %158, %157 : vector<16x512xf32>
    %cst_70 = arith.constant 0.707106769 : f32
    %160 = vector.broadcast %cst_70 : f32 to vector<16x512xf32>
    %161 = arith.mulf %157, %160 : vector<16x512xf32>
    %162 = math.erf %161 : vector<16x512xf32>
    %cst_71 = arith.constant 1.000000e+00 : f32
    %163 = vector.broadcast %cst_71 : f32 to vector<16x512xf32>
    %164 = arith.addf %163, %162 : vector<16x512xf32>
    %165 = arith.mulf %159, %164 : vector<16x512xf32>
    %c0_72 = arith.constant 0 : index
    %c0_73 = arith.constant 0 : index
    %c0_74 = arith.constant 0 : index
    %166 = vector.load %arg13[%c0_72, %c0_73, %c0_74] : memref<2x512x128xf32, #tpu.memory_space<vmem>>, vector<1x512x128xf32>
    %167 = vector.shape_cast %166 : vector<1x512x128xf32> to vector<512x128xf32>
    %cst_75 = arith.constant dense<0.000000e+00> : vector<16x128xf32>
    %168 = tpu.matmul %165, %167, %cst_75 {dimension_numbers = #tpu.dot_dimension_numbers<[1], [0], [0], [1], [0, 0, 1, 1], [], []>} : vector<16x512xf32>, vector<512x128xf32>, vector<16x128xf32> -> vector<16x128xf32>
    %c0_76 = arith.constant 0 : index
    %c0_77 = arith.constant 0 : index
    %c0_78 = arith.constant 0 : index
    %169 = vector.load %arg14[%c0_76, %c0_77, %c0_78] : memref<2x1x128xf32, #tpu.memory_space<vmem>>, vector<1x1x128xf32>
    %170 = vector.shape_cast %169 : vector<1x1x128xf32> to vector<1x128xf32>
    %171 = vector.broadcast %170 : vector<1x128xf32> to vector<16x128xf32>
    %172 = arith.addf %168, %171 : vector<16x128xf32>
    %173 = arith.addf %172, %150 : vector<16x128xf32>
    %c0_79 = arith.constant 0 : index
    %c0_80 = arith.constant 0 : index
    %c0_81 = arith.constant 0 : index
    %174 = vector.load %arg15[%c0_79, %c0_80, %c0_81] : memref<2x1x128xf32, #tpu.memory_space<vmem>>, vector<1x1x128xf32>
    %175 = vector.shape_cast %174 : vector<1x1x128xf32> to vector<1x128xf32>
    %c0_82 = arith.constant 0 : index
    %c0_83 = arith.constant 0 : index
    %c0_84 = arith.constant 0 : index
    %176 = vector.load %arg16[%c0_82, %c0_83, %c0_84] : memref<2x1x128xf32, #tpu.memory_space<vmem>>, vector<1x1x128xf32>
    %177 = vector.shape_cast %176 : vector<1x1x128xf32> to vector<1x128xf32>
    %cst_85 = arith.constant dense<0.000000e+00> : vector<16xf32>
    %178 = vector.multi_reduction <add>, %173, %cst_85 [1] : vector<16x128xf32> to vector<16xf32>
    %179 = vector.shape_cast %178 : vector<16xf32> to vector<16x1xf32>
    %cst_86 = arith.constant 1.280000e+02 : f32
    %180 = vector.broadcast %cst_86 : f32 to vector<16x1xf32>
    %181 = arith.divf %179, %180 : vector<16x1xf32>
    %182 = vector.broadcast %181 : vector<16x1xf32> to vector<16x128xf32>
    %183 = arith.subf %173, %182 : vector<16x128xf32>
    %184 = arith.mulf %183, %183 : vector<16x128xf32>
    %cst_87 = arith.constant dense<0.000000e+00> : vector<16xf32>
    %185 = vector.multi_reduction <add>, %184, %cst_87 [1] : vector<16x128xf32> to vector<16xf32>
    %186 = vector.shape_cast %185 : vector<16xf32> to vector<16x1xf32>
    %cst_88 = arith.constant 1.280000e+02 : f32
    %187 = vector.broadcast %cst_88 : f32 to vector<16x1xf32>
    %188 = arith.divf %186, %187 : vector<16x1xf32>
    %cst_89 = arith.constant 9.99999996E-13 : f32
    %189 = vector.broadcast %cst_89 : f32 to vector<16x1xf32>
    %190 = arith.addf %188, %189 : vector<16x1xf32>
    %191 = math.rsqrt %190 : vector<16x1xf32>
    %192 = vector.broadcast %191 : vector<16x1xf32> to vector<16x128xf32>
    %193 = arith.mulf %183, %192 : vector<16x128xf32>
    %194 = vector.broadcast %175 : vector<1x128xf32> to vector<16x128xf32>
    %195 = arith.mulf %193, %194 : vector<16x128xf32>
    %196 = vector.broadcast %177 : vector<1x128xf32> to vector<16x128xf32>
    %197 = arith.addf %195, %196 : vector<16x128xf32>
    %c1 = arith.constant 1 : index
    %c0_90 = arith.constant 0 : index
    %c0_91 = arith.constant 0 : index
    %198 = vector.load %arg5[%c1, %c0_90, %c0_91] : memref<2x128x384xf32, #tpu.memory_space<vmem>>, vector<1x128x384xf32>
    %199 = vector.shape_cast %198 : vector<1x128x384xf32> to vector<128x384xf32>
    %cst_92 = arith.constant dense<0.000000e+00> : vector<16x384xf32>
    %200 = tpu.matmul %197, %199, %cst_92 {dimension_numbers = #tpu.dot_dimension_numbers<[1], [0], [0], [1], [0, 0, 1, 1], [], []>} : vector<16x128xf32>, vector<128x384xf32>, vector<16x384xf32> -> vector<16x384xf32>
    %c1_93 = arith.constant 1 : index
    %c0_94 = arith.constant 0 : index
    %c0_95 = arith.constant 0 : index
    %201 = vector.load %arg6[%c1_93, %c0_94, %c0_95] : memref<2x1x384xf32, #tpu.memory_space<vmem>>, vector<1x1x384xf32>
    %202 = vector.shape_cast %201 : vector<1x1x384xf32> to vector<1x384xf32>
    %203 = vector.broadcast %202 : vector<1x384xf32> to vector<16x384xf32>
    %204 = arith.addf %200, %203 : vector<16x384xf32>
    %205 = vector.extract_strided_slice %204 {offsets = [0, 0], sizes = [16, 32], strides = [1, 1]} : vector<16x384xf32> to vector<16x32xf32>
    %206 = vector.extract_strided_slice %204 {offsets = [0, 128], sizes = [16, 32], strides = [1, 1]} : vector<16x384xf32> to vector<16x32xf32>
    %207 = vector.extract_strided_slice %204 {offsets = [0, 256], sizes = [16, 32], strides = [1, 1]} : vector<16x384xf32> to vector<16x32xf32>
    %cst_96 = arith.constant dense<0.000000e+00> : vector<16x16xf32>
    %208 = tpu.matmul %205, %206, %cst_96 {dimension_numbers = #tpu.dot_dimension_numbers<[1], [1], [0], [0], [0, 0, 1, 0], [], []>} : vector<16x32xf32>, vector<16x32xf32>, vector<16x16xf32> -> vector<16x16xf32>
    %cst_97 = arith.constant 0.176776692 : f32
    %209 = vector.broadcast %cst_97 : f32 to vector<16x16xf32>
    %210 = arith.mulf %208, %209 : vector<16x16xf32>
    %cst_98 = arith.constant -3.40282347E+38 : f32
    %211 = vector.shape_cast %26 : vector<1x16xi1> to vector<1x16xi1>
    %212 = vector.broadcast %211 : vector<1x16xi1> to vector<16x16xi1>
    %213 = vector.broadcast %cst_98 : f32 to vector<16x16xf32>
    %214 = arith.select %212, %210, %213 : vector<16x16xi1>, vector<16x16xf32>
    %cst_99 = arith.constant dense<0xFF800000> : vector<16xf32>
    %215 = vector.multi_reduction <maximumf>, %214, %cst_99 [1] : vector<16x16xf32> to vector<16xf32>
    %216 = vector.shape_cast %215 : vector<16xf32> to vector<16x1xf32>
    %217 = vector.broadcast %216 : vector<16x1xf32> to vector<16x16xf32>
    %218 = arith.subf %214, %217 : vector<16x16xf32>
    %219 = math.exp %218 : vector<16x16xf32>
    %cst_100 = arith.constant dense<0.000000e+00> : vector<16xf32>
    %220 = vector.multi_reduction <add>, %219, %cst_100 [1] : vector<16x16xf32> to vector<16xf32>
    %221 = vector.shape_cast %220 : vector<16xf32> to vector<16x1xf32>
    %222 = tpu.reciprocal %221 {approx = true} : vector<16x1xf32> -> vector<16x1xf32>
    %223 = vector.broadcast %222 : vector<16x1xf32> to vector<16x16xf32>
    %224 = arith.mulf %219, %223 : vector<16x16xf32>
    %cst_101 = arith.constant dense<0.000000e+00> : vector<16x32xf32>
    %225 = tpu.matmul %224, %207, %cst_101 {dimension_numbers = #tpu.dot_dimension_numbers<[1], [0], [0], [1], [0, 0, 1, 1], [], []>} : vector<16x16xf32>, vector<16x32xf32>, vector<16x32xf32> -> vector<16x32xf32>
    %226 = vector.extract_strided_slice %204 {offsets = [0, 32], sizes = [16, 32], strides = [1, 1]} : vector<16x384xf32> to vector<16x32xf32>
    %227 = vector.extract_strided_slice %204 {offsets = [0, 160], sizes = [16, 32], strides = [1, 1]} : vector<16x384xf32> to vector<16x32xf32>
    %228 = vector.extract_strided_slice %204 {offsets = [0, 288], sizes = [16, 32], strides = [1, 1]} : vector<16x384xf32> to vector<16x32xf32>
    %cst_102 = arith.constant dense<0.000000e+00> : vector<16x16xf32>
    %229 = tpu.matmul %226, %227, %cst_102 {dimension_numbers = #tpu.dot_dimension_numbers<[1], [1], [0], [0], [0, 0, 1, 0], [], []>} : vector<16x32xf32>, vector<16x32xf32>, vector<16x16xf32> -> vector<16x16xf32>
    %cst_103 = arith.constant 0.176776692 : f32
    %230 = vector.broadcast %cst_103 : f32 to vector<16x16xf32>
    %231 = arith.mulf %229, %230 : vector<16x16xf32>
    %cst_104 = arith.constant -3.40282347E+38 : f32
    %232 = vector.shape_cast %26 : vector<1x16xi1> to vector<1x16xi1>
    %233 = vector.broadcast %232 : vector<1x16xi1> to vector<16x16xi1>
    %234 = vector.broadcast %cst_104 : f32 to vector<16x16xf32>
    %235 = arith.select %233, %231, %234 : vector<16x16xi1>, vector<16x16xf32>
    %cst_105 = arith.constant dense<0xFF800000> : vector<16xf32>
    %236 = vector.multi_reduction <maximumf>, %235, %cst_105 [1] : vector<16x16xf32> to vector<16xf32>
    %237 = vector.shape_cast %236 : vector<16xf32> to vector<16x1xf32>
    %238 = vector.broadcast %237 : vector<16x1xf32> to vector<16x16xf32>
    %239 = arith.subf %235, %238 : vector<16x16xf32>
    %240 = math.exp %239 : vector<16x16xf32>
    %cst_106 = arith.constant dense<0.000000e+00> : vector<16xf32>
    %241 = vector.multi_reduction <add>, %240, %cst_106 [1] : vector<16x16xf32> to vector<16xf32>
    %242 = vector.shape_cast %241 : vector<16xf32> to vector<16x1xf32>
    %243 = tpu.reciprocal %242 {approx = true} : vector<16x1xf32> -> vector<16x1xf32>
    %244 = vector.broadcast %243 : vector<16x1xf32> to vector<16x16xf32>
    %245 = arith.mulf %240, %244 : vector<16x16xf32>
    %cst_107 = arith.constant dense<0.000000e+00> : vector<16x32xf32>
    %246 = tpu.matmul %245, %228, %cst_107 {dimension_numbers = #tpu.dot_dimension_numbers<[1], [0], [0], [1], [0, 0, 1, 1], [], []>} : vector<16x16xf32>, vector<16x32xf32>, vector<16x32xf32> -> vector<16x32xf32>
    %247 = vector.extract_strided_slice %204 {offsets = [0, 64], sizes = [16, 32], strides = [1, 1]} : vector<16x384xf32> to vector<16x32xf32>
    %248 = vector.extract_strided_slice %204 {offsets = [0, 192], sizes = [16, 32], strides = [1, 1]} : vector<16x384xf32> to vector<16x32xf32>
    %249 = vector.extract_strided_slice %204 {offsets = [0, 320], sizes = [16, 32], strides = [1, 1]} : vector<16x384xf32> to vector<16x32xf32>
    %cst_108 = arith.constant dense<0.000000e+00> : vector<16x16xf32>
    %250 = tpu.matmul %247, %248, %cst_108 {dimension_numbers = #tpu.dot_dimension_numbers<[1], [1], [0], [0], [0, 0, 1, 0], [], []>} : vector<16x32xf32>, vector<16x32xf32>, vector<16x16xf32> -> vector<16x16xf32>
    %cst_109 = arith.constant 0.176776692 : f32
    %251 = vector.broadcast %cst_109 : f32 to vector<16x16xf32>
    %252 = arith.mulf %250, %251 : vector<16x16xf32>
    %cst_110 = arith.constant -3.40282347E+38 : f32
    %253 = vector.shape_cast %26 : vector<1x16xi1> to vector<1x16xi1>
    %254 = vector.broadcast %253 : vector<1x16xi1> to vector<16x16xi1>
    %255 = vector.broadcast %cst_110 : f32 to vector<16x16xf32>
    %256 = arith.select %254, %252, %255 : vector<16x16xi1>, vector<16x16xf32>
    %cst_111 = arith.constant dense<0xFF800000> : vector<16xf32>
    %257 = vector.multi_reduction <maximumf>, %256, %cst_111 [1] : vector<16x16xf32> to vector<16xf32>
    %258 = vector.shape_cast %257 : vector<16xf32> to vector<16x1xf32>
    %259 = vector.broadcast %258 : vector<16x1xf32> to vector<16x16xf32>
    %260 = arith.subf %256, %259 : vector<16x16xf32>
    %261 = math.exp %260 : vector<16x16xf32>
    %cst_112 = arith.constant dense<0.000000e+00> : vector<16xf32>
    %262 = vector.multi_reduction <add>, %261, %cst_112 [1] : vector<16x16xf32> to vector<16xf32>
    %263 = vector.shape_cast %262 : vector<16xf32> to vector<16x1xf32>
    %264 = tpu.reciprocal %263 {approx = true} : vector<16x1xf32> -> vector<16x1xf32>
    %265 = vector.broadcast %264 : vector<16x1xf32> to vector<16x16xf32>
    %266 = arith.mulf %261, %265 : vector<16x16xf32>
    %cst_113 = arith.constant dense<0.000000e+00> : vector<16x32xf32>
    %267 = tpu.matmul %266, %249, %cst_113 {dimension_numbers = #tpu.dot_dimension_numbers<[1], [0], [0], [1], [0, 0, 1, 1], [], []>} : vector<16x16xf32>, vector<16x32xf32>, vector<16x32xf32> -> vector<16x32xf32>
    %268 = vector.extract_strided_slice %204 {offsets = [0, 96], sizes = [16, 32], strides = [1, 1]} : vector<16x384xf32> to vector<16x32xf32>
    %269 = vector.extract_strided_slice %204 {offsets = [0, 224], sizes = [16, 32], strides = [1, 1]} : vector<16x384xf32> to vector<16x32xf32>
    %270 = vector.extract_strided_slice %204 {offsets = [0, 352], sizes = [16, 32], strides = [1, 1]} : vector<16x384xf32> to vector<16x32xf32>
    %cst_114 = arith.constant dense<0.000000e+00> : vector<16x16xf32>
    %271 = tpu.matmul %268, %269, %cst_114 {dimension_numbers = #tpu.dot_dimension_numbers<[1], [1], [0], [0], [0, 0, 1, 0], [], []>} : vector<16x32xf32>, vector<16x32xf32>, vector<16x16xf32> -> vector<16x16xf32>
    %cst_115 = arith.constant 0.176776692 : f32
    %272 = vector.broadcast %cst_115 : f32 to vector<16x16xf32>
    %273 = arith.mulf %271, %272 : vector<16x16xf32>
    %cst_116 = arith.constant -3.40282347E+38 : f32
    %274 = vector.shape_cast %26 : vector<1x16xi1> to vector<1x16xi1>
    %275 = vector.broadcast %274 : vector<1x16xi1> to vector<16x16xi1>
    %276 = vector.broadcast %cst_116 : f32 to vector<16x16xf32>
    %277 = arith.select %275, %273, %276 : vector<16x16xi1>, vector<16x16xf32>
    %cst_117 = arith.constant dense<0xFF800000> : vector<16xf32>
    %278 = vector.multi_reduction <maximumf>, %277, %cst_117 [1] : vector<16x16xf32> to vector<16xf32>
    %279 = vector.shape_cast %278 : vector<16xf32> to vector<16x1xf32>
    %280 = vector.broadcast %279 : vector<16x1xf32> to vector<16x16xf32>
    %281 = arith.subf %277, %280 : vector<16x16xf32>
    %282 = math.exp %281 : vector<16x16xf32>
    %cst_118 = arith.constant dense<0.000000e+00> : vector<16xf32>
    %283 = vector.multi_reduction <add>, %282, %cst_118 [1] : vector<16x16xf32> to vector<16xf32>
    %284 = vector.shape_cast %283 : vector<16xf32> to vector<16x1xf32>
    %285 = tpu.reciprocal %284 {approx = true} : vector<16x1xf32> -> vector<16x1xf32>
    %286 = vector.broadcast %285 : vector<16x1xf32> to vector<16x16xf32>
    %287 = arith.mulf %282, %286 : vector<16x16xf32>
    %cst_119 = arith.constant dense<0.000000e+00> : vector<16x32xf32>
    %288 = tpu.matmul %287, %270, %cst_119 {dimension_numbers = #tpu.dot_dimension_numbers<[1], [0], [0], [1], [0, 0, 1, 1], [], []>} : vector<16x16xf32>, vector<16x32xf32>, vector<16x32xf32> -> vector<16x32xf32>
    %289 = tpu.concatenate %225, %246, %267, %288 in 1 : vector<16x32xf32>, vector<16x32xf32>, vector<16x32xf32>, vector<16x32xf32> -> vector<16x128xf32>
    %c1_120 = arith.constant 1 : index
    %c0_121 = arith.constant 0 : index
    %c0_122 = arith.constant 0 : index
    %290 = vector.load %arg7[%c1_120, %c0_121, %c0_122] : memref<2x128x128xf32, #tpu.memory_space<vmem>>, vector<1x128x128xf32>
    %291 = vector.shape_cast %290 : vector<1x128x128xf32> to vector<128x128xf32>
    %cst_123 = arith.constant dense<0.000000e+00> : vector<16x128xf32>
    %292 = tpu.matmul %289, %291, %cst_123 {dimension_numbers = #tpu.dot_dimension_numbers<[1], [0], [0], [1], [0, 0, 1, 1], [], []>} : vector<16x128xf32>, vector<128x128xf32>, vector<16x128xf32> -> vector<16x128xf32>
    %c1_124 = arith.constant 1 : index
    %c0_125 = arith.constant 0 : index
    %c0_126 = arith.constant 0 : index
    %293 = vector.load %arg8[%c1_124, %c0_125, %c0_126] : memref<2x1x128xf32, #tpu.memory_space<vmem>>, vector<1x1x128xf32>
    %294 = vector.shape_cast %293 : vector<1x1x128xf32> to vector<1x128xf32>
    %295 = vector.broadcast %294 : vector<1x128xf32> to vector<16x128xf32>
    %296 = arith.addf %292, %295 : vector<16x128xf32>
    %297 = arith.addf %296, %197 : vector<16x128xf32>
    %c1_127 = arith.constant 1 : index
    %c0_128 = arith.constant 0 : index
    %c0_129 = arith.constant 0 : index
    %298 = vector.load %arg9[%c1_127, %c0_128, %c0_129] : memref<2x1x128xf32, #tpu.memory_space<vmem>>, vector<1x1x128xf32>
    %299 = vector.shape_cast %298 : vector<1x1x128xf32> to vector<1x128xf32>
    %c1_130 = arith.constant 1 : index
    %c0_131 = arith.constant 0 : index
    %c0_132 = arith.constant 0 : index
    %300 = vector.load %arg10[%c1_130, %c0_131, %c0_132] : memref<2x1x128xf32, #tpu.memory_space<vmem>>, vector<1x1x128xf32>
    %301 = vector.shape_cast %300 : vector<1x1x128xf32> to vector<1x128xf32>
    %cst_133 = arith.constant dense<0.000000e+00> : vector<16xf32>
    %302 = vector.multi_reduction <add>, %297, %cst_133 [1] : vector<16x128xf32> to vector<16xf32>
    %303 = vector.shape_cast %302 : vector<16xf32> to vector<16x1xf32>
    %cst_134 = arith.constant 1.280000e+02 : f32
    %304 = vector.broadcast %cst_134 : f32 to vector<16x1xf32>
    %305 = arith.divf %303, %304 : vector<16x1xf32>
    %306 = vector.broadcast %305 : vector<16x1xf32> to vector<16x128xf32>
    %307 = arith.subf %297, %306 : vector<16x128xf32>
    %308 = arith.mulf %307, %307 : vector<16x128xf32>
    %cst_135 = arith.constant dense<0.000000e+00> : vector<16xf32>
    %309 = vector.multi_reduction <add>, %308, %cst_135 [1] : vector<16x128xf32> to vector<16xf32>
    %310 = vector.shape_cast %309 : vector<16xf32> to vector<16x1xf32>
    %cst_136 = arith.constant 1.280000e+02 : f32
    %311 = vector.broadcast %cst_136 : f32 to vector<16x1xf32>
    %312 = arith.divf %310, %311 : vector<16x1xf32>
    %cst_137 = arith.constant 9.99999996E-13 : f32
    %313 = vector.broadcast %cst_137 : f32 to vector<16x1xf32>
    %314 = arith.addf %312, %313 : vector<16x1xf32>
    %315 = math.rsqrt %314 : vector<16x1xf32>
    %316 = vector.broadcast %315 : vector<16x1xf32> to vector<16x128xf32>
    %317 = arith.mulf %307, %316 : vector<16x128xf32>
    %318 = vector.broadcast %299 : vector<1x128xf32> to vector<16x128xf32>
    %319 = arith.mulf %317, %318 : vector<16x128xf32>
    %320 = vector.broadcast %301 : vector<1x128xf32> to vector<16x128xf32>
    %321 = arith.addf %319, %320 : vector<16x128xf32>
    %c1_138 = arith.constant 1 : index
    %c0_139 = arith.constant 0 : index
    %c0_140 = arith.constant 0 : index
    %322 = vector.load %arg11[%c1_138, %c0_139, %c0_140] : memref<2x128x512xf32, #tpu.memory_space<vmem>>, vector<1x128x512xf32>
    %323 = vector.shape_cast %322 : vector<1x128x512xf32> to vector<128x512xf32>
    %cst_141 = arith.constant dense<0.000000e+00> : vector<16x512xf32>
    %324 = tpu.matmul %321, %323, %cst_141 {dimension_numbers = #tpu.dot_dimension_numbers<[1], [0], [0], [1], [0, 0, 1, 1], [], []>} : vector<16x128xf32>, vector<128x512xf32>, vector<16x512xf32> -> vector<16x512xf32>
    %c1_142 = arith.constant 1 : index
    %c0_143 = arith.constant 0 : index
    %c0_144 = arith.constant 0 : index
    %325 = vector.load %arg12[%c1_142, %c0_143, %c0_144] : memref<2x1x512xf32, #tpu.memory_space<vmem>>, vector<1x1x512xf32>
    %326 = vector.shape_cast %325 : vector<1x1x512xf32> to vector<1x512xf32>
    %327 = vector.broadcast %326 : vector<1x512xf32> to vector<16x512xf32>
    %328 = arith.addf %324, %327 : vector<16x512xf32>
    %cst_145 = arith.constant 5.000000e-01 : f32
    %329 = vector.broadcast %cst_145 : f32 to vector<16x512xf32>
    %330 = arith.mulf %329, %328 : vector<16x512xf32>
    %cst_146 = arith.constant 0.707106769 : f32
    %331 = vector.broadcast %cst_146 : f32 to vector<16x512xf32>
    %332 = arith.mulf %328, %331 : vector<16x512xf32>
    %333 = math.erf %332 : vector<16x512xf32>
    %cst_147 = arith.constant 1.000000e+00 : f32
    %334 = vector.broadcast %cst_147 : f32 to vector<16x512xf32>
    %335 = arith.addf %334, %333 : vector<16x512xf32>
    %336 = arith.mulf %330, %335 : vector<16x512xf32>
    %c1_148 = arith.constant 1 : index
    %c0_149 = arith.constant 0 : index
    %c0_150 = arith.constant 0 : index
    %337 = vector.load %arg13[%c1_148, %c0_149, %c0_150] : memref<2x512x128xf32, #tpu.memory_space<vmem>>, vector<1x512x128xf32>
    %338 = vector.shape_cast %337 : vector<1x512x128xf32> to vector<512x128xf32>
    %cst_151 = arith.constant dense<0.000000e+00> : vector<16x128xf32>
    %339 = tpu.matmul %336, %338, %cst_151 {dimension_numbers = #tpu.dot_dimension_numbers<[1], [0], [0], [1], [0, 0, 1, 1], [], []>} : vector<16x512xf32>, vector<512x128xf32>, vector<16x128xf32> -> vector<16x128xf32>
    %c1_152 = arith.constant 1 : index
    %c0_153 = arith.constant 0 : index
    %c0_154 = arith.constant 0 : index
    %340 = vector.load %arg14[%c1_152, %c0_153, %c0_154] : memref<2x1x128xf32, #tpu.memory_space<vmem>>, vector<1x1x128xf32>
    %341 = vector.shape_cast %340 : vector<1x1x128xf32> to vector<1x128xf32>
    %342 = vector.broadcast %341 : vector<1x128xf32> to vector<16x128xf32>
    %343 = arith.addf %339, %342 : vector<16x128xf32>
    %344 = arith.addf %343, %321 : vector<16x128xf32>
    %c1_155 = arith.constant 1 : index
    %c0_156 = arith.constant 0 : index
    %c0_157 = arith.constant 0 : index
    %345 = vector.load %arg15[%c1_155, %c0_156, %c0_157] : memref<2x1x128xf32, #tpu.memory_space<vmem>>, vector<1x1x128xf32>
    %346 = vector.shape_cast %345 : vector<1x1x128xf32> to vector<1x128xf32>
    %c1_158 = arith.constant 1 : index
    %c0_159 = arith.constant 0 : index
    %c0_160 = arith.constant 0 : index
    %347 = vector.load %arg16[%c1_158, %c0_159, %c0_160] : memref<2x1x128xf32, #tpu.memory_space<vmem>>, vector<1x1x128xf32>
    %348 = vector.shape_cast %347 : vector<1x1x128xf32> to vector<1x128xf32>
    %cst_161 = arith.constant dense<0.000000e+00> : vector<16xf32>
    %349 = vector.multi_reduction <add>, %344, %cst_161 [1] : vector<16x128xf32> to vector<16xf32>
    %350 = vector.shape_cast %349 : vector<16xf32> to vector<16x1xf32>
    %cst_162 = arith.constant 1.280000e+02 : f32
    %351 = vector.broadcast %cst_162 : f32 to vector<16x1xf32>
    %352 = arith.divf %350, %351 : vector<16x1xf32>
    %353 = vector.broadcast %352 : vector<16x1xf32> to vector<16x128xf32>
    %354 = arith.subf %344, %353 : vector<16x128xf32>
    %355 = arith.mulf %354, %354 : vector<16x128xf32>
    %cst_163 = arith.constant dense<0.000000e+00> : vector<16xf32>
    %356 = vector.multi_reduction <add>, %355, %cst_163 [1] : vector<16x128xf32> to vector<16xf32>
    %357 = vector.shape_cast %356 : vector<16xf32> to vector<16x1xf32>
    %cst_164 = arith.constant 1.280000e+02 : f32
    %358 = vector.broadcast %cst_164 : f32 to vector<16x1xf32>
    %359 = arith.divf %357, %358 : vector<16x1xf32>
    %cst_165 = arith.constant 9.99999996E-13 : f32
    %360 = vector.broadcast %cst_165 : f32 to vector<16x1xf32>
    %361 = arith.addf %359, %360 : vector<16x1xf32>
    %362 = math.rsqrt %361 : vector<16x1xf32>
    %363 = vector.broadcast %362 : vector<16x1xf32> to vector<16x128xf32>
    %364 = arith.mulf %354, %363 : vector<16x128xf32>
    %365 = vector.broadcast %346 : vector<1x128xf32> to vector<16x128xf32>
    %366 = arith.mulf %364, %365 : vector<16x128xf32>
    %367 = vector.broadcast %348 : vector<1x128xf32> to vector<16x128xf32>
    %368 = arith.addf %366, %367 : vector<16x128xf32>
    %c0_166 = arith.constant 0 : index
    %c0_167 = arith.constant 0 : index
    %369 = vector.load %arg17[%c0_166, %c0_167] : memref<128x128xf32, #tpu.memory_space<vmem>>, vector<128x128xf32>
    %cst_168 = arith.constant dense<0.000000e+00> : vector<16x128xf32>
    %370 = tpu.matmul %368, %369, %cst_168 {dimension_numbers = #tpu.dot_dimension_numbers<[1], [0], [0], [1], [0, 0, 1, 1], [], []>} : vector<16x128xf32>, vector<128x128xf32>, vector<16x128xf32> -> vector<16x128xf32>
    %c0_169 = arith.constant 0 : index
    %c0_170 = arith.constant 0 : index
    %371 = vector.load %arg18[%c0_169, %c0_170] : memref<1x128xf32, #tpu.memory_space<vmem>>, vector<1x128xf32>
    %372 = vector.broadcast %371 : vector<1x128xf32> to vector<16x128xf32>
    %373 = arith.addf %370, %372 : vector<16x128xf32>
    %374 = math.tanh %373 : vector<16x128xf32>
    %c0_171 = arith.constant 0 : index
    %c0_172 = arith.constant 0 : index
    %375 = vector.load %arg19[%c0_171, %c0_172] : memref<128x128xf32, #tpu.memory_space<vmem>>, vector<128x128xf32>
    %cst_173 = arith.constant dense<0.000000e+00> : vector<16x128xf32>
    %376 = tpu.matmul %374, %375, %cst_173 {dimension_numbers = #tpu.dot_dimension_numbers<[1], [0], [0], [1], [0, 0, 1, 1], [], []>} : vector<16x128xf32>, vector<128x128xf32>, vector<16x128xf32> -> vector<16x128xf32>
    %c0_174 = arith.constant 0 : index
    %c0_175 = arith.constant 0 : index
    %377 = vector.load %arg20[%c0_174, %c0_175] : memref<1x128xf32, #tpu.memory_space<vmem>>, vector<1x128xf32>
    %378 = vector.broadcast %377 : vector<1x128xf32> to vector<16x128xf32>
    %379 = arith.addf %376, %378 : vector<16x128xf32>
    %c0_176 = arith.constant 0 : index
    %c0_177 = arith.constant 0 : index
    %380 = vector.load %arg21[%c0_176, %c0_177] : memref<16x128xf32, #tpu.memory_space<vmem>>, vector<16x128xf32>
    tpu.vector_store %arg21[%c0_176, %c0_177], %379 {strides = array<i32>} : memref<16x128xf32, #tpu.memory_space<vmem>>, vector<16x128xf32>,
    return
  }
  func.func @transform_0(%arg0: i32) -> (i32, i32) {
    %c0_i32 = arith.constant 0 : i32
    %c0_i32_0 = arith.constant 0 : i32
    return %arg0, %c0_i32 : i32, i32
  }
  func.func @transform_1(%arg0: i32) -> (i32, i32, i32) {
    %c0_i32 = arith.constant 0 : i32
    %c0_i32_0 = arith.constant 0 : i32
    %c0_i32_1 = arith.constant 0 : i32
    return %arg0, %c0_i32, %c0_i32_0 : i32, i32, i32
  }
  func.func @transform_2(%arg0: i32) -> (i32, i32) {
    %c0_i32 = arith.constant 0 : i32
    %c0_i32_0 = arith.constant 0 : i32
    %c0_i32_1 = arith.constant 0 : i32
    return %c0_i32, %c0_i32_0 : i32, i32
  }
  func.func @transform_3(%arg0: i32) -> (i32, i32) {
    %c0_i32 = arith.constant 0 : i32
    %c0_i32_0 = arith.constant 0 : i32
    %c0_i32_1 = arith.constant 0 : i32
    return %c0_i32, %c0_i32_0 : i32, i32
  }
  func.func @transform_4(%arg0: i32) -> (i32, i32, i32) {
    %c0_i32 = arith.constant 0 : i32
    %c0_i32_0 = arith.constant 0 : i32
    %c0_i32_1 = arith.constant 0 : i32
    %c0_i32_2 = arith.constant 0 : i32
    return %c0_i32, %c0_i32_0, %c0_i32_1 : i32, i32, i32
  }
  func.func @transform_5(%arg0: i32) -> (i32, i32, i32) {
    %c0_i32 = arith.constant 0 : i32
    %c0_i32_0 = arith.constant 0 : i32
    %c0_i32_1 = arith.constant 0 : i32
    %c0_i32_2 = arith.constant 0 : i32
    return %c0_i32, %c0_i32_0, %c0_i32_1 : i32, i32, i32
  }
  func.func @transform_6(%arg0: i32) -> (i32, i32, i32) {
    %c0_i32 = arith.constant 0 : i32
    %c0_i32_0 = arith.constant 0 : i32
    %c0_i32_1 = arith.constant 0 : i32
    %c0_i32_2 = arith.constant 0 : i32
    return %c0_i32, %c0_i32_0, %c0_i32_1 : i32, i32, i32
  }
  func.func @transform_7(%arg0: i32) -> (i32, i32, i32) {
    %c0_i32 = arith.constant 0 : i32
    %c0_i32_0 = arith.constant 0 : i32
    %c0_i32_1 = arith.constant 0 : i32
    %c0_i32_2 = arith.constant 0 : i32
    return %c0_i32, %c0_i32_0, %c0_i32_1 : i32, i32, i32
  }
  func.func @transform_8(%arg0: i32) -> (i32, i32, i32) {
    %c0_i32 = arith.constant 0 : i32
    %c0_i32_0 = arith.constant 0 : i32
    %c0_i32_1 = arith.constant 0 : i32
    %c0_i32_2 = arith.constant 0 : i32
    return %c0_i32, %c0_i32_0, %c0_i32_1 : i32, i32, i32
  }
  func.func @transform_9(%arg0: i32) -> (i32, i32, i32) {
    %c0_i32 = arith.constant 0 : i32
    %c0_i32_0 = arith.constant 0 : i32
    %c0_i32_1 = arith.constant 0 : i32
    %c0_i32_2 = arith.constant 0 : i32
    return %c0_i32, %c0_i32_0, %c0_i32_1 : i32, i32, i32
  }
  func.func @transform_10(%arg0: i32) -> (i32, i32, i32) {
    %c0_i32 = arith.constant 0 : i32
    %c0_i32_0 = arith.constant 0 : i32
    %c0_i32_1 = arith.constant 0 : i32
    %c0_i32_2 = arith.constant 0 : i32
    return %c0_i32, %c0_i32_0, %c0_i32_1 : i32, i32, i32
  }
  func.func @transform_11(%arg0: i32) -> (i32, i32, i32) {
    %c0_i32 = arith.constant 0 : i32
    %c0_i32_0 = arith.constant 0 : i32
    %c0_i32_1 = arith.constant 0 : i32
    %c0_i32_2 = arith.constant 0 : i32
    return %c0_i32, %c0_i32_0, %c0_i32_1 : i32, i32, i32
  }
  func.func @transform_12(%arg0: i32) -> (i32, i32, i32) {
    %c0_i32 = arith.constant 0 : i32
    %c0_i32_0 = arith.constant 0 : i32
    %c0_i32_1 = arith.constant 0 : i32
    %c0_i32_2 = arith.constant 0 : i32
    return %c0_i32, %c0_i32_0, %c0_i32_1 : i32, i32, i32
  }
  func.func @transform_13(%arg0: i32) -> (i32, i32, i32) {
    %c0_i32 = arith.constant 0 : i32
    %c0_i32_0 = arith.constant 0 : i32
    %c0_i32_1 = arith.constant 0 : i32
    %c0_i32_2 = arith.constant 0 : i32
    return %c0_i32, %c0_i32_0, %c0_i32_1 : i32, i32, i32
  }
  func.func @transform_14(%arg0: i32) -> (i32, i32, i32) {
    %c0_i32 = arith.constant 0 : i32
    %c0_i32_0 = arith.constant 0 : i32
    %c0_i32_1 = arith.constant 0 : i32
    %c0_i32_2 = arith.constant 0 : i32
    return %c0_i32, %c0_i32_0, %c0_i32_1 : i32, i32, i32
  }
  func.func @transform_15(%arg0: i32) -> (i32, i32, i32) {
    %c0_i32 = arith.constant 0 : i32
    %c0_i32_0 = arith.constant 0 : i32
    %c0_i32_1 = arith.constant 0 : i32
    %c0_i32_2 = arith.constant 0 : i32
    return %c0_i32, %c0_i32_0, %c0_i32_1 : i32, i32, i32
  }
  func.func @transform_16(%arg0: i32) -> (i32, i32) {
    %c0_i32 = arith.constant 0 : i32
    %c0_i32_0 = arith.constant 0 : i32
    %c0_i32_1 = arith.constant 0 : i32
    return %c0_i32, %c0_i32_0 : i32, i32
  }
  func.func @transform_17(%arg0: i32) -> (i32, i32) {
    %c0_i32 = arith.constant 0 : i32
    %c0_i32_0 = arith.constant 0 : i32
    %c0_i32_1 = arith.constant 0 : i32
    return %c0_i32, %c0_i32_0 : i32, i32
  }
  func.func @transform_18(%arg0: i32) -> (i32, i32) {
    %c0_i32 = arith.constant 0 : i32
    %c0_i32_0 = arith.constant 0 : i32
    %c0_i32_1 = arith.constant 0 : i32
    return %c0_i32, %c0_i32_0 : i32, i32
  }
  func.func @transform_19(%arg0: i32) -> (i32, i32) {
    %c0_i32 = arith.constant 0 : i32
    %c0_i32_0 = arith.constant 0 : i32
    %c0_i32_1 = arith.constant 0 : i32
    return %c0_i32, %c0_i32_0 : i32, i32
  }
  func.func @transform_20(%arg0: i32) -> (i32, i32) {
    %c0_i32 = arith.constant 0 : i32
    %c0_i32_0 = arith.constant 0 : i32
    return %arg0, %c0_i32 : i32, i32
  }
}

</mosaic_0001>

<llo_original>
// kernel: distilbert_class_forward.1
$region0: #{distilbert_class_forward.1}
  #allocation0 [shape = 'u32[]', space=smem, size = 0x4, offset = 0x4, fixed_abs, tag = 'smem constant byte address 0x4 - core index']
  #allocation1 [shape = 'u32[72,128]{1,0:T(1,128)}', space=vmem, size = 0x9000, scoped, tag = 'internal scratch']
  %s0 = inlined_call_operand.vmem [shape: f32[32,128], index: 0, kind: input, shape index: {}]
  %s1 = inlined_call_operand.vmem [shape: f32[2,1,16], index: 1, kind: input, shape index: {}]
  %s2 = inlined_call_operand.vmem [shape: f32[1,128], index: 2, kind: input, shape index: {}]
  %s3 = inlined_call_operand.vmem [shape: f32[1,128], index: 3, kind: input, shape index: {}]
  %s4 = inlined_call_operand.hbm [shape: f32[2,128,384], index: 4, kind: input, shape index: {}]
  %s5 = inlined_call_operand.vmem [shape: f32[2,1,384], index: 5, kind: input, shape index: {}]
  %s6 = inlined_call_operand.vmem [shape: f32[2,128,128], index: 6, kind: input, shape index: {}]
  %s7 = inlined_call_operand.vmem [shape: f32[2,1,128], index: 7, kind: input, shape index: {}]
  %s8 = inlined_call_operand.vmem [shape: f32[2,1,128], index: 8, kind: input, shape index: {}]
  %s9 = inlined_call_operand.vmem [shape: f32[2,1,128], index: 9, kind: input, shape index: {}]
  %s10 = inlined_call_operand.hbm [shape: f32[2,128,512], index: 10, kind: input, shape index: {}]
  %s11 = inlined_call_operand.vmem [shape: f32[2,1,512], index: 11, kind: input, shape index: {}]
  %s12 = inlined_call_operand.hbm [shape: f32[2,512,128], index: 12, kind: input, shape index: {}]
  %s13 = inlined_call_operand.vmem [shape: f32[2,1,128], index: 13, kind: input, shape index: {}]
  %s14 = inlined_call_operand.vmem [shape: f32[2,1,128], index: 14, kind: input, shape index: {}]
  %s15 = inlined_call_operand.vmem [shape: f32[2,1,128], index: 15, kind: input, shape index: {}]
  %s16 = inlined_call_operand.vmem [shape: f32[128,128], index: 16, kind: input, shape index: {}]
  %s17 = inlined_call_operand.vmem [shape: f32[1,128], index: 17, kind: input, shape index: {}]
  %s18 = inlined_call_operand.vmem [shape: f32[128,128], index: 18, kind: input, shape index: {}]
  %s19 = inlined_call_operand.vmem [shape: f32[1,128], index: 19, kind: input, shape index: {}]
  %s20 = inlined_call_operand.vmem [shape: f32[32,128], index: 20, kind: output, shape index: {}]
  %s21 = sld [smem:[#allocation0]]
  $region125: #{distilbert_class_forward.1} parent=0
    _
  %s23 = ssub.s32 1, %s21
  %s24 = scalar_select 0, %s23, %s21
  $region1: #{distilbert_class_forward.1} parent=0
    #allocation2 [shape = 'u8[393216]{0}', space=vmem, size = 0x60000, scoped, tag = 'input window, operand 4, single buffered']
    #allocation3 [shape = 's32[2]{0}', space=sflag, size = 0x8, scoped, tag = 'scoped memory for distilbert_class_forward.1']
    #allocation4 [shape = 'u8[524288]{0}', space=vmem, size = 0x80000, scoped, tag = 'input window, operand 10, single buffered']
    #allocation5 [shape = 's32[1]{0}', space=sflag, size = 0x4, scoped, tag = 'scoped memory for distilbert_class_forward.1']
    #allocation6 [shape = 'u8[524288]{0}', space=vmem, size = 0x80000, scoped, tag = 'input window, operand 12, single buffered']
    %25 = vsyncpa [#allocation3], 0
    %26 = vsyncpa [#allocation5], 0
    loop: start=0, step=1, limit=4
    $region2: #{distilbert_class_forward.1} parent=1 // loop_pre_header
      _
    $region3: #{distilbert_class_forward.1} parent=1 // loop_header
      %s28 = sphi 0, %s32
      %p29 = scmp.ge.s32.totalorder %s28, 4
      %s38 = sphi 0, %s40
      %s41 = sphi 0, %s38
      %s42 = sphi 0, %s41
      %s58 = sphi 0, %s42
      %s64 = sphi 0, %s66
      %s67 = sphi 0, %s64
      %s68 = sphi 0, %s67
      %s84 = sphi 0, %s68
      %s88 = sphi 0, %s88
      %s90 = sphi 0, %s88
      %s91 = sphi 0, %s90
      %s105 = sphi 0, %s91
      %s109 = sphi 0, %s109
      %s111 = sphi 0, %s109
      %s112 = sphi 0, %s111
      %s126 = sphi 0, %s112
      %s130 = sphi 0, %s130
      %s132 = sphi 0, %s130
      %s133 = sphi 0, %s132
      %s147 = sphi 0, %s133
      %s151 = sphi 0, %s151
      %s153 = sphi 0, %s151
      %s154 = sphi 0, %s153
      %s168 = sphi 0, %s154
      %s172 = sphi 0, %s172
      %s174 = sphi 0, %s172
      %s175 = sphi 0, %s174
      %s189 = sphi 0, %s175
      %s193 = sphi 0, %s193
      %s195 = sphi 0, %s193
      %s196 = sphi 0, %s195
      %s210 = sphi 0, %s196
      %s214 = sphi 0, %s214
      %s216 = sphi 0, %s214
      %s217 = sphi 0, %s216
      %s231 = sphi 0, %s217
      %s235 = sphi 0, %s235
      %s237 = sphi 0, %s235
      %s238 = sphi 0, %s237
      %s252 = sphi 0, %s238
      %s256 = sphi 0, %s256
      %s258 = sphi 0, %s256
      %s259 = sphi 0, %s258
      %s273 = sphi 0, %s259
      %s277 = sphi 0, %s277
      %s279 = sphi 0, %s277
      %s280 = sphi 0, %s279
      %s294 = sphi 0, %s280
      %s298 = sphi 0, %s298
      %s300 = sphi 0, %s298
      %s301 = sphi 0, %s300
      %s315 = sphi 0, %s301
      %s319 = sphi 0, %s319
      %s321 = sphi 0, %s319
      %s322 = sphi 0, %s321
      %s336 = sphi 0, %s322
      %s340 = sphi 0, %s340
      %s342 = sphi 0, %s340
      %s343 = sphi 0, %s342
      %s357 = sphi 0, %s343
      %s361 = sphi 0, %s361
      %s363 = sphi 0, %s361
      %s364 = sphi 0, %s363
      %s378 = sphi 0, %s364
      %s382 = sphi 0, %s382
      %s384 = sphi 0, %s382
      %s385 = sphi 0, %s384
      %s399 = sphi 0, %s385
      %s403 = sphi 0, %s403
      %s405 = sphi 0, %s403
      %s406 = sphi 0, %s405
      %s420 = sphi 0, %s406
      %s424 = sphi 0, %s424
      %s426 = sphi 0, %s424
      %s427 = sphi 0, %s426
      %s441 = sphi 0, %s427
      %s445 = sphi 0, %s445
      %s447 = sphi 0, %s445
      %s448 = sphi 0, %s447
      %s462 = sphi 0, %s448
      %s468 = sphi 0, %s470
      %s471 = sphi 0, %s468
      %s472 = sphi 0, %s471
      %s488 = sphi 0, %s472
    $region4: #{distilbert_class_forward.1} parent=1 // loop_header_branch
      %31 = sbr.rel (%p29) target = $region8
    $region5: #{distilbert_class_forward.1} parent=1 // loop_body
      %s33 = ssub.s32 %s28, 1
      %s34 = ssub.s32 %s28, 2
      %s35 = sadd.s32 %s28, 1
      %s36 = ssub.s32 %s28, %s35
      %p37 = scmp.eq.s32.totalorder %s36, 0
      %s39 = sadd.s32 %s38, 1
      %s40 = scalar_select %p37, %s38, %s39
      %p43 = pneg %p37
      %p44 = scmp.eq.s32.totalorder %s28, 1
      %p45 = por %p43, %p44
      %p46 = scmp.ne.s32.totalorder %s38, %s41
      %p47 = scmp.eq.s32.totalorder %s28, 0
      %p48 = por %p46, %p47
      %p49 = scmp.ne.s32.totalorder %s38, %s41
      %p50 = scmp.eq.s32.totalorder %s33, 1
      %p51 = por %p49, %p50
      %p52 = scmp.ne.s32.totalorder %s41, %s42
      %p53 = scmp.eq.s32.totalorder %s33, 0
      %p54 = por %p52, %p53
      %p55 = scmp.ne.s32.totalorder %s41, %s42
      %p56 = scmp.eq.s32.totalorder %s34, 1
      %p57 = por %p55, %p56
      %p59 = scmp.ne.s32.totalorder %s42, %s58
      %p60 = scmp.eq.s32.totalorder %s34, 0
      %p61 = por %p59, %p60
      %s62 = ssub.s32 %s28, %s35
      %p63 = scmp.eq.s32.totalorder %s62, 0
      %s65 = sadd.s32 %s64, 1
      %s66 = scalar_select %p63, %s64, %s65
      %p69 = pneg %p63
      %p70 = scmp.eq.s32.totalorder %s28, 1
      %p71 = por %p69, %p70
      %p72 = scmp.ne.s32.totalorder %s64, %s67
      %p73 = scmp.eq.s32.totalorder %s28, 0
      %p74 = por %p72, %p73
      %p75 = scmp.ne.s32.totalorder %s64, %s67
      %p76 = scmp.eq.s32.totalorder %s33, 1
      %p77 = por %p75, %p76
      %p78 = scmp.ne.s32.totalorder %s67, %s68
      %p79 = scmp.eq.s32.totalorder %s33, 0
      %p80 = por %p78, %p79
      %p81 = scmp.ne.s32.totalorder %s67, %s68
      %p82 = scmp.eq.s32.totalorder %s34, 1
      %p83 = por %p81, %p82
      %p85 = scmp.ne.s32.totalorder %s68, %s84
      %p86 = scmp.eq.s32.totalorder %s34, 0
      %p87 = por %p85, %p86
      %s89 = sadd.s32 %s88, 1
      %p92 = scmp.eq.s32.totalorder %s28, 1
      %p93 = scmp.ne.s32.totalorder %s88, %s90
      %p94 = scmp.eq.s32.totalorder %s28, 0
      %p95 = por %p93, %p94
      %p96 = scmp.ne.s32.totalorder %s88, %s90
      %p97 = scmp.eq.s32.totalorder %s33, 1
      %p98 = por %p96, %p97
      %p99 = scmp.ne.s32.totalorder %s90, %s91
      %p100 = scmp.eq.s32.totalorder %s33, 0
      %p101 = por %p99, %p100
      %p102 = scmp.ne.s32.totalorder %s90, %s91
      %p103 = scmp.eq.s32.totalorder %s34, 1
      %p104 = por %p102, %p103
      %p106 = scmp.ne.s32.totalorder %s91, %s105
      %p107 = scmp.eq.s32.totalorder %s34, 0
      %p108 = por %p106, %p107
      %s110 = sadd.s32 %s109, 1
      %p113 = scmp.eq.s32.totalorder %s28, 1
      %p114 = scmp.ne.s32.totalorder %s109, %s111
      %p115 = scmp.eq.s32.totalorder %s28, 0
      %p116 = por %p114, %p115
      %p117 = scmp.ne.s32.totalorder %s109, %s111
      %p118 = scmp.eq.s32.totalorder %s33, 1
      %p119 = por %p117, %p118
      %p120 = scmp.ne.s32.totalorder %s111, %s112
      %p121 = scmp.eq.s32.totalorder %s33, 0
      %p122 = por %p120, %p121
      %p123 = scmp.ne.s32.totalorder %s111, %s112
      %p124 = scmp.eq.s32.totalorder %s34, 1
      %p125 = por %p123, %p124
      %p127 = scmp.ne.s32.totalorder %s112, %s126
      %p128 = scmp.eq.s32.totalorder %s34, 0
      %p129 = por %p127, %p128
      %s131 = sadd.s32 %s130, 1
      %p134 = scmp.eq.s32.totalorder %s28, 1
      %p135 = scmp.ne.s32.totalorder %s130, %s132
      %p136 = scmp.eq.s32.totalorder %s28, 0
      %p137 = por %p135, %p136
      %p138 = scmp.ne.s32.totalorder %s130, %s132
      %p139 = scmp.eq.s32.totalorder %s33, 1
      %p140 = por %p138, %p139
      %p141 = scmp.ne.s32.totalorder %s132, %s133
      %p142 = scmp.eq.s32.totalorder %s33, 0
      %p143 = por %p141, %p142
      %p144 = scmp.ne.s32.totalorder %s132, %s133
      %p145 = scmp.eq.s32.totalorder %s34, 1
      %p146 = por %p144, %p145
      %p148 = scmp.ne.s32.totalorder %s133, %s147
      %p149 = scmp.eq.s32.totalorder %s34, 0
      %p150 = por %p148, %p149
      %s152 = sadd.s32 %s151, 1
      %p155 = scmp.eq.s32.totalorder %s28, 1
      %p156 = scmp.ne.s32.totalorder %s151, %s153
      %p157 = scmp.eq.s32.totalorder %s28, 0
      %p158 = por %p156, %p157
      %p159 = scmp.ne.s32.totalorder %s151, %s153
      %p160 = scmp.eq.s32.totalorder %s33, 1
      %p161 = por %p159, %p160
      %p162 = scmp.ne.s32.totalorder %s153, %s154
      %p163 = scmp.eq.s32.totalorder %s33, 0
      %p164 = por %p162, %p163
      %p165 = scmp.ne.s32.totalorder %s153, %s154
      %p166 = scmp.eq.s32.totalorder %s34, 1
      %p167 = por %p165, %p166
      %p169 = scmp.ne.s32.totalorder %s154, %s168
      %p170 = scmp.eq.s32.totalorder %s34, 0
      %p171 = por %p169, %p170
      %s173 = sadd.s32 %s172, 1
      %p176 = scmp.eq.s32.totalorder %s28, 1
      %p177 = scmp.ne.s32.totalorder %s172, %s174
      %p178 = scmp.eq.s32.totalorder %s28, 0
      %p179 = por %p177, %p178
      %p180 = scmp.ne.s32.totalorder %s172, %s174
      %p181 = scmp.eq.s32.totalorder %s33, 1
      %p182 = por %p180, %p181
      %p183 = scmp.ne.s32.totalorder %s174, %s175
      %p184 = scmp.eq.s32.totalorder %s33, 0
      %p185 = por %p183, %p184
      %p186 = scmp.ne.s32.totalorder %s174, %s175
      %p187 = scmp.eq.s32.totalorder %s34, 1
      %p188 = por %p186, %p187
      %p190 = scmp.ne.s32.totalorder %s175, %s189
      %p191 = scmp.eq.s32.totalorder %s34, 0
      %p192 = por %p190, %p191
      %s194 = sadd.s32 %s193, 1
      %p197 = scmp.eq.s32.totalorder %s28, 1
      %p198 = scmp.ne.s32.totalorder %s193, %s195
      %p199 = scmp.eq.s32.totalorder %s28, 0
      %p200 = por %p198, %p199
      %p201 = scmp.ne.s32.totalorder %s193, %s195
      %p202 = scmp.eq.s32.totalorder %s33, 1
      %p203 = por %p201, %p202
      %p204 = scmp.ne.s32.totalorder %s195, %s196
      %p205 = scmp.eq.s32.totalorder %s33, 0
      %p206 = por %p204, %p205
      %p207 = scmp.ne.s32.totalorder %s195, %s196
      %p208 = scmp.eq.s32.totalorder %s34, 1
      %p209 = por %p207, %p208
      %p211 = scmp.ne.s32.totalorder %s196, %s210
      %p212 = scmp.eq.s32.totalorder %s34, 0
      %p213 = por %p211, %p212
      %s215 = sadd.s32 %s214, 1
      %p218 = scmp.eq.s32.totalorder %s28, 1
      %p219 = scmp.ne.s32.totalorder %s214, %s216
      %p220 = scmp.eq.s32.totalorder %s28, 0
      %p221 = por %p219, %p220
      %p222 = scmp.ne.s32.totalorder %s214, %s216
      %p223 = scmp.eq.s32.totalorder %s33, 1
      %p224 = por %p222, %p223
      %p225 = scmp.ne.s32.totalorder %s216, %s217
      %p226 = scmp.eq.s32.totalorder %s33, 0
      %p227 = por %p225, %p226
      %p228 = scmp.ne.s32.totalorder %s216, %s217
      %p229 = scmp.eq.s32.totalorder %s34, 1
      %p230 = por %p228, %p229
      %p232 = scmp.ne.s32.totalorder %s217, %s231
      %p233 = scmp.eq.s32.totalorder %s34, 0
      %p234 = por %p232, %p233
      %s236 = sadd.s32 %s235, 1
      %p239 = scmp.eq.s32.totalorder %s28, 1
      %p240 = scmp.ne.s32.totalorder %s235, %s237
      %p241 = scmp.eq.s32.totalorder %s28, 0
      %p242 = por %p240, %p241
      %p243 = scmp.ne.s32.totalorder %s235, %s237
      %p244 = scmp.eq.s32.totalorder %s33, 1
      %p245 = por %p243, %p244
      %p246 = scmp.ne.s32.totalorder %s237, %s238
      %p247 = scmp.eq.s32.totalorder %s33, 0
      %p248 = por %p246, %p247
      %p249 = scmp.ne.s32.totalorder %s237, %s238
      %p250 = scmp.eq.s32.totalorder %s34, 1
      %p251 = por %p249, %p250
      %p253 = scmp.ne.s32.totalorder %s238, %s252
      %p254 = scmp.eq.s32.totalorder %s34, 0
      %p255 = por %p253, %p254
      %s257 = sadd.s32 %s256, 1
      %p260 = scmp.eq.s32.totalorder %s28, 1
      %p261 = scmp.ne.s32.totalorder %s256, %s258
      %p262 = scmp.eq.s32.totalorder %s28, 0
      %p263 = por %p261, %p262
      %p264 = scmp.ne.s32.totalorder %s256, %s258
      %p265 = scmp.eq.s32.totalorder %s33, 1
      %p266 = por %p264, %p265
      %p267 = scmp.ne.s32.totalorder %s258, %s259
      %p268 = scmp.eq.s32.totalorder %s33, 0
      %p269 = por %p267, %p268
      %p270 = scmp.ne.s32.totalorder %s258, %s259
      %p271 = scmp.eq.s32.totalorder %s34, 1
      %p272 = por %p270, %p271
      %p274 = scmp.ne.s32.totalorder %s259, %s273
      %p275 = scmp.eq.s32.totalorder %s34, 0
      %p276 = por %p274, %p275
      %s278 = sadd.s32 %s277, 1
      %p281 = scmp.eq.s32.totalorder %s28, 1
      %p282 = scmp.ne.s32.totalorder %s277, %s279
      %p283 = scmp.eq.s32.totalorder %s28, 0
      %p284 = por %p282, %p283
      %p285 = scmp.ne.s32.totalorder %s277, %s279
      %p286 = scmp.eq.s32.totalorder %s33, 1
      %p287 = por %p285, %p286
      %p288 = scmp.ne.s32.totalorder %s279, %s280
      %p289 = scmp.eq.s32.totalorder %s33, 0
      %p290 = por %p288, %p289
      %p291 = scmp.ne.s32.totalorder %s279, %s280
      %p292 = scmp.eq.s32.totalorder %s34, 1
      %p293 = por %p291, %p292
      %p295 = scmp.ne.s32.totalorder %s280, %s294
      %p296 = scmp.eq.s32.totalorder %s34, 0
      %p297 = por %p295, %p296
      %s299 = sadd.s32 %s298, 1
      %p302 = scmp.eq.s32.totalorder %s28, 1
      %p303 = scmp.ne.s32.totalorder %s298, %s300
      %p304 = scmp.eq.s32.totalorder %s28, 0
      %p305 = por %p303, %p304
      %p306 = scmp.ne.s32.totalorder %s298, %s300
      %p307 = scmp.eq.s32.totalorder %s33, 1
      %p308 = por %p306, %p307
      %p309 = scmp.ne.s32.totalorder %s300, %s301
      %p310 = scmp.eq.s32.totalorder %s33, 0
      %p311 = por %p309, %p310
      %p312 = scmp.ne.s32.totalorder %s300, %s301
      %p313 = scmp.eq.s32.totalorder %s34, 1
      %p314 = por %p312, %p313
      %p316 = scmp.ne.s32.totalorder %s301, %s315
      %p317 = scmp.eq.s32.totalorder %s34, 0
      %p318 = por %p316, %p317
      %s320 = sadd.s32 %s319, 1
      %p323 = scmp.eq.s32.totalorder %s28, 1
      %p324 = scmp.ne.s32.totalorder %s319, %s321
      %p325 = scmp.eq.s32.totalorder %s28, 0
      %p326 = por %p324, %p325
      %p327 = scmp.ne.s32.totalorder %s319, %s321
      %p328 = scmp.eq.s32.totalorder %s33, 1
      %p329 = por %p327, %p328
      %p330 = scmp.ne.s32.totalorder %s321, %s322
      %p331 = scmp.eq.s32.totalorder %s33, 0
      %p332 = por %p330, %p331
      %p333 = scmp.ne.s32.totalorder %s321, %s322
      %p334 = scmp.eq.s32.totalorder %s34, 1
      %p335 = por %p333, %p334
      %p337 = scmp.ne.s32.totalorder %s322, %s336
      %p338 = scmp.eq.s32.totalorder %s34, 0
      %p339 = por %p337, %p338
      %s341 = sadd.s32 %s340, 1
      %p344 = scmp.eq.s32.totalorder %s28, 1
      %p345 = scmp.ne.s32.totalorder %s340, %s342
      %p346 = scmp.eq.s32.totalorder %s28, 0
      %p347 = por %p345, %p346
      %p348 = scmp.ne.s32.totalorder %s340, %s342
      %p349 = scmp.eq.s32.totalorder %s33, 1
      %p350 = por %p348, %p349
      %p351 = scmp.ne.s32.totalorder %s342, %s343
      %p352 = scmp.eq.s32.totalorder %s33, 0
      %p353 = por %p351, %p352
      %p354 = scmp.ne.s32.totalorder %s342, %s343
      %p355 = scmp.eq.s32.totalorder %s34, 1
      %p356 = por %p354, %p355
      %p358 = scmp.ne.s32.totalorder %s343, %s357
      %p359 = scmp.eq.s32.totalorder %s34, 0
      %p360 = por %p358, %p359
      %s362 = sadd.s32 %s361, 1
      %p365 = scmp.eq.s32.totalorder %s28, 1
      %p366 = scmp.ne.s32.totalorder %s361, %s363
      %p367 = scmp.eq.s32.totalorder %s28, 0
      %p368 = por %p366, %p367
      %p369 = scmp.ne.s32.totalorder %s361, %s363
      %p370 = scmp.eq.s32.totalorder %s33, 1
      %p371 = por %p369, %p370
      %p372 = scmp.ne.s32.totalorder %s363, %s364
      %p373 = scmp.eq.s32.totalorder %s33, 0
      %p374 = por %p372, %p373
      %p375 = scmp.ne.s32.totalorder %s363, %s364
      %p376 = scmp.eq.s32.totalorder %s34, 1
      %p377 = por %p375, %p376
      %p379 = scmp.ne.s32.totalorder %s364, %s378
      %p380 = scmp.eq.s32.totalorder %s34, 0
      %p381 = por %p379, %p380
      %s383 = sadd.s32 %s382, 1
      %p386 = scmp.eq.s32.totalorder %s28, 1
      %p387 = scmp.ne.s32.totalorder %s382, %s384
      %p388 = scmp.eq.s32.totalorder %s28, 0
      %p389 = por %p387, %p388
      %p390 = scmp.ne.s32.totalorder %s382, %s384
      %p391 = scmp.eq.s32.totalorder %s33, 1
      %p392 = por %p390, %p391
      %p393 = scmp.ne.s32.totalorder %s384, %s385
      %p394 = scmp.eq.s32.totalorder %s33, 0
      %p395 = por %p393, %p394
      %p396 = scmp.ne.s32.totalorder %s384, %s385
      %p397 = scmp.eq.s32.totalorder %s34, 1
      %p398 = por %p396, %p397
      %p400 = scmp.ne.s32.totalorder %s385, %s399
      %p401 = scmp.eq.s32.totalorder %s34, 0
      %p402 = por %p400, %p401
      %s404 = sadd.s32 %s403, 1
      %p407 = scmp.eq.s32.totalorder %s28, 1
      %p408 = scmp.ne.s32.totalorder %s403, %s405
      %p409 = scmp.eq.s32.totalorder %s28, 0
      %p410 = por %p408, %p409
      %p411 = scmp.ne.s32.totalorder %s403, %s405
      %p412 = scmp.eq.s32.totalorder %s33, 1
      %p413 = por %p411, %p412
      %p414 = scmp.ne.s32.totalorder %s405, %s406
      %p415 = scmp.eq.s32.totalorder %s33, 0
      %p416 = por %p414, %p415
      %p417 = scmp.ne.s32.totalorder %s405, %s406
      %p418 = scmp.eq.s32.totalorder %s34, 1
      %p419 = por %p417, %p418
      %p421 = scmp.ne.s32.totalorder %s406, %s420
      %p422 = scmp.eq.s32.totalorder %s34, 0
      %p423 = por %p421, %p422
      %s425 = sadd.s32 %s424, 1
      %p428 = scmp.eq.s32.totalorder %s28, 1
      %p429 = scmp.ne.s32.totalorder %s424, %s426
      %p430 = scmp.eq.s32.totalorder %s28, 0
      %p431 = por %p429, %p430
      %p432 = scmp.ne.s32.totalorder %s424, %s426
      %p433 = scmp.eq.s32.totalorder %s33, 1
      %p434 = por %p432, %p433
      %p435 = scmp.ne.s32.totalorder %s426, %s427
      %p436 = scmp.eq.s32.totalorder %s33, 0
      %p437 = por %p435, %p436
      %p438 = scmp.ne.s32.totalorder %s426, %s427
      %p439 = scmp.eq.s32.totalorder %s34, 1
      %p440 = por %p438, %p439
      %p442 = scmp.ne.s32.totalorder %s427, %s441
      %p443 = scmp.eq.s32.totalorder %s34, 0
      %p444 = por %p442, %p443
      %s446 = sadd.s32 %s445, 1
      %p449 = scmp.eq.s32.totalorder %s28, 1
      %p450 = scmp.ne.s32.totalorder %s445, %s447
      %p451 = scmp.eq.s32.totalorder %s28, 0
      %p452 = por %p450, %p451
      %p453 = scmp.ne.s32.totalorder %s445, %s447
      %p454 = scmp.eq.s32.totalorder %s33, 1
      %p455 = por %p453, %p454
      %p456 = scmp.ne.s32.totalorder %s447, %s448
      %p457 = scmp.eq.s32.totalorder %s33, 0
      %p458 = por %p456, %p457
      %p459 = scmp.ne.s32.totalorder %s447, %s448
      %p460 = scmp.eq.s32.totalorder %s34, 1
      %p461 = por %p459, %p460
      %p463 = scmp.ne.s32.totalorder %s448, %s462
      %p464 = scmp.eq.s32.totalorder %s34, 0
      %p465 = por %p463, %p464
      %s466 = ssub.s32 %s28, %s35
      %p467 = scmp.eq.s32.totalorder %s466, 0
      %s469 = sadd.s32 %s468, 1
      %s470 = scalar_select %p467, %s468, %s469
      %p473 = pneg %p467
      %p474 = scmp.eq.s32.totalorder %s28, 1
      %p475 = por %p473, %p474
      %p476 = scmp.ne.s32.totalorder %s468, %s471
      %p477 = scmp.eq.s32.totalorder %s28, 0
      %p478 = por %p476, %p477
      %p479 = scmp.ne.s32.totalorder %s468, %s471
      %p480 = scmp.eq.s32.totalorder %s33, 1
      %p481 = por %p479, %p480
      %p482 = scmp.ne.s32.totalorder %s471, %s472
      %p483 = scmp.eq.s32.totalorder %s33, 0
      %p484 = por %p482, %p483
      %p485 = scmp.ne.s32.totalorder %s471, %s472
      %p486 = scmp.eq.s32.totalorder %s34, 1
      %p487 = por %p485, %p486
      %p489 = scmp.ne.s32.totalorder %s472, %s488
      %p490 = scmp.eq.s32.totalorder %s34, 0
      %p491 = por %p489, %p490
      %p492 = scmp.le.s32.totalorder 1, %s28
      %p493 = scmp.lt.s32.totalorder %s28, 3
      %p494 = pnand %p492, %p493
      %p495 = pneg %p494
      // Predicated region
      $region9: #{distilbert_class_forward.1} parent=5 // pred_check
        _
      $region10: #{distilbert_class_forward.1} parent=5 // pred_check_branch
        %497 = sbr.rel (%p494) target = $region12
      $region11: #{distilbert_class_forward.1} parent=5 // pred_region
        %s498 = ssub.s32 %s28, 1
        // Predicated region
        $region13: #{distilbert_class_forward.1} parent=11 // pred_check
          %p499 = pneg %p101
        $region14: #{distilbert_class_forward.1} parent=11 // pred_check_branch
          %501 = sbr.rel (%p499) target = $region16
        $region15: #{distilbert_class_forward.1} parent=11 // pred_region
          _
        $region16: #{distilbert_class_forward.1} parent=11 // pred_fallthru
          _
        // Predicated region
        $region17: #{distilbert_class_forward.1} parent=11 // pred_check
          %p502 = pneg %p122
        $region18: #{distilbert_class_forward.1} parent=11 // pred_check_branch
          %504 = sbr.rel (%p502) target = $region20
        $region19: #{distilbert_class_forward.1} parent=11 // pred_region
          _
        $region20: #{distilbert_class_forward.1} parent=11 // pred_fallthru
          _
        // Predicated region
        $region21: #{distilbert_class_forward.1} parent=11 // pred_check
          %p505 = pneg %p143
        $region22: #{distilbert_class_forward.1} parent=11 // pred_check_branch
          %507 = sbr.rel (%p505) target = $region24
        $region23: #{distilbert_class_forward.1} parent=11 // pred_region
          %509 = vsyncadd [#allocation3], 0
          %s510 = sshll.u32 %s4, 4
          %s511 = int_to_ptr.hbm [resolvable:$true] %s510
          %s512 = sshll.u32 [#allocation2], 4
          %s513 = int_to_ptr.vmem [resolvable:$true] %s512
          %518 = dma.hbm_to_vmem [thread:$0]  %s511, 12288, %s513, [#allocation3], 384, 384, 24
        $region24: #{distilbert_class_forward.1} parent=11 // pred_fallthru
          _
        // Predicated region
        $region25: #{distilbert_class_forward.1} parent=11 // pred_check
          %p519 = pneg %p164
        $region26: #{distilbert_class_forward.1} parent=11 // pred_check_branch
          %521 = sbr.rel (%p519) target = $region28
        $region27: #{distilbert_class_forward.1} parent=11 // pred_region
          _
        $region28: #{distilbert_class_forward.1} parent=11 // pred_fallthru
          _
        // Predicated region
        $region29: #{distilbert_class_forward.1} parent=11 // pred_check
          %p522 = pneg %p185
        $region30: #{distilbert_class_forward.1} parent=11 // pred_check_branch
          %524 = sbr.rel (%p522) target = $region32
        $region31: #{distilbert_class_forward.1} parent=11 // pred_region
          _
        $region32: #{distilbert_class_forward.1} parent=11 // pred_fallthru
          _
        // Predicated region
        $region33: #{distilbert_class_forward.1} parent=11 // pred_check
          %p525 = pneg %p206
        $region34: #{distilbert_class_forward.1} parent=11 // pred_check_branch
          %527 = sbr.rel (%p525) target = $region36
        $region35: #{distilbert_class_forward.1} parent=11 // pred_region
          _
        $region36: #{distilbert_class_forward.1} parent=11 // pred_fallthru
          _
        // Predicated region
        $region37: #{distilbert_class_forward.1} parent=11 // pred_check
          %p528 = pneg %p227
        $region38: #{distilbert_class_forward.1} parent=11 // pred_check_branch
          %530 = sbr.rel (%p528) target = $region40
        $region39: #{distilbert_class_forward.1} parent=11 // pred_region
          _
        $region40: #{distilbert_class_forward.1} parent=11 // pred_fallthru
          _
        // Predicated region
        $region41: #{distilbert_class_forward.1} parent=11 // pred_check
          %p531 = pneg %p248
        $region42: #{distilbert_class_forward.1} parent=11 // pred_check_branch
          %533 = sbr.rel (%p531) target = $region44
        $region43: #{distilbert_class_forward.1} parent=11 // pred_region
          _
        $region44: #{distilbert_class_forward.1} parent=11 // pred_fallthru
          _
        // Predicated region
        $region45: #{distilbert_class_forward.1} parent=11 // pred_check
          %p534 = pneg %p269
        $region46: #{distilbert_class_forward.1} parent=11 // pred_check_branch
          %536 = sbr.rel (%p534) target = $region48
        $region47: #{distilbert_class_forward.1} parent=11 // pred_region
          %538 = vsyncadd [#allocation5], 0
          %s539 = sshll.u32 %s10, 4
          %s540 = int_to_ptr.hbm [resolvable:$true] %s539
          %s541 = sshll.u32 [#allocation4], 4
          %s542 = int_to_ptr.vmem [resolvable:$true] %s541
          %547 = dma.hbm_to_vmem [thread:$0]  %s540, 16384, %s542, [#allocation5], 512, 512, 32
        $region48: #{distilbert_class_forward.1} parent=11 // pred_fallthru
          _
        // Predicated region
        $region49: #{distilbert_class_forward.1} parent=11 // pred_check
          %p548 = pneg %p290
        $region50: #{distilbert_class_forward.1} parent=11 // pred_check_branch
          %550 = sbr.rel (%p548) target = $region52
        $region51: #{distilbert_class_forward.1} parent=11 // pred_region
          _
        $region52: #{distilbert_class_forward.1} parent=11 // pred_fallthru
          _
        // Predicated region
        $region53: #{distilbert_class_forward.1} parent=11 // pred_check
          %p551 = pneg %p311
        $region54: #{distilbert_class_forward.1} parent=11 // pred_check_branch
          %553 = sbr.rel (%p551) target = $region56
        $region55: #{distilbert_class_forward.1} parent=11 // pred_region
          %555 = vsyncadd [#allocation5], 0
          %s556 = sshll.u32 %s12, 4
          %s557 = int_to_ptr.hbm [resolvable:$true] %s556
          %s558 = sshll.u32 [#allocation6], 4
          %s559 = int_to_ptr.vmem [resolvable:$true] %s558
          %564 = dma.hbm_to_vmem [thread:$0]  %s557, 16384, %s559, [#allocation5], 128, 128, 8
        $region56: #{distilbert_class_forward.1} parent=11 // pred_fallthru
          _
        // Predicated region
        $region57: #{distilbert_class_forward.1} parent=11 // pred_check
          %p565 = pneg %p332
        $region58: #{distilbert_class_forward.1} parent=11 // pred_check_branch
          %567 = sbr.rel (%p565) target = $region60
        $region59: #{distilbert_class_forward.1} parent=11 // pred_region
          _
        $region60: #{distilbert_class_forward.1} parent=11 // pred_fallthru
          _
        // Predicated region
        $region61: #{distilbert_class_forward.1} parent=11 // pred_check
          %p568 = pneg %p353
        $region62: #{distilbert_class_forward.1} parent=11 // pred_check_branch
          %570 = sbr.rel (%p568) target = $region64
        $region63: #{distilbert_class_forward.1} parent=11 // pred_region
          _
        $region64: #{distilbert_class_forward.1} parent=11 // pred_fallthru
          _
        // Predicated region
        $region65: #{distilbert_class_forward.1} parent=11 // pred_check
          %p571 = pneg %p374
        $region66: #{distilbert_class_forward.1} parent=11 // pred_check_branch
          %573 = sbr.rel (%p571) target = $region68
        $region67: #{distilbert_class_forward.1} parent=11 // pred_region
          _
        $region68: #{distilbert_class_forward.1} parent=11 // pred_fallthru
          _
        // Predicated region
        $region69: #{distilbert_class_forward.1} parent=11 // pred_check
          %p574 = pneg %p395
        $region70: #{distilbert_class_forward.1} parent=11 // pred_check_branch
          %576 = sbr.rel (%p574) target = $region72
        $region71: #{distilbert_class_forward.1} parent=11 // pred_region
          _
        $region72: #{distilbert_class_forward.1} parent=11 // pred_fallthru
          _
        // Predicated region
        $region73: #{distilbert_class_forward.1} parent=11 // pred_check
          %p577 = pneg %p416
        $region74: #{distilbert_class_forward.1} parent=11 // pred_check_branch
          %579 = sbr.rel (%p577) target = $region76
        $region75: #{distilbert_class_forward.1} parent=11 // pred_region
          _
        $region76: #{distilbert_class_forward.1} parent=11 // pred_fallthru
          _
        // Predicated region
        $region77: #{distilbert_class_forward.1} parent=11 // pred_check
          %p580 = pneg %p437
        $region78: #{distilbert_class_forward.1} parent=11 // pred_check_branch
          %582 = sbr.rel (%p580) target = $region80
        $region79: #{distilbert_class_forward.1} parent=11 // pred_region
          _
        $region80: #{distilbert_class_forward.1} parent=11 // pred_fallthru
          _
        // Predicated region
        $region81: #{distilbert_class_forward.1} parent=11 // pred_check
          %p583 = pneg %p458
        $region82: #{distilbert_class_forward.1} parent=11 // pred_check_branch
          %585 = sbr.rel (%p583) target = $region84
        $region83: #{distilbert_class_forward.1} parent=11 // pred_region
          _
        $region84: #{distilbert_class_forward.1} parent=11 // pred_fallthru
          _
      $region12: #{distilbert_class_forward.1} parent=5 // pred_fallthru
        _
      %p586 = scmp.lt.s32.totalorder %s28, 2
      // Predicated region
      $region85: #{distilbert_class_forward.1} parent=5 // pred_check
        %p587 = pneg %p586
      $region86: #{distilbert_class_forward.1} parent=5 // pred_check_branch
        %589 = sbr.rel (%p587) target = $region88
      $region87: #{distilbert_class_forward.1} parent=5 // pred_region
        // Predicated region
        $region89: #{distilbert_class_forward.1} parent=87 // pred_check
          %p590 = pneg %p48
        $region90: #{distilbert_class_forward.1} parent=87 // pred_check_branch
          %592 = sbr.rel (%p590) target = $region92
        $region91: #{distilbert_class_forward.1} parent=87 // pred_region
          %s593 = smul.u32 2, %s28
          %p594 = scmp.lt.s32.totalorder %s593, 3
          %s595 = scalar_select %p594, %s593, 3
          %s596 = smul.addr %s595, 8
          %s597 = scalar_lea.vmem %s0, %s596
          %s598 = smul.u32 2, %s28
        $region92: #{distilbert_class_forward.1} parent=87 // pred_fallthru
          _
        // Predicated region
        $region93: #{distilbert_class_forward.1} parent=87 // pred_check
          %p599 = pneg %p74
        $region94: #{distilbert_class_forward.1} parent=87 // pred_check_branch
          %601 = sbr.rel (%p599) target = $region96
        $region95: #{distilbert_class_forward.1} parent=87 // pred_region
          %p602 = scmp.lt.s32.totalorder %s28, 1
          %s603 = scalar_select %p602, %s28, 1
          %s604 = scalar_lea.vmem %s1, %s603
        $region96: #{distilbert_class_forward.1} parent=87 // pred_fallthru
          _
      $region88: #{distilbert_class_forward.1} parent=5 // pred_fallthru
        _
      %p605 = scmp.le.s32.totalorder 1, %s28
      %p606 = scmp.lt.s32.totalorder %s28, 3
      %p607 = pnand %p605, %p606
      %p608 = pneg %p607
      // Predicated region
      $region97: #{distilbert_class_forward.1} parent=5 // pred_check
        _
      $region98: #{distilbert_class_forward.1} parent=5 // pred_check_branch
        %610 = sbr.rel (%p607) target = $region100
      $region99: #{distilbert_class_forward.1} parent=5 // pred_region
        %s611 = ssub.s32 %s28, 1
        // Predicated region
        $region101: #{distilbert_class_forward.1} parent=99 // pred_check
          %p612 = pneg %p143
        $region102: #{distilbert_class_forward.1} parent=99 // pred_check_branch
          %614 = sbr.rel (%p612) target = $region104
        $region103: #{distilbert_class_forward.1} parent=99 // pred_region
          %616 = dma.done [#allocation3], 12288
        $region104: #{distilbert_class_forward.1} parent=99 // pred_fallthru
          _
        // Predicated region
        $region105: #{distilbert_class_forward.1} parent=99 // pred_check
          %p617 = pneg %p269
        $region106: #{distilbert_class_forward.1} parent=99 // pred_check_branch
          %619 = sbr.rel (%p617) target = $region108
        $region107: #{distilbert_class_forward.1} parent=99 // pred_region
          %621 = dma.done [#allocation5], 16384
        $region108: #{distilbert_class_forward.1} parent=99 // pred_fallthru
          _
        // Predicated region
        $region109: #{distilbert_class_forward.1} parent=99 // pred_check
          %p622 = pneg %p311
        $region110: #{distilbert_class_forward.1} parent=99 // pred_check_branch
          %624 = sbr.rel (%p622) target = $region112
        $region111: #{distilbert_class_forward.1} parent=99 // pred_region
          %626 = dma.done [#allocation5], 16384
        $region112: #{distilbert_class_forward.1} parent=99 // pred_fallthru
          _
        %s627 = smul.u32 2, %s33
        %p628 = scmp.lt.s32.totalorder %s627, 3
        %s629 = scalar_select %p628, %s627, 3
        %s630 = smul.addr %s629, 8
        %s631 = scalar_lea.vmem %s0, %s630
        %p632 = pneg %p54
        %p633 = pneg %p51
        %p634 = scmp.lt.s32.totalorder %s33, 1
        %s635 = scalar_select %p634, %s33, 1
        %s636 = scalar_lea.vmem %s1, %s635
        %p637 = pneg %p80
        %p638 = pneg %p77
        %p639 = pneg %p101
        %p640 = pneg %p98
        %p641 = pneg %p122
        %p642 = pneg %p119
        %p643 = pneg %p143
        %p644 = pneg %p140
        %p645 = pneg %p164
        %p646 = pneg %p161
        %p647 = pneg %p185
        %p648 = pneg %p182
        %p649 = pneg %p206
        %p650 = pneg %p203
        %p651 = pneg %p227
        %p652 = pneg %p224
        %p653 = pneg %p248
        %p654 = pneg %p245
        %p655 = pneg %p269
        %p656 = pneg %p266
        %p657 = pneg %p290
        %p658 = pneg %p287
        %p659 = pneg %p311
        %p660 = pneg %p308
        %p661 = pneg %p332
        %p662 = pneg %p329
        %p663 = pneg %p353
        %p664 = pneg %p350
        %p665 = pneg %p374
        %p666 = pneg %p371
        %p667 = pneg %p395
        %p668 = pneg %p392
        %p669 = pneg %p416
        %p670 = pneg %p413
        %p671 = pneg %p437
        %p672 = pneg %p434
        %p673 = pneg %p458
        %p674 = pneg %p455
        %p675 = pneg %p484
        %p676 = pneg %p481
        %s677 = smul.u32 2, %s33
        %p678 = scmp.lt.s32.totalorder %s677, 3
        %s679 = scalar_select %p678, %s677, 3
        %s680 = smul.addr %s679, 8
        %s681 = scalar_lea.vmem %s20, %s680
        %s682 = smul.u32 2, %s33
        %p683 = scmp.lt.s32.totalorder %s682, 3
        %s684 = scalar_select %p683, %s682, 3
        %s685 = smul.addr %s684, 8
        %s686 = scalar_lea.vmem %s0, %s685
        %s687 = smul.u32 2, %s33
        %p688 = scmp.lt.s32.totalorder %s33, 1
        %s689 = scalar_select %p688, %s33, 1
        %s690 = scalar_lea.vmem %s1, %s689
        %s691 = smul.u32 2, %s33
        %p692 = scmp.lt.s32.totalorder %s691, 3
        %s693 = scalar_select %p692, %s691, 3
        %s694 = smul.addr %s693, 8
        %s695 = scalar_lea.vmem %s20, %s694
        %s696 = smul.u32 2, %s33
        %v697 = vld [vmem:[%s686] sm:$0xff]
        %v698 = vld [vmem:[%s686 + $0x8] sm:$0xff]
        %v699 = vld [vmem:[%s2] sm:$0x1]
        %v700 = vld [vmem:[%s3] sm:$0x1]
        %701 = vadd.xlane.f32.xlu0 %v697
        %v702 = vpop.xlane.xlu0 %701
        %703 = vadd.xlane.f32.xlu0 %v698
        %v704 = vpop.xlane.xlu0 %703
        %v705 = vrcp.pop 128.0
        %v706 = vmul.f32 128.0, %v705
        %v707 = vsub.f32 1.0, %v706
        %v708 = vmul.f32 %v705, %v707
        %v709 = vadd.f32 %v705, %v708
        %vm710 = vweird.f32 %v705
        %v711 = vsel %vm710, %v705, %v709
        %v712 = vmul.f32 %v702, %v711
        %v713 = vmul.f32 %v704, %v711
        %v714 = vsub.f32 %v697, %v712
        %v715 = vsub.f32 %v698, %v713
        %v716 = vmul.f32 %v714, %v714
        %v717 = vmul.f32 %v715, %v715
        %718 = vadd.xlane.f32.xlu0 %v716
        %v719 = vpop.xlane.xlu0 %718
        %720 = vadd.xlane.f32.xlu0 %v717
        %v721 = vpop.xlane.xlu0 %720
        %v722 = vmul.f32 %v719, %v711
        %v723 = vmul.f32 %v721, %v711
        %v724 = vadd.f32 %v722, 1e-12
        %v725 = vadd.f32 %v723, 1e-12
        %v726 = vrsqrt.pop %v724
        %v727 = vmul.f32 %v726, %v724
        %v728 = vmul.f32 %v727, %v726
        %v729 = vmul.f32 0.5, %v728
        %v730 = vsub.f32 1.5, %v729
        %v731 = vmul.f32 %v726, %v730
        %vm732 = vweird.f32 %v724
        %vm733 = vweird.f32 %v726
        %vm734 = vmor %vm732, %vm733
        %v735 = vsel %vm734, %v726, %v731
        %v736 = vrsqrt.pop %v725
        %v737 = vmul.f32 %v736, %v725
        %v738 = vmul.f32 %v737, %v736
        %v739 = vmul.f32 0.5, %v738
        %v740 = vsub.f32 1.5, %v739
        %v741 = vmul.f32 %v736, %v740
        %vm742 = vweird.f32 %v725
        %vm743 = vweird.f32 %v736
        %vm744 = vmor %vm742, %vm743
        %v745 = vsel %vm744, %v736, %v741
        %v746 = vmul.f32 %v714, %v735
        %v747 = vmul.f32 %v715, %v745
        %v749 = vperm.slane %v699, 0
        %v751 = vmul.f32 %v746, %v749
        %v752 = vmul.f32 %v747, %v749
        %v754 = vperm.slane %v700, 0
        %v756 = vadd.f32 %v751, %v754
        %v757 = vadd.f32 %v752, %v754
        %v758 = vld [vmem:[%s690] sm:$0x1]
        %vm759 = vcmp.gt.f32.partialorder %v758, 0.5
        %v760 = vld [vmem:[#allocation2] sm:$0xff]
        %v761 = vld [vmem:[#allocation2 + $0x8] sm:$0xff]
        %v762 = vld [vmem:[#allocation2 + $0x10] sm:$0xff]
        %v763 = vld [vmem:[#allocation2 + $0x18] sm:$0xff]
        %v764 = vld [vmem:[#allocation2 + $0x20] sm:$0xff]
        %v765 = vld [vmem:[#allocation2 + $0x28] sm:$0xff]
        %v766 = vld [vmem:[#allocation2 + $0x30] sm:$0xff]
        %v767 = vld [vmem:[#allocation2 + $0x38] sm:$0xff]
        %v768 = vld [vmem:[#allocation2 + $0x40] sm:$0xff]
        %v769 = vld [vmem:[#allocation2 + $0x48] sm:$0xff]
        %v770 = vld [vmem:[#allocation2 + $0x50] sm:$0xff]
        %v771 = vld [vmem:[#allocation2 + $0x58] sm:$0xff]
        %v772 = vld [vmem:[#allocation2 + $0x60] sm:$0xff]
        %v773 = vld [vmem:[#allocation2 + $0x68] sm:$0xff]
        %v774 = vld [vmem:[#allocation2 + $0x70] sm:$0xff]
        %v775 = vld [vmem:[#allocation2 + $0x78] sm:$0xff]
        %v776 = vld [vmem:[#allocation2 + $0x80] sm:$0xff]
        %v777 = vld [vmem:[#allocation2 + $0x88] sm:$0xff]
        %v778 = vld [vmem:[#allocation2 + $0x90] sm:$0xff]
        %v779 = vld [vmem:[#allocation2 + $0x98] sm:$0xff]
        %v780 = vld [vmem:[#allocation2 + $0xa0] sm:$0xff]
        %v781 = vld [vmem:[#allocation2 + $0xa8] sm:$0xff]
        %v782 = vld [vmem:[#allocation2 + $0xb0] sm:$0xff]
        %v783 = vld [vmem:[#allocation2 + $0xb8] sm:$0xff]
        %v784 = vld [vmem:[#allocation2 + $0xc0] sm:$0xff]
        %v785 = vld [vmem:[#allocation2 + $0xc8] sm:$0xff]
        %v786 = vld [vmem:[#allocation2 + $0xd0] sm:$0xff]
        %v787 = vld [vmem:[#allocation2 + $0xd8] sm:$0xff]
        %v788 = vld [vmem:[#allocation2 + $0xe0] sm:$0xff]
        %v789 = vld [vmem:[#allocation2 + $0xe8] sm:$0xff]
        %v790 = vld [vmem:[#allocation2 + $0xf0] sm:$0xff]
        %v791 = vld [vmem:[#allocation2 + $0xf8] sm:$0xff]
        %v792 = vld [vmem:[#allocation2 + $0x100] sm:$0xff]
        %v793 = vld [vmem:[#allocation2 + $0x108] sm:$0xff]
        %v794 = vld [vmem:[#allocation2 + $0x110] sm:$0xff]
        %v795 = vld [vmem:[#allocation2 + $0x118] sm:$0xff]
        %v796 = vld [vmem:[#allocation2 + $0x120] sm:$0xff]
        %v797 = vld [vmem:[#allocation2 + $0x128] sm:$0xff]
        %v798 = vld [vmem:[#allocation2 + $0x130] sm:$0xff]
        %v799 = vld [vmem:[#allocation2 + $0x138] sm:$0xff]
        %v800 = vld [vmem:[#allocation2 + $0x140] sm:$0xff]
        %v801 = vld [vmem:[#allocation2 + $0x148] sm:$0xff]
        %v802 = vld [vmem:[#allocation2 + $0x150] sm:$0xff]
        %v803 = vld [vmem:[#allocation2 + $0x158] sm:$0xff]
        %v804 = vld [vmem:[#allocation2 + $0x160] sm:$0xff]
        %v805 = vld [vmem:[#allocation2 + $0x168] sm:$0xff]
        %v806 = vld [vmem:[#allocation2 + $0x170] sm:$0xff]
        %v807 = vld [vmem:[#allocation2 + $0x178] sm:$0xff]
        %v808 = vld [vmem:[%s5] sm:$0x7]
        %v810 = vperm.slane %v808, 0
        %v811 = vperm.slane %v808, 1
        %v812 = vperm.slane %v808, 2
        %816 = vmatpush.msra.mxu0 %v805
        %817 = vmatpush.msra.mxu0 %v802
        %818 = vmatpush.msra.mxu0 %v799
        %819 = vmatpush.msra.mxu0 %v796
        %820 = vmatpush.msra.mxu0 %v793
        %821 = vmatpush.msra.mxu0 %v790
        %822 = vmatpush.msra.mxu0 %v787
        %823 = vmatpush.msra.mxu0 %v784
        %824 = vmatpush.msra.mxu0 %v781
        %825 = vmatpush.msra.mxu0 %v778
        %826 = vmatpush.msra.mxu0 %v775
        %827 = vmatpush.msra.mxu0 %v772
        %828 = vmatpush.msra.mxu0 %v769
        %829 = vmatpush.msra.mxu0 %v766
        %830 = vmatpush.msra.mxu0 %v763
        %831 = vmatpush.msra.mxu0 %v760
        %832 = vmatmul.f32.gmra.mxu0 %v756
        %v833 = vpop.f32.mrf.mxu0
        %v834 = vadd.f32 %v810, %v833
        %835 = vmatmul.f32.gmra.mxu0 %v757
        %v836 = vpop.f32.mrf.mxu0
        %v837 = vadd.f32 %v810, %v836
        %838 = vdwg.mxu0
        %839 = vmatpush.msra.mxu0 %v806
        %840 = vmatpush.msra.mxu0 %v803
        %841 = vmatpush.msra.mxu0 %v800
        %842 = vmatpush.msra.mxu0 %v797
        %843 = vmatpush.msra.mxu0 %v794
        %844 = vmatpush.msra.mxu0 %v791
        %845 = vmatpush.msra.mxu0 %v788
        %846 = vmatpush.msra.mxu0 %v785
        %847 = vmatpush.msra.mxu0 %v782
        %848 = vmatpush.msra.mxu0 %v779
        %849 = vmatpush.msra.mxu0 %v776
        %850 = vmatpush.msra.mxu0 %v773
        %851 = vmatpush.msra.mxu0 %v770
        %852 = vmatpush.msra.mxu0 %v767
        %853 = vmatpush.msra.mxu0 %v764
        %854 = vmatpush.msra.mxu0 %v761
        %855 = vmatmul.f32.gmra.mxu0 %v756
        %v856 = vpop.f32.mrf.mxu0
        %v857 = vadd.f32 %v811, %v856
        %858 = vmatmul.f32.gmra.mxu0 %v757
        %v859 = vpop.f32.mrf.mxu0
        %v860 = vadd.f32 %v811, %v859
        %861 = vdwg.mxu0
        %862 = vmatpush.msra.mxu0 %v807
        %863 = vmatpush.msra.mxu0 %v804
        %864 = vmatpush.msra.mxu0 %v801
        %865 = vmatpush.msra.mxu0 %v798
        %866 = vmatpush.msra.mxu0 %v795
        %867 = vmatpush.msra.mxu0 %v792
        %868 = vmatpush.msra.mxu0 %v789
        %869 = vmatpush.msra.mxu0 %v786
        %870 = vmatpush.msra.mxu0 %v783
        %871 = vmatpush.msra.mxu0 %v780
        %872 = vmatpush.msra.mxu0 %v777
        %873 = vmatpush.msra.mxu0 %v774
        %874 = vmatpush.msra.mxu0 %v771
        %875 = vmatpush.msra.mxu0 %v768
        %876 = vmatpush.msra.mxu0 %v765
        %877 = vmatpush.msra.mxu0 %v762
        %878 = vmatmul.f32.gmra.mxu0 %v756
        %v879 = vpop.f32.mrf.mxu0
        %v880 = vadd.f32 %v812, %v879
        %881 = vmatmul.f32.gmra.mxu0 %v757
        %v882 = vpop.f32.mrf.mxu0
        %v883 = vadd.f32 %v812, %v882
        %884 = vdwg.mxu0
        %vm885 = vcmask 261120
        %v887 = vsel %vm885, %v834, 0
        %v890 = vsel %vm885, %v837, 0
        %v893 = vsel %vm885, %v857, 0
        %v896 = vsel %vm885, %v860, 0
        %898 = vmatpush.xpose.msra.mxu0 0.0
        %899 = vmatpush.xpose.msra.mxu0 0.0
        %900 = vmatpush.xpose.msra.mxu0 0.0
        %901 = vmatpush.xpose.msra.mxu0 0.0
        %902 = vmatpush.xpose.msra.mxu0 0.0
        %903 = vmatpush.xpose.msra.mxu0 0.0
        %904 = vmatpush.xpose.msra.mxu0 0.0
        %905 = vmatpush.xpose.msra.mxu0 0.0
        %906 = vmatpush.xpose.msra.mxu0 0.0
        %907 = vmatpush.xpose.msra.mxu0 0.0
        %908 = vmatpush.xpose.msra.mxu0 0.0
        %909 = vmatpush.xpose.msra.mxu0 0.0
        %910 = vmatpush.xpose.msra.mxu0 0.0
        %911 = vmatpush.xpose.msra.mxu0 0.0
        %912 = vmatpush.xpose.msra.mxu0 %v896
        %913 = vmatpush.xpose.msra.mxu0 %v893
        %914 = vmatmul.f32.gmra.mxu0 %v887
        %v915 = vpop.f32.mrf.mxu0
        %v916 = vadd.f32 0.0, %v915
        %917 = vmatmul.f32.gmra.mxu0 %v890
        %v918 = vpop.f32.mrf.mxu0
        %v919 = vadd.f32 0.0, %v918
        %920 = vdwg.mxu0
        %v921 = vmul.f32 %v916, 0.17677669
        %v922 = vmul.f32 %v919, 0.17677669
        %v923 = vsel %vm759, 1, 0
        %v924 = vperm.slane %v923, 0
        %vm925 = vcmp.eq.s32.totalorder %v924, 1
        %v926 = vsel %vm925, %v921, -3.4028235e+38
        %v927 = vsel %vm925, %v922, -3.4028235e+38
        %vm928 = vcmask 130048
        %v929 = vsel %vm928, %v926, -inf
        %930 = vmax.xlane.f32.xlu0 %v929
        %v931 = vpop.xlane.xlu0 %930
        %v932 = vsel %vm928, %v927, -inf
        %933 = vmax.xlane.f32.xlu0 %v932
        %v934 = vpop.xlane.xlu0 %933
        %v935 = vsub.f32 %v926, %v931
        %v936 = vsub.f32 %v927, %v934
        %v937 = vmul.f32 %v935, 1.442695
        %v938 = vpow.pop %v937
        %v939 = vmul.f32 %v936, 1.442695
        %v940 = vpow.pop %v939
        %v941 = vsel %vm928, %v938, 0.0
        %942 = vadd.xlane.f32.xlu0 %v941
        %v943 = vpop.xlane.xlu0 %942
        %v944 = vsel %vm928, %v940, 0.0
        %945 = vadd.xlane.f32.xlu0 %v944
        %v946 = vpop.xlane.xlu0 %945
        %v947 = vrcp.pop %v943
        %v948 = vrcp.pop %v946
        %v949 = vmul.f32 %v938, %v947
        %v950 = vmul.f32 %v940, %v948
        %v952 = vsel %vm928, %v949, 0
        %v955 = vsel %vm928, %v950, 0
        %957 = vmatpush.msra.mxu0 0.0
        %958 = vmatpush.msra.mxu0 0.0
        %959 = vmatpush.msra.mxu0 0.0
        %960 = vmatpush.msra.mxu0 0.0
        %961 = vmatpush.msra.mxu0 0.0
        %962 = vmatpush.msra.mxu0 0.0
        %963 = vmatpush.msra.mxu0 0.0
        %964 = vmatpush.msra.mxu0 0.0
        %965 = vmatpush.msra.mxu0 0.0
        %966 = vmatpush.msra.mxu0 0.0
        %967 = vmatpush.msra.mxu0 0.0
        %968 = vmatpush.msra.mxu0 0.0
        %969 = vmatpush.msra.mxu0 0.0
        %970 = vmatpush.msra.mxu0 0.0
        %971 = vmatpush.msra.mxu0 %v883
        %972 = vmatpush.msra.mxu0 %v880
        %973 = vmatmul.f32.gmra.mxu0 %v952
        %v974 = vpop.f32.mrf.mxu0
        %v975 = vadd.f32 0.0, %v974
        %976 = vmatmul.f32.gmra.mxu0 %v955
        %v977 = vpop.f32.mrf.mxu0
        %v978 = vadd.f32 0.0, %v977
        %979 = vdwg.mxu0
        %980 = vrot.lane.b32.xlu0 %v834, 96
        %v981 = vpop.permute.xlu0 %980
        %982 = vrot.lane.b32.xlu0 %v837, 96
        %v983 = vpop.permute.xlu0 %982
        %984 = vrot.lane.b32.xlu0 %v857, 96
        %v985 = vpop.permute.xlu0 %984
        %986 = vrot.lane.b32.xlu0 %v860, 96
        %v987 = vpop.permute.xlu0 %986
        %v988 = vsel %vm885, %v981, 0
        %v990 = vsel %vm885, %v983, 0
        %v992 = vsel %vm885, %v985, 0
        %v994 = vsel %vm885, %v987, 0
        %996 = vmatpush.xpose.msra.mxu0 0.0
        %997 = vmatpush.xpose.msra.mxu0 0.0
        %998 = vmatpush.xpose.msra.mxu0 0.0
        %999 = vmatpush.xpose.msra.mxu0 0.0
        %1000 = vmatpush.xpose.msra.mxu0 0.0
        %1001 = vmatpush.xpose.msra.mxu0 0.0
        %1002 = vmatpush.xpose.msra.mxu0 0.0
        %1003 = vmatpush.xpose.msra.mxu0 0.0
        %1004 = vmatpush.xpose.msra.mxu0 0.0
        %1005 = vmatpush.xpose.msra.mxu0 0.0
        %1006 = vmatpush.xpose.msra.mxu0 0.0
        %1007 = vmatpush.xpose.msra.mxu0 0.0
        %1008 = vmatpush.xpose.msra.mxu0 0.0
        %1009 = vmatpush.xpose.msra.mxu0 0.0
        %1010 = vmatpush.xpose.msra.mxu0 %v994
        %1011 = vmatpush.xpose.msra.mxu0 %v992
        %1012 = vmatmul.f32.gmra.mxu0 %v988
        %v1013 = vpop.f32.mrf.mxu0
        %v1014 = vadd.f32 0.0, %v1013
        %1015 = vmatmul.f32.gmra.mxu0 %v990
        %v1016 = vpop.f32.mrf.mxu0
        %v1017 = vadd.f32 0.0, %v1016
        %1018 = vdwg.mxu0
        %v1019 = vmul.f32 %v1014, 0.17677669
        %v1020 = vmul.f32 %v1017, 0.17677669
        %v1021 = vsel %vm925, %v1019, -3.4028235e+38
        %v1022 = vsel %vm925, %v1020, -3.4028235e+38
        %v1023 = vsel %vm928, %v1021, -inf
        %1024 = vmax.xlane.f32.xlu0 %v1023
        %v1025 = vpop.xlane.xlu0 %1024
        %v1026 = vsel %vm928, %v1022, -inf
        %1027 = vmax.xlane.f32.xlu0 %v1026
        %v1028 = vpop.xlane.xlu0 %1027
        %v1029 = vsub.f32 %v1021, %v1025
        %v1030 = vsub.f32 %v1022, %v1028
        %v1031 = vmul.f32 %v1029, 1.442695
        %v1032 = vpow.pop %v1031
        %v1033 = vmul.f32 %v1030, 1.442695
        %v1034 = vpow.pop %v1033
        %v1035 = vsel %vm928, %v1032, 0.0
        %1036 = vadd.xlane.f32.xlu0 %v1035
        %v1037 = vpop.xlane.xlu0 %1036
        %v1038 = vsel %vm928, %v1034, 0.0
        %1039 = vadd.xlane.f32.xlu0 %v1038
        %v1040 = vpop.xlane.xlu0 %1039
        %v1041 = vrcp.pop %v1037
        %v1042 = vrcp.pop %v1040
        %v1043 = vmul.f32 %v1032, %v1041
        %v1044 = vmul.f32 %v1034, %v1042
        %1047 = vrot.lane.b32.xlu0 %v880, 96
        %v1048 = vpop.permute.xlu0 %1047
        %1049 = vrot.lane.b32.xlu0 %v883, 96
        %v1050 = vpop.permute.xlu0 %1049
        %v1054 = vsel %vm928, %v1043, 0
        %v1057 = vsel %vm928, %v1044, 0
        %1059 = vmatpush.msra.mxu0 0.0
        %1060 = vmatpush.msra.mxu0 0.0
        %1061 = vmatpush.msra.mxu0 0.0
        %1062 = vmatpush.msra.mxu0 0.0
        %1063 = vmatpush.msra.mxu0 0.0
        %1064 = vmatpush.msra.mxu0 0.0
        %1065 = vmatpush.msra.mxu0 0.0
        %1066 = vmatpush.msra.mxu0 0.0
        %1067 = vmatpush.msra.mxu0 0.0
        %1068 = vmatpush.msra.mxu0 0.0
        %1069 = vmatpush.msra.mxu0 0.0
        %1070 = vmatpush.msra.mxu0 0.0
        %1071 = vmatpush.msra.mxu0 0.0
        %1072 = vmatpush.msra.mxu0 0.0
        %1073 = vmatpush.msra.mxu0 %v1050
        %1074 = vmatpush.msra.mxu0 %v1048
        %1075 = vmatmul.f32.gmra.mxu0 %v1054
        %v1076 = vpop.f32.mrf.mxu0
        %v1077 = vadd.f32 0.0, %v1076
        %1078 = vmatmul.f32.gmra.mxu0 %v1057
        %v1079 = vpop.f32.mrf.mxu0
        %v1080 = vadd.f32 0.0, %v1079
        %1081 = vdwg.mxu0
        %1082 = vrot.lane.b32.xlu0 %v834, 64
        %v1083 = vpop.permute.xlu0 %1082
        %1084 = vrot.lane.b32.xlu0 %v837, 64
        %v1085 = vpop.permute.xlu0 %1084
        %1086 = vrot.lane.b32.xlu0 %v857, 64
        %v1087 = vpop.permute.xlu0 %1086
        %1088 = vrot.lane.b32.xlu0 %v860, 64
        %v1089 = vpop.permute.xlu0 %1088
        %v1090 = vsel %vm885, %v1083, 0
        %v1092 = vsel %vm885, %v1085, 0
        %v1094 = vsel %vm885, %v1087, 0
        %v1096 = vsel %vm885, %v1089, 0
        %1098 = vmatpush.xpose.msra.mxu0 0.0
        %1099 = vmatpush.xpose.msra.mxu0 0.0
        %1100 = vmatpush.xpose.msra.mxu0 0.0
        %1101 = vmatpush.xpose.msra.mxu0 0.0
        %1102 = vmatpush.xpose.msra.mxu0 0.0
        %1103 = vmatpush.xpose.msra.mxu0 0.0
        %1104 = vmatpush.xpose.msra.mxu0 0.0
        %1105 = vmatpush.xpose.msra.mxu0 0.0
        %1106 = vmatpush.xpose.msra.mxu0 0.0
        %1107 = vmatpush.xpose.msra.mxu0 0.0
        %1108 = vmatpush.xpose.msra.mxu0 0.0
        %1109 = vmatpush.xpose.msra.mxu0 0.0
        %1110 = vmatpush.xpose.msra.mxu0 0.0
        %1111 = vmatpush.xpose.msra.mxu0 0.0
        %1112 = vmatpush.xpose.msra.mxu0 %v1096
        %1113 = vmatpush.xpose.msra.mxu0 %v1094
        %1114 = vmatmul.f32.gmra.mxu0 %v1090
        %v1115 = vpop.f32.mrf.mxu0
        %v1116 = vadd.f32 0.0, %v1115
        %1117 = vmatmul.f32.gmra.mxu0 %v1092
        %v1118 = vpop.f32.mrf.mxu0
        %v1119 = vadd.f32 0.0, %v1118
        %1120 = vdwg.mxu0
        %v1121 = vmul.f32 %v1116, 0.17677669
        %v1122 = vmul.f32 %v1119, 0.17677669
        %v1123 = vsel %vm925, %v1121, -3.4028235e+38
        %v1124 = vsel %vm925, %v1122, -3.4028235e+38
        %v1125 = vsel %vm928, %v1123, -inf
        %1126 = vmax.xlane.f32.xlu0 %v1125
        %v1127 = vpop.xlane.xlu0 %1126
        %v1128 = vsel %vm928, %v1124, -inf
        %1129 = vmax.xlane.f32.xlu0 %v1128
        %v1130 = vpop.xlane.xlu0 %1129
        %v1131 = vsub.f32 %v1123, %v1127
        %v1132 = vsub.f32 %v1124, %v1130
        %v1133 = vmul.f32 %v1131, 1.442695
        %v1134 = vpow.pop %v1133
        %v1135 = vmul.f32 %v1132, 1.442695
        %v1136 = vpow.pop %v1135
        %v1137 = vsel %vm928, %v1134, 0.0
        %1138 = vadd.xlane.f32.xlu0 %v1137
        %v1139 = vpop.xlane.xlu0 %1138
        %v1140 = vsel %vm928, %v1136, 0.0
        %1141 = vadd.xlane.f32.xlu0 %v1140
        %v1142 = vpop.xlane.xlu0 %1141
        %v1143 = vrcp.pop %v1139
        %v1144 = vrcp.pop %v1142
        %v1145 = vmul.f32 %v1134, %v1143
        %v1146 = vmul.f32 %v1136, %v1144
        %1147 = vrot.lane.b32.xlu0 %v880, 64
        %v1148 = vpop.permute.xlu0 %1147
        %1149 = vrot.lane.b32.xlu0 %v883, 64
        %v1150 = vpop.permute.xlu0 %1149
        %v1154 = vsel %vm928, %v1145, 0
        %v1157 = vsel %vm928, %v1146, 0
        %1159 = vmatpush.msra.mxu0 0.0
        %1160 = vmatpush.msra.mxu0 0.0
        %1161 = vmatpush.msra.mxu0 0.0
        %1162 = vmatpush.msra.mxu0 0.0
        %1163 = vmatpush.msra.mxu0 0.0
        %1164 = vmatpush.msra.mxu0 0.0
        %1165 = vmatpush.msra.mxu0 0.0
        %1166 = vmatpush.msra.mxu0 0.0
        %1167 = vmatpush.msra.mxu0 0.0
        %1168 = vmatpush.msra.mxu0 0.0
        %1169 = vmatpush.msra.mxu0 0.0
        %1170 = vmatpush.msra.mxu0 0.0
        %1171 = vmatpush.msra.mxu0 0.0
        %1172 = vmatpush.msra.mxu0 0.0
        %1173 = vmatpush.msra.mxu0 %v1150
        %1174 = vmatpush.msra.mxu0 %v1148
        %1175 = vmatmul.f32.gmra.mxu0 %v1154
        %v1176 = vpop.f32.mrf.mxu0
        %v1177 = vadd.f32 0.0, %v1176
        %1178 = vmatmul.f32.gmra.mxu0 %v1157
        %v1179 = vpop.f32.mrf.mxu0
        %v1180 = vadd.f32 0.0, %v1179
        %1181 = vdwg.mxu0
        %1182 = vrot.lane.b32.xlu0 %v834, 32
        %v1183 = vpop.permute.xlu0 %1182
        %1184 = vrot.lane.b32.xlu0 %v837, 32
        %v1185 = vpop.permute.xlu0 %1184
        %1186 = vrot.lane.b32.xlu0 %v857, 32
        %v1187 = vpop.permute.xlu0 %1186
        %1188 = vrot.lane.b32.xlu0 %v860, 32
        %v1189 = vpop.permute.xlu0 %1188
        %v1190 = vsel %vm885, %v1183, 0
        %v1192 = vsel %vm885, %v1185, 0
        %v1194 = vsel %vm885, %v1187, 0
        %v1196 = vsel %vm885, %v1189, 0
        %1198 = vmatpush.xpose.msra.mxu0 0.0
        %1199 = vmatpush.xpose.msra.mxu0 0.0
        %1200 = vmatpush.xpose.msra.mxu0 0.0
        %1201 = vmatpush.xpose.msra.mxu0 0.0
        %1202 = vmatpush.xpose.msra.mxu0 0.0
        %1203 = vmatpush.xpose.msra.mxu0 0.0
        %1204 = vmatpush.xpose.msra.mxu0 0.0
        %1205 = vmatpush.xpose.msra.mxu0 0.0
        %1206 = vmatpush.xpose.msra.mxu0 0.0
        %1207 = vmatpush.xpose.msra.mxu0 0.0
        %1208 = vmatpush.xpose.msra.mxu0 0.0
        %1209 = vmatpush.xpose.msra.mxu0 0.0
        %1210 = vmatpush.xpose.msra.mxu0 0.0
        %1211 = vmatpush.xpose.msra.mxu0 0.0
        %1212 = vmatpush.xpose.msra.mxu0 %v1196
        %1213 = vmatpush.xpose.msra.mxu0 %v1194
        %1214 = vmatmul.f32.gmra.mxu0 %v1190
        %v1215 = vpop.f32.mrf.mxu0
        %v1216 = vadd.f32 0.0, %v1215
        %1217 = vmatmul.f32.gmra.mxu0 %v1192
        %v1218 = vpop.f32.mrf.mxu0
        %v1219 = vadd.f32 0.0, %v1218
        %1220 = vdwg.mxu0
        %v1221 = vmul.f32 %v1216, 0.17677669
        %v1222 = vmul.f32 %v1219, 0.17677669
        %v1223 = vsel %vm925, %v1221, -3.4028235e+38
        %v1224 = vsel %vm925, %v1222, -3.4028235e+38
        %v1225 = vsel %vm928, %v1223, -inf
        %1226 = vmax.xlane.f32.xlu0 %v1225
        %v1227 = vpop.xlane.xlu0 %1226
        %v1228 = vsel %vm928, %v1224, -inf
        %1229 = vmax.xlane.f32.xlu0 %v1228
        %v1230 = vpop.xlane.xlu0 %1229
        %v1231 = vsub.f32 %v1223, %v1227
        %v1232 = vsub.f32 %v1224, %v1230
        %v1233 = vmul.f32 %v1231, 1.442695
        %v1234 = vpow.pop %v1233
        %v1235 = vmul.f32 %v1232, 1.442695
        %v1236 = vpow.pop %v1235
        %v1237 = vsel %vm928, %v1234, 0.0
        %1238 = vadd.xlane.f32.xlu0 %v1237
        %v1239 = vpop.xlane.xlu0 %1238
        %v1240 = vsel %vm928, %v1236, 0.0
        %1241 = vadd.xlane.f32.xlu0 %v1240
        %v1242 = vpop.xlane.xlu0 %1241
        %v1243 = vrcp.pop %v1239
        %v1244 = vrcp.pop %v1242
        %v1245 = vmul.f32 %v1234, %v1243
        %v1246 = vmul.f32 %v1236, %v1244
        %1247 = vrot.lane.b32.xlu0 %v880, 32
        %v1248 = vpop.permute.xlu0 %1247
        %1249 = vrot.lane.b32.xlu0 %v883, 32
        %v1250 = vpop.permute.xlu0 %1249
        %v1254 = vsel %vm928, %v1245, 0
        %v1257 = vsel %vm928, %v1246, 0
        %1259 = vmatpush.msra.mxu0 0.0
        %1260 = vmatpush.msra.mxu0 0.0
        %1261 = vmatpush.msra.mxu0 0.0
        %1262 = vmatpush.msra.mxu0 0.0
        %1263 = vmatpush.msra.mxu0 0.0
        %1264 = vmatpush.msra.mxu0 0.0
        %1265 = vmatpush.msra.mxu0 0.0
        %1266 = vmatpush.msra.mxu0 0.0
        %1267 = vmatpush.msra.mxu0 0.0
        %1268 = vmatpush.msra.mxu0 0.0
        %1269 = vmatpush.msra.mxu0 0.0
        %1270 = vmatpush.msra.mxu0 0.0
        %1271 = vmatpush.msra.mxu0 0.0
        %1272 = vmatpush.msra.mxu0 0.0
        %1273 = vmatpush.msra.mxu0 %v1250
        %1274 = vmatpush.msra.mxu0 %v1248
        %1275 = vmatmul.f32.gmra.mxu0 %v1254
        %v1276 = vpop.f32.mrf.mxu0
        %v1277 = vadd.f32 0.0, %v1276
        %1278 = vmatmul.f32.gmra.mxu0 %v1257
        %v1279 = vpop.f32.mrf.mxu0
        %v1280 = vadd.f32 0.0, %v1279
        %1281 = vdwg.mxu0
        %1284 = vrot.lane.b32.xlu0 %v1077, 32
        %v1285 = vpop.permute.xlu0 %1284
        %1286 = vrot.lane.b32.xlu0 %v1080, 32
        %v1287 = vpop.permute.xlu0 %1286
        %1292 = vrot.lane.b32.xlu0 %v1177, 64
        %v1293 = vpop.permute.xlu0 %1292
        %1294 = vrot.lane.b32.xlu0 %v1180, 64
        %v1295 = vpop.permute.xlu0 %1294
        %1300 = vrot.lane.b32.xlu0 %v1277, 96
        %v1301 = vpop.permute.xlu0 %1300
        %1302 = vrot.lane.b32.xlu0 %v1280, 96
        %v1303 = vpop.permute.xlu0 %1302
        %v1306 = vsel %vm885, %v975, %v1285
        %v1307 = vsel %vm885, %v978, %v1287
        %vm1308 = vcmask 523264
        %v1309 = vsel %vm1308, %v1306, %v1293
        %v1310 = vsel %vm1308, %v1307, %v1295
        %vm1311 = vcmask 785408
        %v1312 = vsel %vm1311, %v1309, %v1301
        %v1313 = vsel %vm1311, %v1310, %v1303
        %v1314 = vld [vmem:[%s6] sm:$0xff]
        %v1315 = vld [vmem:[%s6 + $0x8] sm:$0xff]
        %v1316 = vld [vmem:[%s6 + $0x10] sm:$0xff]
        %v1317 = vld [vmem:[%s6 + $0x18] sm:$0xff]
        %v1318 = vld [vmem:[%s6 + $0x20] sm:$0xff]
        %v1319 = vld [vmem:[%s6 + $0x28] sm:$0xff]
        %v1320 = vld [vmem:[%s6 + $0x30] sm:$0xff]
        %v1321 = vld [vmem:[%s6 + $0x38] sm:$0xff]
        %v1322 = vld [vmem:[%s6 + $0x40] sm:$0xff]
        %v1323 = vld [vmem:[%s6 + $0x48] sm:$0xff]
        %v1324 = vld [vmem:[%s6 + $0x50] sm:$0xff]
        %v1325 = vld [vmem:[%s6 + $0x58] sm:$0xff]
        %v1326 = vld [vmem:[%s6 + $0x60] sm:$0xff]
        %v1327 = vld [vmem:[%s6 + $0x68] sm:$0xff]
        %v1328 = vld [vmem:[%s6 + $0x70] sm:$0xff]
        %v1329 = vld [vmem:[%s6 + $0x78] sm:$0xff]
        %v1330 = vld [vmem:[%s7] sm:$0x1]
        %v1332 = vperm.slane %v1330, 0
        %1334 = vmatpush.msra.mxu0 %v1329
        %1335 = vmatpush.msra.mxu0 %v1328
        %1336 = vmatpush.msra.mxu0 %v1327
        %1337 = vmatpush.msra.mxu0 %v1326
        %1338 = vmatpush.msra.mxu0 %v1325
        %1339 = vmatpush.msra.mxu0 %v1324
        %1340 = vmatpush.msra.mxu0 %v1323
        %1341 = vmatpush.msra.mxu0 %v1322
        %1342 = vmatpush.msra.mxu0 %v1321
        %1343 = vmatpush.msra.mxu0 %v1320
        %1344 = vmatpush.msra.mxu0 %v1319
        %1345 = vmatpush.msra.mxu0 %v1318
        %1346 = vmatpush.msra.mxu0 %v1317
        %1347 = vmatpush.msra.mxu0 %v1316
        %1348 = vmatpush.msra.mxu0 %v1315
        %1349 = vmatpush.msra.mxu0 %v1314
        %1350 = vmatmul.f32.gmra.mxu0 %v1312
        %v1351 = vpop.f32.mrf.mxu0
        %v1352 = vadd.f32 %v1332, %v1351
        %1353 = vmatmul.f32.gmra.mxu0 %v1313
        %v1354 = vpop.f32.mrf.mxu0
        %v1355 = vadd.f32 %v1332, %v1354
        %1356 = vdwg.mxu0
        %v1357 = vadd.f32 %v1352, %v756
        %v1358 = vadd.f32 %v1355, %v757
        %v1359 = vld [vmem:[%s8] sm:$0x1]
        %v1360 = vld [vmem:[%s9] sm:$0x1]
        %1361 = vadd.xlane.f32.xlu0 %v1357
        %v1362 = vpop.xlane.xlu0 %1361
        %1363 = vadd.xlane.f32.xlu0 %v1358
        %v1364 = vpop.xlane.xlu0 %1363
        %v1365 = vmul.f32 %v1362, %v711
        %v1366 = vmul.f32 %v1364, %v711
        %v1367 = vsub.f32 %v1357, %v1365
        %v1368 = vsub.f32 %v1358, %v1366
        %v1369 = vmul.f32 %v1367, %v1367
        %v1370 = vmul.f32 %v1368, %v1368
        %1371 = vadd.xlane.f32.xlu0 %v1369
        %v1372 = vpop.xlane.xlu0 %1371
        %1373 = vadd.xlane.f32.xlu0 %v1370
        %v1374 = vpop.xlane.xlu0 %1373
        %v1375 = vmul.f32 %v1372, %v711
        %v1376 = vmul.f32 %v1374, %v711
        %v1377 = vadd.f32 %v1375, 1e-12
        %v1378 = vadd.f32 %v1376, 1e-12
        %v1379 = vrsqrt.pop %v1377
        %v1380 = vmul.f32 %v1379, %v1377
        %v1381 = vmul.f32 %v1380, %v1379
        %v1382 = vmul.f32 0.5, %v1381
        %v1383 = vsub.f32 1.5, %v1382
        %v1384 = vmul.f32 %v1379, %v1383
        %vm1385 = vweird.f32 %v1377
        %vm1386 = vweird.f32 %v1379
        %vm1387 = vmor %vm1385, %vm1386
        %v1388 = vsel %vm1387, %v1379, %v1384
        %v1389 = vrsqrt.pop %v1378
        %v1390 = vmul.f32 %v1389, %v1378
        %v1391 = vmul.f32 %v1390, %v1389
        %v1392 = vmul.f32 0.5, %v1391
        %v1393 = vsub.f32 1.5, %v1392
        %v1394 = vmul.f32 %v1389, %v1393
        %vm1395 = vweird.f32 %v1378
        %vm1396 = vweird.f32 %v1389
        %vm1397 = vmor %vm1395, %vm1396
        %v1398 = vsel %vm1397, %v1389, %v1394
        %v1399 = vmul.f32 %v1367, %v1388
        %v1400 = vmul.f32 %v1368, %v1398
        %v1402 = vperm.slane %v1359, 0
        %v1404 = vmul.f32 %v1399, %v1402
        %v1405 = vmul.f32 %v1400, %v1402
        %v1407 = vperm.slane %v1360, 0
        %v1409 = vadd.f32 %v1404, %v1407
        %v1410 = vadd.f32 %v1405, %v1407
        %v1411 = vld [vmem:[#allocation4] sm:$0xff]
        %v1412 = vld [vmem:[#allocation4 + $0x8] sm:$0xff]
        %v1413 = vld [vmem:[#allocation4 + $0x10] sm:$0xff]
        %v1414 = vld [vmem:[#allocation4 + $0x18] sm:$0xff]
        %v1415 = vld [vmem:[#allocation4 + $0x20] sm:$0xff]
        %v1416 = vld [vmem:[#allocation4 + $0x28] sm:$0xff]
        %v1417 = vld [vmem:[#allocation4 + $0x30] sm:$0xff]
        %v1418 = vld [vmem:[#allocation4 + $0x38] sm:$0xff]
        %v1419 = vld [vmem:[#allocation4 + $0x40] sm:$0xff]
        %v1420 = vld [vmem:[#allocation4 + $0x48] sm:$0xff]
        %v1421 = vld [vmem:[#allocation4 + $0x50] sm:$0xff]
        %v1422 = vld [vmem:[#allocation4 + $0x58] sm:$0xff]
        %v1423 = vld [vmem:[#allocation4 + $0x60] sm:$0xff]
        %v1424 = vld [vmem:[#allocation4 + $0x68] sm:$0xff]
        %v1425 = vld [vmem:[#allocation4 + $0x70] sm:$0xff]
        %v1426 = vld [vmem:[#allocation4 + $0x78] sm:$0xff]
        %v1427 = vld [vmem:[#allocation4 + $0x80] sm:$0xff]
        %v1428 = vld [vmem:[#allocation4 + $0x88] sm:$0xff]
        %v1429 = vld [vmem:[#allocation4 + $0x90] sm:$0xff]
        %v1430 = vld [vmem:[#allocation4 + $0x98] sm:$0xff]
        %v1431 = vld [vmem:[#allocation4 + $0xa0] sm:$0xff]
        %v1432 = vld [vmem:[#allocation4 + $0xa8] sm:$0xff]
        %v1433 = vld [vmem:[#allocation4 + $0xb0] sm:$0xff]
        %v1434 = vld [vmem:[#allocation4 + $0xb8] sm:$0xff]
        %v1435 = vld [vmem:[#allocation4 + $0xc0] sm:$0xff]
        %v1436 = vld [vmem:[#allocation4 + $0xc8] sm:$0xff]
        %v1437 = vld [vmem:[#allocation4 + $0xd0] sm:$0xff]
        %v1438 = vld [vmem:[#allocation4 + $0xd8] sm:$0xff]
        %v1439 = vld [vmem:[#allocation4 + $0xe0] sm:$0xff]
        %v1440 = vld [vmem:[#allocation4 + $0xe8] sm:$0xff]
        %v1441 = vld [vmem:[#allocation4 + $0xf0] sm:$0xff]
        %v1442 = vld [vmem:[#allocation4 + $0xf8] sm:$0xff]
        %v1443 = vld [vmem:[#allocation4 + $0x100] sm:$0xff]
        %v1444 = vld [vmem:[#allocation4 + $0x108] sm:$0xff]
        %v1445 = vld [vmem:[#allocation4 + $0x110] sm:$0xff]
        %v1446 = vld [vmem:[#allocation4 + $0x118] sm:$0xff]
        %v1447 = vld [vmem:[#allocation4 + $0x120] sm:$0xff]
        %v1448 = vld [vmem:[#allocation4 + $0x128] sm:$0xff]
        %v1449 = vld [vmem:[#allocation4 + $0x130] sm:$0xff]
        %v1450 = vld [vmem:[#allocation4 + $0x138] sm:$0xff]
        %v1451 = vld [vmem:[#allocation4 + $0x140] sm:$0xff]
        %v1452 = vld [vmem:[#allocation4 + $0x148] sm:$0xff]
        %v1453 = vld [vmem:[#allocation4 + $0x150] sm:$0xff]
        %v1454 = vld [vmem:[#allocation4 + $0x158] sm:$0xff]
        %v1455 = vld [vmem:[#allocation4 + $0x160] sm:$0xff]
        %v1456 = vld [vmem:[#allocation4 + $0x168] sm:$0xff]
        %v1457 = vld [vmem:[#allocation4 + $0x170] sm:$0xff]
        %v1458 = vld [vmem:[#allocation4 + $0x178] sm:$0xff]
        %v1459 = vld [vmem:[#allocation4 + $0x180] sm:$0xff]
        %v1460 = vld [vmem:[#allocation4 + $0x188] sm:$0xff]
        %v1461 = vld [vmem:[#allocation4 + $0x190] sm:$0xff]
        %v1462 = vld [vmem:[#allocation4 + $0x198] sm:$0xff]
        %v1463 = vld [vmem:[#allocation4 + $0x1a0] sm:$0xff]
        %v1464 = vld [vmem:[#allocation4 + $0x1a8] sm:$0xff]
        %v1465 = vld [vmem:[#allocation4 + $0x1b0] sm:$0xff]
        %v1466 = vld [vmem:[#allocation4 + $0x1b8] sm:$0xff]
        %v1467 = vld [vmem:[#allocation4 + $0x1c0] sm:$0xff]
        %v1468 = vld [vmem:[#allocation4 + $0x1c8] sm:$0xff]
        %v1469 = vld [vmem:[#allocation4 + $0x1d0] sm:$0xff]
        %v1470 = vld [vmem:[#allocation4 + $0x1d8] sm:$0xff]
        %v1471 = vld [vmem:[#allocation4 + $0x1e0] sm:$0xff]
        %v1472 = vld [vmem:[#allocation4 + $0x1e8] sm:$0xff]
        %v1473 = vld [vmem:[#allocation4 + $0x1f0] sm:$0xff]
        %v1474 = vld [vmem:[#allocation4 + $0x1f8] sm:$0xff]
        %v1475 = vld [vmem:[%s11] sm:$0xf]
        %v1477 = vperm.slane %v1475, 0
        %v1478 = vperm.slane %v1475, 1
        %v1479 = vperm.slane %v1475, 2
        %v1480 = vperm.slane %v1475, 3
        %1485 = vmatpush.msra.mxu0 %v1471
        %1486 = vmatpush.msra.mxu0 %v1467
        %1487 = vmatpush.msra.mxu0 %v1463
        %1488 = vmatpush.msra.mxu0 %v1459
        %1489 = vmatpush.msra.mxu0 %v1455
        %1490 = vmatpush.msra.mxu0 %v1451
        %1491 = vmatpush.msra.mxu0 %v1447
        %1492 = vmatpush.msra.mxu0 %v1443
        %1493 = vmatpush.msra.mxu0 %v1439
        %1494 = vmatpush.msra.mxu0 %v1435
        %1495 = vmatpush.msra.mxu0 %v1431
        %1496 = vmatpush.msra.mxu0 %v1427
        %1497 = vmatpush.msra.mxu0 %v1423
        %1498 = vmatpush.msra.mxu0 %v1419
        %1499 = vmatpush.msra.mxu0 %v1415
        %1500 = vmatpush.msra.mxu0 %v1411
        %1501 = vmatmul.f32.gmra.mxu0 %v1409
        %v1502 = vpop.f32.mrf.mxu0
        %v1503 = vadd.f32 %v1477, %v1502
        %1504 = vmatmul.f32.gmra.mxu0 %v1410
        %v1505 = vpop.f32.mrf.mxu0
        %v1506 = vadd.f32 %v1477, %v1505
        %1507 = vdwg.mxu0
        %1508 = vmatpush.msra.mxu0 %v1472
        %1509 = vmatpush.msra.mxu0 %v1468
        %1510 = vmatpush.msra.mxu0 %v1464
        %1511 = vmatpush.msra.mxu0 %v1460
        %1512 = vmatpush.msra.mxu0 %v1456
        %1513 = vmatpush.msra.mxu0 %v1452
        %1514 = vmatpush.msra.mxu0 %v1448
        %1515 = vmatpush.msra.mxu0 %v1444
        %1516 = vmatpush.msra.mxu0 %v1440
        %1517 = vmatpush.msra.mxu0 %v1436
        %1518 = vmatpush.msra.mxu0 %v1432
        %1519 = vmatpush.msra.mxu0 %v1428
        %1520 = vmatpush.msra.mxu0 %v1424
        %1521 = vmatpush.msra.mxu0 %v1420
        %1522 = vmatpush.msra.mxu0 %v1416
        %1523 = vmatpush.msra.mxu0 %v1412
        %1524 = vmatmul.f32.gmra.mxu0 %v1409
        %v1525 = vpop.f32.mrf.mxu0
        %v1526 = vadd.f32 %v1478, %v1525
        %1527 = vmatmul.f32.gmra.mxu0 %v1410
        %v1528 = vpop.f32.mrf.mxu0
        %v1529 = vadd.f32 %v1478, %v1528
        %1530 = vdwg.mxu0
        %1531 = vmatpush.msra.mxu0 %v1473
        %1532 = vmatpush.msra.mxu0 %v1469
        %1533 = vmatpush.msra.mxu0 %v1465
        %1534 = vmatpush.msra.mxu0 %v1461
        %1535 = vmatpush.msra.mxu0 %v1457
        %1536 = vmatpush.msra.mxu0 %v1453
        %1537 = vmatpush.msra.mxu0 %v1449
        %1538 = vmatpush.msra.mxu0 %v1445
        %1539 = vmatpush.msra.mxu0 %v1441
        %1540 = vmatpush.msra.mxu0 %v1437
        %1541 = vmatpush.msra.mxu0 %v1433
        %1542 = vmatpush.msra.mxu0 %v1429
        %1543 = vmatpush.msra.mxu0 %v1425
        %1544 = vmatpush.msra.mxu0 %v1421
        %1545 = vmatpush.msra.mxu0 %v1417
        %1546 = vmatpush.msra.mxu0 %v1413
        %1547 = vmatmul.f32.gmra.mxu0 %v1409
        %v1548 = vpop.f32.mrf.mxu0
        %v1549 = vadd.f32 %v1479, %v1548
        %1550 = vmatmul.f32.gmra.mxu0 %v1410
        %v1551 = vpop.f32.mrf.mxu0
        %v1552 = vadd.f32 %v1479, %v1551
        %1553 = vdwg.mxu0
        %1554 = vmatpush.msra.mxu0 %v1474
        %1555 = vmatpush.msra.mxu0 %v1470
        %1556 = vmatpush.msra.mxu0 %v1466
        %1557 = vmatpush.msra.mxu0 %v1462
        %1558 = vmatpush.msra.mxu0 %v1458
        %1559 = vmatpush.msra.mxu0 %v1454
        %1560 = vmatpush.msra.mxu0 %v1450
        %1561 = vmatpush.msra.mxu0 %v1446
        %1562 = vmatpush.msra.mxu0 %v1442
        %1563 = vmatpush.msra.mxu0 %v1438
        %1564 = vmatpush.msra.mxu0 %v1434
        %1565 = vmatpush.msra.mxu0 %v1430
        %1566 = vmatpush.msra.mxu0 %v1426
        %1567 = vmatpush.msra.mxu0 %v1422
        %1568 = vmatpush.msra.mxu0 %v1418
        %1569 = vmatpush.msra.mxu0 %v1414
        %1570 = vmatmul.f32.gmra.mxu0 %v1409
        %v1571 = vpop.f32.mrf.mxu0
        %v1572 = vadd.f32 %v1480, %v1571
        %1573 = vmatmul.f32.gmra.mxu0 %v1410
        %v1574 = vpop.f32.mrf.mxu0
        %v1575 = vadd.f32 %v1480, %v1574
        %1576 = vdwg.mxu0
        %v1577 = vmul.f32 %v1503, 0.5
        %v1578 = vmul.f32 %v1526, 0.5
        %v1579 = vmul.f32 %v1549, 0.5
        %v1580 = vmul.f32 %v1572, 0.5
        %v1581 = vmul.f32 %v1506, 0.5
        %v1582 = vmul.f32 %v1529, 0.5
        %v1583 = vmul.f32 %v1552, 0.5
        %v1584 = vmul.f32 %v1575, 0.5
        %v1585 = vmul.f32 %v1503, 0.70710677
        %v1586 = vmul.f32 %v1526, 0.70710677
        %v1587 = vmul.f32 %v1549, 0.70710677
        %v1588 = vmul.f32 %v1572, 0.70710677
        %v1589 = vmul.f32 %v1506, 0.70710677
        %v1590 = vmul.f32 %v1529, 0.70710677
        %v1591 = vmul.f32 %v1552, 0.70710677
        %v1592 = vmul.f32 %v1575, 0.70710677
        %v1593 = vmul.f32 %v1585, %v1585
        %v1594 = vmin.f32 16.0, %v1593
        %v1595 = vmul.f32 %v1594, 2.1237322e-06
        %v1596 = vadd.f32 %v1595, 0.00028619796
        %v1597 = vmul.f32 %v1594, %v1596
        %v1598 = vadd.f32 %v1597, 0.0036580483
        %v1599 = vmul.f32 %v1594, %v1598
        %v1600 = vadd.f32 %v1599, 0.05243302
        %v1601 = vmul.f32 %v1594, %v1600
        %v1602 = vadd.f32 %v1601, 0.18741608
        %v1603 = vmul.f32 %v1594, %v1602
        %v1604 = vadd.f32 %v1603, 1.1283791
        %v1605 = vmul.f32 %v1585, %v1604
        %v1606 = vmul.f32 %v1594, 3.8918573e-05
        %v1607 = vadd.f32 %v1606, 0.001143296
        %v1608 = vmul.f32 %v1594, %v1607
        %v1609 = vadd.f32 %v1608, 0.014752088
        %v1610 = vmul.f32 %v1594, %v1609
        %v1611 = vadd.f32 %v1610, 0.112945676
        %v1612 = vmul.f32 %v1594, %v1611
        %v1613 = vadd.f32 %v1612, 0.4994258
        %v1614 = vmul.f32 %v1594, %v1613
        %v1615 = vadd.f32 %v1614, 1.0
        %v1616 = vrcp.pop %v1615
        %v1617 = vmul.f32 %v1615, %v1616
        %v1618 = vsub.f32 1.0, %v1617
        %v1619 = vmul.f32 %v1616, %v1618
        %v1620 = vadd.f32 %v1616, %v1619
        %vm1621 = vweird.f32 %v1615
        %vm1622 = vweird.f32 %v1616
        %vm1623 = vmor %vm1621, %vm1622
        %v1624 = vsel %vm1623, %v1616, %v1620
        %v1625 = vand.u32 2147483647, %v1615
        %vm1626 = vcmp.eq.f32.partialorder %v1625, 8.507059e+37
        %v1627 = vand.u32 %v1615, 2147483648
        %v1628 = vor.u32 1.1754944e-38, %v1627
        %v1629 = vsel %vm1626, %v1628, %v1624
        %v1630 = vmul.f32 %v1605, %v1629
        %v1631 = vmin.f32 %v1630, 1.0
        %v1632 = vmax.f32 %v1631, -1.0
        %v1633 = vmul.f32 %v1586, %v1586
        %v1634 = vmin.f32 16.0, %v1633
        %v1635 = vmul.f32 %v1634, 2.1237322e-06
        %v1636 = vadd.f32 %v1635, 0.00028619796
        %v1637 = vmul.f32 %v1634, %v1636
        %v1638 = vadd.f32 %v1637, 0.0036580483
        %v1639 = vmul.f32 %v1634, %v1638
        %v1640 = vadd.f32 %v1639, 0.05243302
        %v1641 = vmul.f32 %v1634, %v1640
        %v1642 = vadd.f32 %v1641, 0.18741608
        %v1643 = vmul.f32 %v1634, %v1642
        %v1644 = vadd.f32 %v1643, 1.1283791
        %v1645 = vmul.f32 %v1586, %v1644
        %v1646 = vmul.f32 %v1634, 3.8918573e-05
        %v1647 = vadd.f32 %v1646, 0.001143296
        %v1648 = vmul.f32 %v1634, %v1647
        %v1649 = vadd.f32 %v1648, 0.014752088
        %v1650 = vmul.f32 %v1634, %v1649
        %v1651 = vadd.f32 %v1650, 0.112945676
        %v1652 = vmul.f32 %v1634, %v1651
        %v1653 = vadd.f32 %v1652, 0.4994258
        %v1654 = vmul.f32 %v1634, %v1653
        %v1655 = vadd.f32 %v1654, 1.0
        %v1656 = vrcp.pop %v1655
        %v1657 = vmul.f32 %v1655, %v1656
        %v1658 = vsub.f32 1.0, %v1657
        %v1659 = vmul.f32 %v1656, %v1658
        %v1660 = vadd.f32 %v1656, %v1659
        %vm1661 = vweird.f32 %v1655
        %vm1662 = vweird.f32 %v1656
        %vm1663 = vmor %vm1661, %vm1662
        %v1664 = vsel %vm1663, %v1656, %v1660
        %v1665 = vand.u32 2147483647, %v1655
        %vm1666 = vcmp.eq.f32.partialorder %v1665, 8.507059e+37
        %v1667 = vand.u32 %v1655, 2147483648
        %v1668 = vor.u32 1.1754944e-38, %v1667
        %v1669 = vsel %vm1666, %v1668, %v1664
        %v1670 = vmul.f32 %v1645, %v1669
        %v1671 = vmin.f32 %v1670, 1.0
        %v1672 = vmax.f32 %v1671, -1.0
        %v1673 = vmul.f32 %v1587, %v1587
        %v1674 = vmin.f32 16.0, %v1673
        %v1675 = vmul.f32 %v1674, 2.1237322e-06
        %v1676 = vadd.f32 %v1675, 0.00028619796
        %v1677 = vmul.f32 %v1674, %v1676
        %v1678 = vadd.f32 %v1677, 0.0036580483
        %v1679 = vmul.f32 %v1674, %v1678
        %v1680 = vadd.f32 %v1679, 0.05243302
        %v1681 = vmul.f32 %v1674, %v1680
        %v1682 = vadd.f32 %v1681, 0.18741608
        %v1683 = vmul.f32 %v1674, %v1682
        %v1684 = vadd.f32 %v1683, 1.1283791
        %v1685 = vmul.f32 %v1587, %v1684
        %v1686 = vmul.f32 %v1674, 3.8918573e-05
        %v1687 = vadd.f32 %v1686, 0.001143296
        %v1688 = vmul.f32 %v1674, %v1687
        %v1689 = vadd.f32 %v1688, 0.014752088
        %v1690 = vmul.f32 %v1674, %v1689
        %v1691 = vadd.f32 %v1690, 0.112945676
        %v1692 = vmul.f32 %v1674, %v1691
        %v1693 = vadd.f32 %v1692, 0.4994258
        %v1694 = vmul.f32 %v1674, %v1693
        %v1695 = vadd.f32 %v1694, 1.0
        %v1696 = vrcp.pop %v1695
        %v1697 = vmul.f32 %v1695, %v1696
        %v1698 = vsub.f32 1.0, %v1697
        %v1699 = vmul.f32 %v1696, %v1698
        %v1700 = vadd.f32 %v1696, %v1699
        %vm1701 = vweird.f32 %v1695
        %vm1702 = vweird.f32 %v1696
        %vm1703 = vmor %vm1701, %vm1702
        %v1704 = vsel %vm1703, %v1696, %v1700
        %v1705 = vand.u32 2147483647, %v1695
        %vm1706 = vcmp.eq.f32.partialorder %v1705, 8.507059e+37
        %v1707 = vand.u32 %v1695, 2147483648
        %v1708 = vor.u32 1.1754944e-38, %v1707
        %v1709 = vsel %vm1706, %v1708, %v1704
        %v1710 = vmul.f32 %v1685, %v1709
        %v1711 = vmin.f32 %v1710, 1.0
        %v1712 = vmax.f32 %v1711, -1.0
        %v1713 = vmul.f32 %v1588, %v1588
        %v1714 = vmin.f32 16.0, %v1713
        %v1715 = vmul.f32 %v1714, 2.1237322e-06
        %v1716 = vadd.f32 %v1715, 0.00028619796
        %v1717 = vmul.f32 %v1714, %v1716
        %v1718 = vadd.f32 %v1717, 0.0036580483
        %v1719 = vmul.f32 %v1714, %v1718
        %v1720 = vadd.f32 %v1719, 0.05243302
        %v1721 = vmul.f32 %v1714, %v1720
        %v1722 = vadd.f32 %v1721, 0.18741608
        %v1723 = vmul.f32 %v1714, %v1722
        %v1724 = vadd.f32 %v1723, 1.1283791
        %v1725 = vmul.f32 %v1588, %v1724
        %v1726 = vmul.f32 %v1714, 3.8918573e-05
        %v1727 = vadd.f32 %v1726, 0.001143296
        %v1728 = vmul.f32 %v1714, %v1727
        %v1729 = vadd.f32 %v1728, 0.014752088
        %v1730 = vmul.f32 %v1714, %v1729
        %v1731 = vadd.f32 %v1730, 0.112945676
        %v1732 = vmul.f32 %v1714, %v1731
        %v1733 = vadd.f32 %v1732, 0.4994258
        %v1734 = vmul.f32 %v1714, %v1733
        %v1735 = vadd.f32 %v1734, 1.0
        %v1736 = vrcp.pop %v1735
        %v1737 = vmul.f32 %v1735, %v1736
        %v1738 = vsub.f32 1.0, %v1737
        %v1739 = vmul.f32 %v1736, %v1738
        %v1740 = vadd.f32 %v1736, %v1739
        %vm1741 = vweird.f32 %v1735
        %vm1742 = vweird.f32 %v1736
        %vm1743 = vmor %vm1741, %vm1742
        %v1744 = vsel %vm1743, %v1736, %v1740
        %v1745 = vand.u32 2147483647, %v1735
        %vm1746 = vcmp.eq.f32.partialorder %v1745, 8.507059e+37
        %v1747 = vand.u32 %v1735, 2147483648
        %v1748 = vor.u32 1.1754944e-38, %v1747
        %v1749 = vsel %vm1746, %v1748, %v1744
        %v1750 = vmul.f32 %v1725, %v1749
        %v1751 = vmin.f32 %v1750, 1.0
        %v1752 = vmax.f32 %v1751, -1.0
        %v1753 = vmul.f32 %v1589, %v1589
        %v1754 = vmin.f32 16.0, %v1753
        %v1755 = vmul.f32 %v1754, 2.1237322e-06
        %v1756 = vadd.f32 %v1755, 0.00028619796
        %v1757 = vmul.f32 %v1754, %v1756
        %v1758 = vadd.f32 %v1757, 0.0036580483
        %v1759 = vmul.f32 %v1754, %v1758
        %v1760 = vadd.f32 %v1759, 0.05243302
        %v1761 = vmul.f32 %v1754, %v1760
        %v1762 = vadd.f32 %v1761, 0.18741608
        %v1763 = vmul.f32 %v1754, %v1762
        %v1764 = vadd.f32 %v1763, 1.1283791
        %v1765 = vmul.f32 %v1589, %v1764
        %v1766 = vmul.f32 %v1754, 3.8918573e-05
        %v1767 = vadd.f32 %v1766, 0.001143296
        %v1768 = vmul.f32 %v1754, %v1767
        %v1769 = vadd.f32 %v1768, 0.014752088
        %v1770 = vmul.f32 %v1754, %v1769
        %v1771 = vadd.f32 %v1770, 0.112945676
        %v1772 = vmul.f32 %v1754, %v1771
        %v1773 = vadd.f32 %v1772, 0.4994258
        %v1774 = vmul.f32 %v1754, %v1773
        %v1775 = vadd.f32 %v1774, 1.0
        %v1776 = vrcp.pop %v1775
        %v1777 = vmul.f32 %v1775, %v1776
        %v1778 = vsub.f32 1.0, %v1777
        %v1779 = vmul.f32 %v1776, %v1778
        %v1780 = vadd.f32 %v1776, %v1779
        %vm1781 = vweird.f32 %v1775
        %vm1782 = vweird.f32 %v1776
        %vm1783 = vmor %vm1781, %vm1782
        %v1784 = vsel %vm1783, %v1776, %v1780
        %v1785 = vand.u32 2147483647, %v1775
        %vm1786 = vcmp.eq.f32.partialorder %v1785, 8.507059e+37
        %v1787 = vand.u32 %v1775, 2147483648
        %v1788 = vor.u32 1.1754944e-38, %v1787
        %v1789 = vsel %vm1786, %v1788, %v1784
        %v1790 = vmul.f32 %v1765, %v1789
        %v1791 = vmin.f32 %v1790, 1.0
        %v1792 = vmax.f32 %v1791, -1.0
        %v1793 = vmul.f32 %v1590, %v1590
        %v1794 = vmin.f32 16.0, %v1793
        %v1795 = vmul.f32 %v1794, 2.1237322e-06
        %v1796 = vadd.f32 %v1795, 0.00028619796
        %v1797 = vmul.f32 %v1794, %v1796
        %v1798 = vadd.f32 %v1797, 0.0036580483
        %v1799 = vmul.f32 %v1794, %v1798
        %v1800 = vadd.f32 %v1799, 0.05243302
        %v1801 = vmul.f32 %v1794, %v1800
        %v1802 = vadd.f32 %v1801, 0.18741608
        %v1803 = vmul.f32 %v1794, %v1802
        %v1804 = vadd.f32 %v1803, 1.1283791
        %v1805 = vmul.f32 %v1590, %v1804
        %v1806 = vmul.f32 %v1794, 3.8918573e-05
        %v1807 = vadd.f32 %v1806, 0.001143296
        %v1808 = vmul.f32 %v1794, %v1807
        %v1809 = vadd.f32 %v1808, 0.014752088
        %v1810 = vmul.f32 %v1794, %v1809
        %v1811 = vadd.f32 %v1810, 0.112945676
        %v1812 = vmul.f32 %v1794, %v1811
        %v1813 = vadd.f32 %v1812, 0.4994258
        %v1814 = vmul.f32 %v1794, %v1813
        %v1815 = vadd.f32 %v1814, 1.0
        %v1816 = vrcp.pop %v1815
        %v1817 = vmul.f32 %v1815, %v1816
        %v1818 = vsub.f32 1.0, %v1817
        %v1819 = vmul.f32 %v1816, %v1818
        %v1820 = vadd.f32 %v1816, %v1819
        %vm1821 = vweird.f32 %v1815
        %vm1822 = vweird.f32 %v1816
        %vm1823 = vmor %vm1821, %vm1822
        %v1824 = vsel %vm1823, %v1816, %v1820
        %v1825 = vand.u32 2147483647, %v1815
        %vm1826 = vcmp.eq.f32.partialorder %v1825, 8.507059e+37
        %v1827 = vand.u32 %v1815, 2147483648
        %v1828 = vor.u32 1.1754944e-38, %v1827
        %v1829 = vsel %vm1826, %v1828, %v1824
        %v1830 = vmul.f32 %v1805, %v1829
        %v1831 = vmin.f32 %v1830, 1.0
        %v1832 = vmax.f32 %v1831, -1.0
        %v1833 = vmul.f32 %v1591, %v1591
        %v1834 = vmin.f32 16.0, %v1833
        %v1835 = vmul.f32 %v1834, 2.1237322e-06
        %v1836 = vadd.f32 %v1835, 0.00028619796
        %v1837 = vmul.f32 %v1834, %v1836
        %v1838 = vadd.f32 %v1837, 0.0036580483
        %v1839 = vmul.f32 %v1834, %v1838
        %v1840 = vadd.f32 %v1839, 0.05243302
        %v1841 = vmul.f32 %v1834, %v1840
        %v1842 = vadd.f32 %v1841, 0.18741608
        %v1843 = vmul.f32 %v1834, %v1842
        %v1844 = vadd.f32 %v1843, 1.1283791
        %v1845 = vmul.f32 %v1591, %v1844
        %v1846 = vmul.f32 %v1834, 3.8918573e-05
        %v1847 = vadd.f32 %v1846, 0.001143296
        %v1848 = vmul.f32 %v1834, %v1847
        %v1849 = vadd.f32 %v1848, 0.014752088
        %v1850 = vmul.f32 %v1834, %v1849
        %v1851 = vadd.f32 %v1850, 0.112945676
        %v1852 = vmul.f32 %v1834, %v1851
        %v1853 = vadd.f32 %v1852, 0.4994258
        %v1854 = vmul.f32 %v1834, %v1853
        %v1855 = vadd.f32 %v1854, 1.0
        %v1856 = vrcp.pop %v1855
        %v1857 = vmul.f32 %v1855, %v1856
        %v1858 = vsub.f32 1.0, %v1857
        %v1859 = vmul.f32 %v1856, %v1858
        %v1860 = vadd.f32 %v1856, %v1859
        %vm1861 = vweird.f32 %v1855
        %vm1862 = vweird.f32 %v1856
        %vm1863 = vmor %vm1861, %vm1862
        %v1864 = vsel %vm1863, %v1856, %v1860
        %v1865 = vand.u32 2147483647, %v1855
        %vm1866 = vcmp.eq.f32.partialorder %v1865, 8.507059e+37
        %v1867 = vand.u32 %v1855, 2147483648
        %v1868 = vor.u32 1.1754944e-38, %v1867
        %v1869 = vsel %vm1866, %v1868, %v1864
        %v1870 = vmul.f32 %v1845, %v1869
        %v1871 = vmin.f32 %v1870, 1.0
        %v1872 = vmax.f32 %v1871, -1.0
        %v1873 = vmul.f32 %v1592, %v1592
        %v1874 = vmin.f32 16.0, %v1873
        %v1875 = vmul.f32 %v1874, 2.1237322e-06
        %v1876 = vadd.f32 %v1875, 0.00028619796
        %v1877 = vmul.f32 %v1874, %v1876
        %v1878 = vadd.f32 %v1877, 0.0036580483
        %v1879 = vmul.f32 %v1874, %v1878
        %v1880 = vadd.f32 %v1879, 0.05243302
        %v1881 = vmul.f32 %v1874, %v1880
        %v1882 = vadd.f32 %v1881, 0.18741608
        %v1883 = vmul.f32 %v1874, %v1882
        %v1884 = vadd.f32 %v1883, 1.1283791
        %v1885 = vmul.f32 %v1592, %v1884
        %v1886 = vmul.f32 %v1874, 3.8918573e-05
        %v1887 = vadd.f32 %v1886, 0.001143296
        %v1888 = vmul.f32 %v1874, %v1887
        %v1889 = vadd.f32 %v1888, 0.014752088
        %v1890 = vmul.f32 %v1874, %v1889
        %v1891 = vadd.f32 %v1890, 0.112945676
        %v1892 = vmul.f32 %v1874, %v1891
        %v1893 = vadd.f32 %v1892, 0.4994258
        %v1894 = vmul.f32 %v1874, %v1893
        %v1895 = vadd.f32 %v1894, 1.0
        %v1896 = vrcp.pop %v1895
        %v1897 = vmul.f32 %v1895, %v1896
        %v1898 = vsub.f32 1.0, %v1897
        %v1899 = vmul.f32 %v1896, %v1898
        %v1900 = vadd.f32 %v1896, %v1899
        %vm1901 = vweird.f32 %v1895
        %vm1902 = vweird.f32 %v1896
        %vm1903 = vmor %vm1901, %vm1902
        %v1904 = vsel %vm1903, %v1896, %v1900
        %v1905 = vand.u32 2147483647, %v1895
        %vm1906 = vcmp.eq.f32.partialorder %v1905, 8.507059e+37
        %v1907 = vand.u32 %v1895, 2147483648
        %v1908 = vor.u32 1.1754944e-38, %v1907
        %v1909 = vsel %vm1906, %v1908, %v1904
        %v1910 = vmul.f32 %v1885, %v1909
        %v1911 = vmin.f32 %v1910, 1.0
        %v1912 = vmax.f32 %v1911, -1.0
        %v1913 = vadd.f32 %v1632, 1.0
        %v1914 = vadd.f32 %v1672, 1.0
        %v1915 = vadd.f32 %v1712, 1.0
        %v1916 = vadd.f32 %v1752, 1.0
        %v1917 = vadd.f32 %v1792, 1.0
        %v1918 = vadd.f32 %v1832, 1.0
        %v1919 = vadd.f32 %v1872, 1.0
        %v1920 = vadd.f32 %v1912, 1.0
        %v1921 = vmul.f32 %v1577, %v1913
        %v1922 = vmul.f32 %v1578, %v1914
        %v1923 = vmul.f32 %v1579, %v1915
        %v1924 = vmul.f32 %v1580, %v1916
        %v1925 = vmul.f32 %v1581, %v1917
        %v1926 = vmul.f32 %v1582, %v1918
        %v1927 = vmul.f32 %v1583, %v1919
        %v1928 = vmul.f32 %v1584, %v1920
        %v1929 = vld [vmem:[#allocation6] sm:$0xff]
        %v1930 = vld [vmem:[#allocation6 + $0x8] sm:$0xff]
        %v1931 = vld [vmem:[#allocation6 + $0x10] sm:$0xff]
        %v1932 = vld [vmem:[#allocation6 + $0x18] sm:$0xff]
        %v1933 = vld [vmem:[#allocation6 + $0x20] sm:$0xff]
        %v1934 = vld [vmem:[#allocation6 + $0x28] sm:$0xff]
        %v1935 = vld [vmem:[#allocation6 + $0x30] sm:$0xff]
        %v1936 = vld [vmem:[#allocation6 + $0x38] sm:$0xff]
        %v1937 = vld [vmem:[#allocation6 + $0x40] sm:$0xff]
        %v1938 = vld [vmem:[#allocation6 + $0x48] sm:$0xff]
        %v1939 = vld [vmem:[#allocation6 + $0x50] sm:$0xff]
        %v1940 = vld [vmem:[#allocation6 + $0x58] sm:$0xff]
        %v1941 = vld [vmem:[#allocation6 + $0x60] sm:$0xff]
        %v1942 = vld [vmem:[#allocation6 + $0x68] sm:$0xff]
        %v1943 = vld [vmem:[#allocation6 + $0x70] sm:$0xff]
        %v1944 = vld [vmem:[#allocation6 + $0x78] sm:$0xff]
        %v1945 = vld [vmem:[#allocation6 + $0x80] sm:$0xff]
        %v1946 = vld [vmem:[#allocation6 + $0x88] sm:$0xff]
        %v1947 = vld [vmem:[#allocation6 + $0x90] sm:$0xff]
        %v1948 = vld [vmem:[#allocation6 + $0x98] sm:$0xff]
        %v1949 = vld [vmem:[#allocation6 + $0xa0] sm:$0xff]
        %v1950 = vld [vmem:[#allocation6 + $0xa8] sm:$0xff]
        %v1951 = vld [vmem:[#allocation6 + $0xb0] sm:$0xff]
        %v1952 = vld [vmem:[#allocation6 + $0xb8] sm:$0xff]
        %v1953 = vld [vmem:[#allocation6 + $0xc0] sm:$0xff]
        %v1954 = vld [vmem:[#allocation6 + $0xc8] sm:$0xff]
        %v1955 = vld [vmem:[#allocation6 + $0xd0] sm:$0xff]
        %v1956 = vld [vmem:[#allocation6 + $0xd8] sm:$0xff]
        %v1957 = vld [vmem:[#allocation6 + $0xe0] sm:$0xff]
        %v1958 = vld [vmem:[#allocation6 + $0xe8] sm:$0xff]
        %v1959 = vld [vmem:[#allocation6 + $0xf0] sm:$0xff]
        %v1960 = vld [vmem:[#allocation6 + $0xf8] sm:$0xff]
        %v1961 = vld [vmem:[#allocation6 + $0x100] sm:$0xff]
        %v1962 = vld [vmem:[#allocation6 + $0x108] sm:$0xff]
        %v1963 = vld [vmem:[#allocation6 + $0x110] sm:$0xff]
        %v1964 = vld [vmem:[#allocation6 + $0x118] sm:$0xff]
        %v1965 = vld [vmem:[#allocation6 + $0x120] sm:$0xff]
        %v1966 = vld [vmem:[#allocation6 + $0x128] sm:$0xff]
        %v1967 = vld [vmem:[#allocation6 + $0x130] sm:$0xff]
        %v1968 = vld [vmem:[#allocation6 + $0x138] sm:$0xff]
        %v1969 = vld [vmem:[#allocation6 + $0x140] sm:$0xff]
        %v1970 = vld [vmem:[#allocation6 + $0x148] sm:$0xff]
        %v1971 = vld [vmem:[#allocation6 + $0x150] sm:$0xff]
        %v1972 = vld [vmem:[#allocation6 + $0x158] sm:$0xff]
        %v1973 = vld [vmem:[#allocation6 + $0x160] sm:$0xff]
        %v1974 = vld [vmem:[#allocation6 + $0x168] sm:$0xff]
        %v1975 = vld [vmem:[#allocation6 + $0x170] sm:$0xff]
        %v1976 = vld [vmem:[#allocation6 + $0x178] sm:$0xff]
        %v1977 = vld [vmem:[#allocation6 + $0x180] sm:$0xff]
        %v1978 = vld [vmem:[#allocation6 + $0x188] sm:$0xff]
        %v1979 = vld [vmem:[#allocation6 + $0x190] sm:$0xff]
        %v1980 = vld [vmem:[#allocation6 + $0x198] sm:$0xff]
        %v1981 = vld [vmem:[#allocation6 + $0x1a0] sm:$0xff]
        %v1982 = vld [vmem:[#allocation6 + $0x1a8] sm:$0xff]
        %v1983 = vld [vmem:[#allocation6 + $0x1b0] sm:$0xff]
        %v1984 = vld [vmem:[#allocation6 + $0x1b8] sm:$0xff]
        %v1985 = vld [vmem:[#allocation6 + $0x1c0] sm:$0xff]
        %v1986 = vld [vmem:[#allocation6 + $0x1c8] sm:$0xff]
        %v1987 = vld [vmem:[#allocation6 + $0x1d0] sm:$0xff]
        %v1988 = vld [vmem:[#allocation6 + $0x1d8] sm:$0xff]
        %v1989 = vld [vmem:[#allocation6 + $0x1e0] sm:$0xff]
        %v1990 = vld [vmem:[#allocation6 + $0x1e8] sm:$0xff]
        %v1991 = vld [vmem:[#allocation6 + $0x1f0] sm:$0xff]
        %v1992 = vld [vmem:[#allocation6 + $0x1f8] sm:$0xff]
        %v1993 = vld [vmem:[%s13] sm:$0x1]
        %v1995 = vperm.slane %v1993, 0
        %1997 = vmatpush.msra.mxu0 %v1944
        %1998 = vmatpush.msra.mxu0 %v1943
        %1999 = vmatpush.msra.mxu0 %v1942
        %2000 = vmatpush.msra.mxu0 %v1941
        %2001 = vmatpush.msra.mxu0 %v1940
        %2002 = vmatpush.msra.mxu0 %v1939
        %2003 = vmatpush.msra.mxu0 %v1938
        %2004 = vmatpush.msra.mxu0 %v1937
        %2005 = vmatpush.msra.mxu0 %v1936
        %2006 = vmatpush.msra.mxu0 %v1935
        %2007 = vmatpush.msra.mxu0 %v1934
        %2008 = vmatpush.msra.mxu0 %v1933
        %2009 = vmatpush.msra.mxu0 %v1932
        %2010 = vmatpush.msra.mxu0 %v1931
        %2011 = vmatpush.msra.mxu0 %v1930
        %2012 = vmatpush.msra.mxu0 %v1929
        %2013 = vmatmul.f32.gmra.mxu0 %v1921
        %v2014 = vpop.f32.mrf.mxu0
        %v2015 = vadd.f32 %v1995, %v2014
        %2016 = vmatmul.f32.gmra.mxu0 %v1925
        %v2017 = vpop.f32.mrf.mxu0
        %v2018 = vadd.f32 %v1995, %v2017
        %2019 = vdwg.mxu0
        %2020 = vmatpush.msra.mxu0 %v1960
        %2021 = vmatpush.msra.mxu0 %v1959
        %2022 = vmatpush.msra.mxu0 %v1958
        %2023 = vmatpush.msra.mxu0 %v1957
        %2024 = vmatpush.msra.mxu0 %v1956
        %2025 = vmatpush.msra.mxu0 %v1955
        %2026 = vmatpush.msra.mxu0 %v1954
        %2027 = vmatpush.msra.mxu0 %v1953
        %2028 = vmatpush.msra.mxu0 %v1952
        %2029 = vmatpush.msra.mxu0 %v1951
        %2030 = vmatpush.msra.mxu0 %v1950
        %2031 = vmatpush.msra.mxu0 %v1949
        %2032 = vmatpush.msra.mxu0 %v1948
        %2033 = vmatpush.msra.mxu0 %v1947
        %2034 = vmatpush.msra.mxu0 %v1946
        %2035 = vmatpush.msra.mxu0 %v1945
        %2036 = vmatmul.f32.gmra.mxu0 %v1922
        %v2037 = vpop.f32.mrf.mxu0
        %v2038 = vadd.f32 %v2015, %v2037
        %2039 = vmatmul.f32.gmra.mxu0 %v1926
        %v2040 = vpop.f32.mrf.mxu0
        %v2041 = vadd.f32 %v2018, %v2040
        %2042 = vdwg.mxu0
        %2043 = vmatpush.msra.mxu0 %v1976
        %2044 = vmatpush.msra.mxu0 %v1975
        %2045 = vmatpush.msra.mxu0 %v1974
        %2046 = vmatpush.msra.mxu0 %v1973
        %2047 = vmatpush.msra.mxu0 %v1972
        %2048 = vmatpush.msra.mxu0 %v1971
        %2049 = vmatpush.msra.mxu0 %v1970
        %2050 = vmatpush.msra.mxu0 %v1969
        %2051 = vmatpush.msra.mxu0 %v1968
        %2052 = vmatpush.msra.mxu0 %v1967
        %2053 = vmatpush.msra.mxu0 %v1966
        %2054 = vmatpush.msra.mxu0 %v1965
        %2055 = vmatpush.msra.mxu0 %v1964
        %2056 = vmatpush.msra.mxu0 %v1963
        %2057 = vmatpush.msra.mxu0 %v1962
        %2058 = vmatpush.msra.mxu0 %v1961
        %2059 = vmatmul.f32.gmra.mxu0 %v1923
        %v2060 = vpop.f32.mrf.mxu0
        %v2061 = vadd.f32 %v2038, %v2060
        %2062 = vmatmul.f32.gmra.mxu0 %v1927
        %v2063 = vpop.f32.mrf.mxu0
        %v2064 = vadd.f32 %v2041, %v2063
        %2065 = vdwg.mxu0
        %2066 = vmatpush.msra.mxu0 %v1992
        %2067 = vmatpush.msra.mxu0 %v1991
        %2068 = vmatpush.msra.mxu0 %v1990
        %2069 = vmatpush.msra.mxu0 %v1989
        %2070 = vmatpush.msra.mxu0 %v1988
        %2071 = vmatpush.msra.mxu0 %v1987
        %2072 = vmatpush.msra.mxu0 %v1986
        %2073 = vmatpush.msra.mxu0 %v1985
        %2074 = vmatpush.msra.mxu0 %v1984
        %2075 = vmatpush.msra.mxu0 %v1983
        %2076 = vmatpush.msra.mxu0 %v1982
        %2077 = vmatpush.msra.mxu0 %v1981
        %2078 = vmatpush.msra.mxu0 %v1980
        %2079 = vmatpush.msra.mxu0 %v1979
        %2080 = vmatpush.msra.mxu0 %v1978
        %2081 = vmatpush.msra.mxu0 %v1977
        %2082 = vmatmul.f32.gmra.mxu0 %v1924
        %v2083 = vpop.f32.mrf.mxu0
        %v2084 = vadd.f32 %v2061, %v2083
        %2085 = vmatmul.f32.gmra.mxu0 %v1928
        %v2086 = vpop.f32.mrf.mxu0
        %v2087 = vadd.f32 %v2064, %v2086
        %2088 = vdwg.mxu0
        %v2089 = vadd.f32 %v2084, %v1409
        %v2090 = vadd.f32 %v2087, %v1410
        %v2091 = vld [vmem:[%s14] sm:$0x1]
        %v2092 = vld [vmem:[%s15] sm:$0x1]
        %2093 = vadd.xlane.f32.xlu0 %v2089
        %v2094 = vpop.xlane.xlu0 %2093
        %2095 = vadd.xlane.f32.xlu0 %v2090
        %v2096 = vpop.xlane.xlu0 %2095
        %v2097 = vmul.f32 %v2094, %v711
        %v2098 = vmul.f32 %v2096, %v711
        %v2099 = vsub.f32 %v2089, %v2097
        %v2100 = vsub.f32 %v2090, %v2098
        %v2101 = vmul.f32 %v2099, %v2099
        %v2102 = vmul.f32 %v2100, %v2100
        %2103 = vadd.xlane.f32.xlu0 %v2101
        %v2104 = vpop.xlane.xlu0 %2103
        %2105 = vadd.xlane.f32.xlu0 %v2102
        %v2106 = vpop.xlane.xlu0 %2105
        %v2107 = vmul.f32 %v2104, %v711
        %v2108 = vmul.f32 %v2106, %v711
        %v2109 = vadd.f32 %v2107, 1e-12
        %v2110 = vadd.f32 %v2108, 1e-12
        %v2111 = vrsqrt.pop %v2109
        %v2112 = vmul.f32 %v2111, %v2109
        %v2113 = vmul.f32 %v2112, %v2111
        %v2114 = vmul.f32 0.5, %v2113
        %v2115 = vsub.f32 1.5, %v2114
        %v2116 = vmul.f32 %v2111, %v2115
        %vm2117 = vweird.f32 %v2109
        %vm2118 = vweird.f32 %v2111
        %vm2119 = vmor %vm2117, %vm2118
        %v2120 = vsel %vm2119, %v2111, %v2116
        %v2121 = vrsqrt.pop %v2110
        %v2122 = vmul.f32 %v2121, %v2110
        %v2123 = vmul.f32 %v2122, %v2121
        %v2124 = vmul.f32 0.5, %v2123
        %v2125 = vsub.f32 1.5, %v2124
        %v2126 = vmul.f32 %v2121, %v2125
        %vm2127 = vweird.f32 %v2110
        %vm2128 = vweird.f32 %v2121
        %vm2129 = vmor %vm2127, %vm2128
        %v2130 = vsel %vm2129, %v2121, %v2126
        %v2131 = vmul.f32 %v2099, %v2120
        %v2132 = vmul.f32 %v2100, %v2130
        %v2134 = vperm.slane %v2091, 0
        %v2136 = vmul.f32 %v2131, %v2134
        %v2137 = vmul.f32 %v2132, %v2134
        %v2139 = vperm.slane %v2092, 0
        %v2141 = vadd.f32 %v2136, %v2139
        %v2142 = vadd.f32 %v2137, %v2139
        %s2143 = scalar_lea.vmem [#allocation2], 384
        %v2144 = vld [vmem:[%s2143] sm:$0xff]
        %v2145 = vld [vmem:[%s2143 + $0x8] sm:$0xff]
        %v2146 = vld [vmem:[%s2143 + $0x10] sm:$0xff]
        %v2147 = vld [vmem:[%s2143 + $0x18] sm:$0xff]
        %v2148 = vld [vmem:[%s2143 + $0x20] sm:$0xff]
        %v2149 = vld [vmem:[%s2143 + $0x28] sm:$0xff]
        %v2150 = vld [vmem:[%s2143 + $0x30] sm:$0xff]
        %v2151 = vld [vmem:[%s2143 + $0x38] sm:$0xff]
        %v2152 = vld [vmem:[%s2143 + $0x40] sm:$0xff]
        %v2153 = vld [vmem:[%s2143 + $0x48] sm:$0xff]
        %v2154 = vld [vmem:[%s2143 + $0x50] sm:$0xff]
        %v2155 = vld [vmem:[%s2143 + $0x58] sm:$0xff]
        %v2156 = vld [vmem:[%s2143 + $0x60] sm:$0xff]
        %v2157 = vld [vmem:[%s2143 + $0x68] sm:$0xff]
        %v2158 = vld [vmem:[%s2143 + $0x70] sm:$0xff]
        %v2159 = vld [vmem:[%s2143 + $0x78] sm:$0xff]
        %v2160 = vld [vmem:[%s2143 + $0x80] sm:$0xff]
        %v2161 = vld [vmem:[%s2143 + $0x88] sm:$0xff]
        %v2162 = vld [vmem:[%s2143 + $0x90] sm:$0xff]
        %v2163 = vld [vmem:[%s2143 + $0x98] sm:$0xff]
        %v2164 = vld [vmem:[%s2143 + $0xa0] sm:$0xff]
        %v2165 = vld [vmem:[%s2143 + $0xa8] sm:$0xff]
        %v2166 = vld [vmem:[%s2143 + $0xb0] sm:$0xff]
        %v2167 = vld [vmem:[%s2143 + $0xb8] sm:$0xff]
        %v2168 = vld [vmem:[%s2143 + $0xc0] sm:$0xff]
        %v2169 = vld [vmem:[%s2143 + $0xc8] sm:$0xff]
        %v2170 = vld [vmem:[%s2143 + $0xd0] sm:$0xff]
        %v2171 = vld [vmem:[%s2143 + $0xd8] sm:$0xff]
        %v2172 = vld [vmem:[%s2143 + $0xe0] sm:$0xff]
        %v2173 = vld [vmem:[%s2143 + $0xe8] sm:$0xff]
        %v2174 = vld [vmem:[%s2143 + $0xf0] sm:$0xff]
        %v2175 = vld [vmem:[%s2143 + $0xf8] sm:$0xff]
        %v2176 = vld [vmem:[%s2143 + $0x100] sm:$0xff]
        %v2177 = vld [vmem:[%s2143 + $0x108] sm:$0xff]
        %v2178 = vld [vmem:[%s2143 + $0x110] sm:$0xff]
        %v2179 = vld [vmem:[%s2143 + $0x118] sm:$0xff]
        %v2180 = vld [vmem:[%s2143 + $0x120] sm:$0xff]
        %v2181 = vld [vmem:[%s2143 + $0x128] sm:$0xff]
        %v2182 = vld [vmem:[%s2143 + $0x130] sm:$0xff]
        %v2183 = vld [vmem:[%s2143 + $0x138] sm:$0xff]
        %v2184 = vld [vmem:[%s2143 + $0x140] sm:$0xff]
        %v2185 = vld [vmem:[%s2143 + $0x148] sm:$0xff]
        %v2186 = vld [vmem:[%s2143 + $0x150] sm:$0xff]
        %v2187 = vld [vmem:[%s2143 + $0x158] sm:$0xff]
        %v2188 = vld [vmem:[%s2143 + $0x160] sm:$0xff]
        %v2189 = vld [vmem:[%s2143 + $0x168] sm:$0xff]
        %v2190 = vld [vmem:[%s2143 + $0x170] sm:$0xff]
        %v2191 = vld [vmem:[%s2143 + $0x178] sm:$0xff]
        %s2192 = scalar_lea.vmem %s5, 3
        %v2193 = vld [vmem:[%s2192] sm:$0x7]
        %v2195 = vperm.slane %v2193, 0
        %v2196 = vperm.slane %v2193, 1
        %v2197 = vperm.slane %v2193, 2
        %2201 = vmatpush.msra.mxu0 %v2189
        %2202 = vmatpush.msra.mxu0 %v2186
        %2203 = vmatpush.msra.mxu0 %v2183
        %2204 = vmatpush.msra.mxu0 %v2180
        %2205 = vmatpush.msra.mxu0 %v2177
        %2206 = vmatpush.msra.mxu0 %v2174
        %2207 = vmatpush.msra.mxu0 %v2171
        %2208 = vmatpush.msra.mxu0 %v2168
        %2209 = vmatpush.msra.mxu0 %v2165
        %2210 = vmatpush.msra.mxu0 %v2162
        %2211 = vmatpush.msra.mxu0 %v2159
        %2212 = vmatpush.msra.mxu0 %v2156
        %2213 = vmatpush.msra.mxu0 %v2153
        %2214 = vmatpush.msra.mxu0 %v2150
        %2215 = vmatpush.msra.mxu0 %v2147
        %2216 = vmatpush.msra.mxu0 %v2144
        %2217 = vmatmul.f32.gmra.mxu0 %v2141
        %v2218 = vpop.f32.mrf.mxu0
        %v2219 = vadd.f32 %v2195, %v2218
        %2220 = vmatmul.f32.gmra.mxu0 %v2142
        %v2221 = vpop.f32.mrf.mxu0
        %v2222 = vadd.f32 %v2195, %v2221
        %2223 = vdwg.mxu0
        %2224 = vmatpush.msra.mxu0 %v2190
        %2225 = vmatpush.msra.mxu0 %v2187
        %2226 = vmatpush.msra.mxu0 %v2184
        %2227 = vmatpush.msra.mxu0 %v2181
        %2228 = vmatpush.msra.mxu0 %v2178
        %2229 = vmatpush.msra.mxu0 %v2175
        %2230 = vmatpush.msra.mxu0 %v2172
        %2231 = vmatpush.msra.mxu0 %v2169
        %2232 = vmatpush.msra.mxu0 %v2166
        %2233 = vmatpush.msra.mxu0 %v2163
        %2234 = vmatpush.msra.mxu0 %v2160
        %2235 = vmatpush.msra.mxu0 %v2157
        %2236 = vmatpush.msra.mxu0 %v2154
        %2237 = vmatpush.msra.mxu0 %v2151
        %2238 = vmatpush.msra.mxu0 %v2148
        %2239 = vmatpush.msra.mxu0 %v2145
        %2240 = vmatmul.f32.gmra.mxu0 %v2141
        %v2241 = vpop.f32.mrf.mxu0
        %v2242 = vadd.f32 %v2196, %v2241
        %2243 = vmatmul.f32.gmra.mxu0 %v2142
        %v2244 = vpop.f32.mrf.mxu0
        %v2245 = vadd.f32 %v2196, %v2244
        %2246 = vdwg.mxu0
        %2247 = vmatpush.msra.mxu0 %v2191
        %2248 = vmatpush.msra.mxu0 %v2188
        %2249 = vmatpush.msra.mxu0 %v2185
        %2250 = vmatpush.msra.mxu0 %v2182
        %2251 = vmatpush.msra.mxu0 %v2179
        %2252 = vmatpush.msra.mxu0 %v2176
        %2253 = vmatpush.msra.mxu0 %v2173
        %2254 = vmatpush.msra.mxu0 %v2170
        %2255 = vmatpush.msra.mxu0 %v2167
        %2256 = vmatpush.msra.mxu0 %v2164
        %2257 = vmatpush.msra.mxu0 %v2161
        %2258 = vmatpush.msra.mxu0 %v2158
        %2259 = vmatpush.msra.mxu0 %v2155
        %2260 = vmatpush.msra.mxu0 %v2152
        %2261 = vmatpush.msra.mxu0 %v2149
        %2262 = vmatpush.msra.mxu0 %v2146
        %2263 = vmatmul.f32.gmra.mxu0 %v2141
        %v2264 = vpop.f32.mrf.mxu0
        %v2265 = vadd.f32 %v2197, %v2264
        %2266 = vmatmul.f32.gmra.mxu0 %v2142
        %v2267 = vpop.f32.mrf.mxu0
        %v2268 = vadd.f32 %v2197, %v2267
        %2269 = vdwg.mxu0
        %v2271 = vsel %vm885, %v2219, 0
        %v2274 = vsel %vm885, %v2222, 0
        %v2277 = vsel %vm885, %v2242, 0
        %v2280 = vsel %vm885, %v2245, 0
        %2282 = vmatpush.xpose.msra.mxu0 0.0
        %2283 = vmatpush.xpose.msra.mxu0 0.0
        %2284 = vmatpush.xpose.msra.mxu0 0.0
        %2285 = vmatpush.xpose.msra.mxu0 0.0
        %2286 = vmatpush.xpose.msra.mxu0 0.0
        %2287 = vmatpush.xpose.msra.mxu0 0.0
        %2288 = vmatpush.xpose.msra.mxu0 0.0
        %2289 = vmatpush.xpose.msra.mxu0 0.0
        %2290 = vmatpush.xpose.msra.mxu0 0.0
        %2291 = vmatpush.xpose.msra.mxu0 0.0
        %2292 = vmatpush.xpose.msra.mxu0 0.0
        %2293 = vmatpush.xpose.msra.mxu0 0.0
        %2294 = vmatpush.xpose.msra.mxu0 0.0
        %2295 = vmatpush.xpose.msra.mxu0 0.0
        %2296 = vmatpush.xpose.msra.mxu0 %v2280
        %2297 = vmatpush.xpose.msra.mxu0 %v2277
        %2298 = vmatmul.f32.gmra.mxu0 %v2271
        %v2299 = vpop.f32.mrf.mxu0
        %v2300 = vadd.f32 0.0, %v2299
        %2301 = vmatmul.f32.gmra.mxu0 %v2274
        %v2302 = vpop.f32.mrf.mxu0
        %v2303 = vadd.f32 0.0, %v2302
        %2304 = vdwg.mxu0
        %v2305 = vmul.f32 %v2300, 0.17677669
        %v2306 = vmul.f32 %v2303, 0.17677669
        %v2307 = vsel %vm925, %v2305, -3.4028235e+38
        %v2308 = vsel %vm925, %v2306, -3.4028235e+38
        %v2309 = vsel %vm928, %v2307, -inf
        %2310 = vmax.xlane.f32.xlu0 %v2309
        %v2311 = vpop.xlane.xlu0 %2310
        %v2312 = vsel %vm928, %v2308, -inf
        %2313 = vmax.xlane.f32.xlu0 %v2312
        %v2314 = vpop.xlane.xlu0 %2313
        %v2315 = vsub.f32 %v2307, %v2311
        %v2316 = vsub.f32 %v2308, %v2314
        %v2317 = vmul.f32 %v2315, 1.442695
        %v2318 = vpow.pop %v2317
        %v2319 = vmul.f32 %v2316, 1.442695
        %v2320 = vpow.pop %v2319
        %v2321 = vsel %vm928, %v2318, 0.0
        %2322 = vadd.xlane.f32.xlu0 %v2321
        %v2323 = vpop.xlane.xlu0 %2322
        %v2324 = vsel %vm928, %v2320, 0.0
        %2325 = vadd.xlane.f32.xlu0 %v2324
        %v2326 = vpop.xlane.xlu0 %2325
        %v2327 = vrcp.pop %v2323
        %v2328 = vrcp.pop %v2326
        %v2329 = vmul.f32 %v2318, %v2327
        %v2330 = vmul.f32 %v2320, %v2328
        %v2332 = vsel %vm928, %v2329, 0
        %v2335 = vsel %vm928, %v2330, 0
        %2337 = vmatpush.msra.mxu0 0.0
        %2338 = vmatpush.msra.mxu0 0.0
        %2339 = vmatpush.msra.mxu0 0.0
        %2340 = vmatpush.msra.mxu0 0.0
        %2341 = vmatpush.msra.mxu0 0.0
        %2342 = vmatpush.msra.mxu0 0.0
        %2343 = vmatpush.msra.mxu0 0.0
        %2344 = vmatpush.msra.mxu0 0.0
        %2345 = vmatpush.msra.mxu0 0.0
        %2346 = vmatpush.msra.mxu0 0.0
        %2347 = vmatpush.msra.mxu0 0.0
        %2348 = vmatpush.msra.mxu0 0.0
        %2349 = vmatpush.msra.mxu0 0.0
        %2350 = vmatpush.msra.mxu0 0.0
        %2351 = vmatpush.msra.mxu0 %v2268
        %2352 = vmatpush.msra.mxu0 %v2265
        %2353 = vmatmul.f32.gmra.mxu0 %v2332
        %v2354 = vpop.f32.mrf.mxu0
        %v2355 = vadd.f32 0.0, %v2354
        %2356 = vmatmul.f32.gmra.mxu0 %v2335
        %v2357 = vpop.f32.mrf.mxu0
        %v2358 = vadd.f32 0.0, %v2357
        %2359 = vdwg.mxu0
        %2360 = vrot.lane.b32.xlu0 %v2219, 96
        %v2361 = vpop.permute.xlu0 %2360
        %2362 = vrot.lane.b32.xlu0 %v2222, 96
        %v2363 = vpop.permute.xlu0 %2362
        %2364 = vrot.lane.b32.xlu0 %v2242, 96
        %v2365 = vpop.permute.xlu0 %2364
        %2366 = vrot.lane.b32.xlu0 %v2245, 96
        %v2367 = vpop.permute.xlu0 %2366
        %v2368 = vsel %vm885, %v2361, 0
        %v2370 = vsel %vm885, %v2363, 0
        %v2372 = vsel %vm885, %v2365, 0
        %v2374 = vsel %vm885, %v2367, 0
        %2376 = vmatpush.xpose.msra.mxu0 0.0
        %2377 = vmatpush.xpose.msra.mxu0 0.0
        %2378 = vmatpush.xpose.msra.mxu0 0.0
        %2379 = vmatpush.xpose.msra.mxu0 0.0
        %2380 = vmatpush.xpose.msra.mxu0 0.0
        %2381 = vmatpush.xpose.msra.mxu0 0.0
        %2382 = vmatpush.xpose.msra.mxu0 0.0
        %2383 = vmatpush.xpose.msra.mxu0 0.0
        %2384 = vmatpush.xpose.msra.mxu0 0.0
        %2385 = vmatpush.xpose.msra.mxu0 0.0
        %2386 = vmatpush.xpose.msra.mxu0 0.0
        %2387 = vmatpush.xpose.msra.mxu0 0.0
        %2388 = vmatpush.xpose.msra.mxu0 0.0
        %2389 = vmatpush.xpose.msra.mxu0 0.0
        %2390 = vmatpush.xpose.msra.mxu0 %v2374
        %2391 = vmatpush.xpose.msra.mxu0 %v2372
        %2392 = vmatmul.f32.gmra.mxu0 %v2368
        %v2393 = vpop.f32.mrf.mxu0
        %v2394 = vadd.f32 0.0, %v2393
        %2395 = vmatmul.f32.gmra.mxu0 %v2370
        %v2396 = vpop.f32.mrf.mxu0
        %v2397 = vadd.f32 0.0, %v2396
        %2398 = vdwg.mxu0
        %v2399 = vmul.f32 %v2394, 0.17677669
        %v2400 = vmul.f32 %v2397, 0.17677669
        %v2401 = vsel %vm925, %v2399, -3.4028235e+38
        %v2402 = vsel %vm925, %v2400, -3.4028235e+38
        %v2403 = vsel %vm928, %v2401, -inf
        %2404 = vmax.xlane.f32.xlu0 %v2403
        %v2405 = vpop.xlane.xlu0 %2404
        %v2406 = vsel %vm928, %v2402, -inf
        %2407 = vmax.xlane.f32.xlu0 %v2406
        %v2408 = vpop.xlane.xlu0 %2407
        %v2409 = vsub.f32 %v2401, %v2405
        %v2410 = vsub.f32 %v2402, %v2408
        %v2411 = vmul.f32 %v2409, 1.442695
        %v2412 = vpow.pop %v2411
        %v2413 = vmul.f32 %v2410, 1.442695
        %v2414 = vpow.pop %v2413
        %v2415 = vsel %vm928, %v2412, 0.0
        %2416 = vadd.xlane.f32.xlu0 %v2415
        %v2417 = vpop.xlane.xlu0 %2416
        %v2418 = vsel %vm928, %v2414, 0.0
        %2419 = vadd.xlane.f32.xlu0 %v2418
        %v2420 = vpop.xlane.xlu0 %2419
        %v2421 = vrcp.pop %v2417
        %v2422 = vrcp.pop %v2420
        %v2423 = vmul.f32 %v2412, %v2421
        %v2424 = vmul.f32 %v2414, %v2422
        %2427 = vrot.lane.b32.xlu0 %v2265, 96
        %v2428 = vpop.permute.xlu0 %2427
        %2429 = vrot.lane.b32.xlu0 %v2268, 96
        %v2430 = vpop.permute.xlu0 %2429
        %v2434 = vsel %vm928, %v2423, 0
        %v2437 = vsel %vm928, %v2424, 0
        %2439 = vmatpush.msra.mxu0 0.0
        %2440 = vmatpush.msra.mxu0 0.0
        %2441 = vmatpush.msra.mxu0 0.0
        %2442 = vmatpush.msra.mxu0 0.0
        %2443 = vmatpush.msra.mxu0 0.0
        %2444 = vmatpush.msra.mxu0 0.0
        %2445 = vmatpush.msra.mxu0 0.0
        %2446 = vmatpush.msra.mxu0 0.0
        %2447 = vmatpush.msra.mxu0 0.0
        %2448 = vmatpush.msra.mxu0 0.0
        %2449 = vmatpush.msra.mxu0 0.0
        %2450 = vmatpush.msra.mxu0 0.0
        %2451 = vmatpush.msra.mxu0 0.0
        %2452 = vmatpush.msra.mxu0 0.0
        %2453 = vmatpush.msra.mxu0 %v2430
        %2454 = vmatpush.msra.mxu0 %v2428
        %2455 = vmatmul.f32.gmra.mxu0 %v2434
        %v2456 = vpop.f32.mrf.mxu0
        %v2457 = vadd.f32 0.0, %v2456
        %2458 = vmatmul.f32.gmra.mxu0 %v2437
        %v2459 = vpop.f32.mrf.mxu0
        %v2460 = vadd.f32 0.0, %v2459
        %2461 = vdwg.mxu0
        %2462 = vrot.lane.b32.xlu0 %v2219, 64
        %v2463 = vpop.permute.xlu0 %2462
        %2464 = vrot.lane.b32.xlu0 %v2222, 64
        %v2465 = vpop.permute.xlu0 %2464
        %2466 = vrot.lane.b32.xlu0 %v2242, 64
        %v2467 = vpop.permute.xlu0 %2466
        %2468 = vrot.lane.b32.xlu0 %v2245, 64
        %v2469 = vpop.permute.xlu0 %2468
        %v2470 = vsel %vm885, %v2463, 0
        %v2472 = vsel %vm885, %v2465, 0
        %v2474 = vsel %vm885, %v2467, 0
        %v2476 = vsel %vm885, %v2469, 0
        %2478 = vmatpush.xpose.msra.mxu0 0.0
        %2479 = vmatpush.xpose.msra.mxu0 0.0
        %2480 = vmatpush.xpose.msra.mxu0 0.0
        %2481 = vmatpush.xpose.msra.mxu0 0.0
        %2482 = vmatpush.xpose.msra.mxu0 0.0
        %2483 = vmatpush.xpose.msra.mxu0 0.0
        %2484 = vmatpush.xpose.msra.mxu0 0.0
        %2485 = vmatpush.xpose.msra.mxu0 0.0
        %2486 = vmatpush.xpose.msra.mxu0 0.0
        %2487 = vmatpush.xpose.msra.mxu0 0.0
        %2488 = vmatpush.xpose.msra.mxu0 0.0
        %2489 = vmatpush.xpose.msra.mxu0 0.0
        %2490 = vmatpush.xpose.msra.mxu0 0.0
        %2491 = vmatpush.xpose.msra.mxu0 0.0
        %2492 = vmatpush.xpose.msra.mxu0 %v2476
        %2493 = vmatpush.xpose.msra.mxu0 %v2474
        %2494 = vmatmul.f32.gmra.mxu0 %v2470
        %v2495 = vpop.f32.mrf.mxu0
        %v2496 = vadd.f32 0.0, %v2495
        %2497 = vmatmul.f32.gmra.mxu0 %v2472
        %v2498 = vpop.f32.mrf.mxu0
        %v2499 = vadd.f32 0.0, %v2498
        %2500 = vdwg.mxu0
        %v2501 = vmul.f32 %v2496, 0.17677669
        %v2502 = vmul.f32 %v2499, 0.17677669
        %v2503 = vsel %vm925, %v2501, -3.4028235e+38
        %v2504 = vsel %vm925, %v2502, -3.4028235e+38
        %v2505 = vsel %vm928, %v2503, -inf
        %2506 = vmax.xlane.f32.xlu0 %v2505
        %v2507 = vpop.xlane.xlu0 %2506
        %v2508 = vsel %vm928, %v2504, -inf
        %2509 = vmax.xlane.f32.xlu0 %v2508
        %v2510 = vpop.xlane.xlu0 %2509
        %v2511 = vsub.f32 %v2503, %v2507
        %v2512 = vsub.f32 %v2504, %v2510
        %v2513 = vmul.f32 %v2511, 1.442695
        %v2514 = vpow.pop %v2513
        %v2515 = vmul.f32 %v2512, 1.442695
        %v2516 = vpow.pop %v2515
        %v2517 = vsel %vm928, %v2514, 0.0
        %2518 = vadd.xlane.f32.xlu0 %v2517
        %v2519 = vpop.xlane.xlu0 %2518
        %v2520 = vsel %vm928, %v2516, 0.0
        %2521 = vadd.xlane.f32.xlu0 %v2520
        %v2522 = vpop.xlane.xlu0 %2521
        %v2523 = vrcp.pop %v2519
        %v2524 = vrcp.pop %v2522
        %v2525 = vmul.f32 %v2514, %v2523
        %v2526 = vmul.f32 %v2516, %v2524
        %2527 = vrot.lane.b32.xlu0 %v2265, 64
        %v2528 = vpop.permute.xlu0 %2527
        %2529 = vrot.lane.b32.xlu0 %v2268, 64
        %v2530 = vpop.permute.xlu0 %2529
        %v2534 = vsel %vm928, %v2525, 0
        %v2537 = vsel %vm928, %v2526, 0
        %2539 = vmatpush.msra.mxu0 0.0
        %2540 = vmatpush.msra.mxu0 0.0
        %2541 = vmatpush.msra.mxu0 0.0
        %2542 = vmatpush.msra.mxu0 0.0
        %2543 = vmatpush.msra.mxu0 0.0
        %2544 = vmatpush.msra.mxu0 0.0
        %2545 = vmatpush.msra.mxu0 0.0
        %2546 = vmatpush.msra.mxu0 0.0
        %2547 = vmatpush.msra.mxu0 0.0
        %2548 = vmatpush.msra.mxu0 0.0
        %2549 = vmatpush.msra.mxu0 0.0
        %2550 = vmatpush.msra.mxu0 0.0
        %2551 = vmatpush.msra.mxu0 0.0
        %2552 = vmatpush.msra.mxu0 0.0
        %2553 = vmatpush.msra.mxu0 %v2530
        %2554 = vmatpush.msra.mxu0 %v2528
        %2555 = vmatmul.f32.gmra.mxu0 %v2534
        %v2556 = vpop.f32.mrf.mxu0
        %v2557 = vadd.f32 0.0, %v2556
        %2558 = vmatmul.f32.gmra.mxu0 %v2537
        %v2559 = vpop.f32.mrf.mxu0
        %v2560 = vadd.f32 0.0, %v2559
        %2561 = vdwg.mxu0
        %2562 = vrot.lane.b32.xlu0 %v2219, 32
        %v2563 = vpop.permute.xlu0 %2562
        %2564 = vrot.lane.b32.xlu0 %v2222, 32
        %v2565 = vpop.permute.xlu0 %2564
        %2566 = vrot.lane.b32.xlu0 %v2242, 32
        %v2567 = vpop.permute.xlu0 %2566
        %2568 = vrot.lane.b32.xlu0 %v2245, 32
        %v2569 = vpop.permute.xlu0 %2568
        %v2570 = vsel %vm885, %v2563, 0
        %v2572 = vsel %vm885, %v2565, 0
        %v2574 = vsel %vm885, %v2567, 0
        %v2576 = vsel %vm885, %v2569, 0
        %2578 = vmatpush.xpose.msra.mxu0 0.0
        %2579 = vmatpush.xpose.msra.mxu0 0.0
        %2580 = vmatpush.xpose.msra.mxu0 0.0
        %2581 = vmatpush.xpose.msra.mxu0 0.0
        %2582 = vmatpush.xpose.msra.mxu0 0.0
        %2583 = vmatpush.xpose.msra.mxu0 0.0
        %2584 = vmatpush.xpose.msra.mxu0 0.0
        %2585 = vmatpush.xpose.msra.mxu0 0.0
        %2586 = vmatpush.xpose.msra.mxu0 0.0
        %2587 = vmatpush.xpose.msra.mxu0 0.0
        %2588 = vmatpush.xpose.msra.mxu0 0.0
        %2589 = vmatpush.xpose.msra.mxu0 0.0
        %2590 = vmatpush.xpose.msra.mxu0 0.0
        %2591 = vmatpush.xpose.msra.mxu0 0.0
        %2592 = vmatpush.xpose.msra.mxu0 %v2576
        %2593 = vmatpush.xpose.msra.mxu0 %v2574
        %2594 = vmatmul.f32.gmra.mxu0 %v2570
        %v2595 = vpop.f32.mrf.mxu0
        %v2596 = vadd.f32 0.0, %v2595
        %2597 = vmatmul.f32.gmra.mxu0 %v2572
        %v2598 = vpop.f32.mrf.mxu0
        %v2599 = vadd.f32 0.0, %v2598
        %2600 = vdwg.mxu0
        %v2601 = vmul.f32 %v2596, 0.17677669
        %v2602 = vmul.f32 %v2599, 0.17677669
        %v2603 = vsel %vm925, %v2601, -3.4028235e+38
        %v2604 = vsel %vm925, %v2602, -3.4028235e+38
        %v2605 = vsel %vm928, %v2603, -inf
        %2606 = vmax.xlane.f32.xlu0 %v2605
        %v2607 = vpop.xlane.xlu0 %2606
        %v2608 = vsel %vm928, %v2604, -inf
        %2609 = vmax.xlane.f32.xlu0 %v2608
        %v2610 = vpop.xlane.xlu0 %2609
        %v2611 = vsub.f32 %v2603, %v2607
        %v2612 = vsub.f32 %v2604, %v2610
        %v2613 = vmul.f32 %v2611, 1.442695
        %v2614 = vpow.pop %v2613
        %v2615 = vmul.f32 %v2612, 1.442695
        %v2616 = vpow.pop %v2615
        %v2617 = vsel %vm928, %v2614, 0.0
        %2618 = vadd.xlane.f32.xlu0 %v2617
        %v2619 = vpop.xlane.xlu0 %2618
        %v2620 = vsel %vm928, %v2616, 0.0
        %2621 = vadd.xlane.f32.xlu0 %v2620
        %v2622 = vpop.xlane.xlu0 %2621
        %v2623 = vrcp.pop %v2619
        %v2624 = vrcp.pop %v2622
        %v2625 = vmul.f32 %v2614, %v2623
        %v2626 = vmul.f32 %v2616, %v2624
        %2627 = vrot.lane.b32.xlu0 %v2265, 32
        %v2628 = vpop.permute.xlu0 %2627
        %2629 = vrot.lane.b32.xlu0 %v2268, 32
        %v2630 = vpop.permute.xlu0 %2629
        %v2634 = vsel %vm928, %v2625, 0
        %v2637 = vsel %vm928, %v2626, 0
        %2639 = vmatpush.msra.mxu0 0.0
        %2640 = vmatpush.msra.mxu0 0.0
        %2641 = vmatpush.msra.mxu0 0.0
        %2642 = vmatpush.msra.mxu0 0.0
        %2643 = vmatpush.msra.mxu0 0.0
        %2644 = vmatpush.msra.mxu0 0.0
        %2645 = vmatpush.msra.mxu0 0.0
        %2646 = vmatpush.msra.mxu0 0.0
        %2647 = vmatpush.msra.mxu0 0.0
        %2648 = vmatpush.msra.mxu0 0.0
        %2649 = vmatpush.msra.mxu0 0.0
        %2650 = vmatpush.msra.mxu0 0.0
        %2651 = vmatpush.msra.mxu0 0.0
        %2652 = vmatpush.msra.mxu0 0.0
        %2653 = vmatpush.msra.mxu0 %v2630
        %2654 = vmatpush.msra.mxu0 %v2628
        %2655 = vmatmul.f32.gmra.mxu0 %v2634
        %v2656 = vpop.f32.mrf.mxu0
        %v2657 = vadd.f32 0.0, %v2656
        %2658 = vmatmul.f32.gmra.mxu0 %v2637
        %v2659 = vpop.f32.mrf.mxu0
        %v2660 = vadd.f32 0.0, %v2659
        %2661 = vdwg.mxu0
        %2664 = vrot.lane.b32.xlu0 %v2457, 32
        %v2665 = vpop.permute.xlu0 %2664
        %2666 = vrot.lane.b32.xlu0 %v2460, 32
        %v2667 = vpop.permute.xlu0 %2666
        %2672 = vrot.lane.b32.xlu0 %v2557, 64
        %v2673 = vpop.permute.xlu0 %2672
        %2674 = vrot.lane.b32.xlu0 %v2560, 64
        %v2675 = vpop.permute.xlu0 %2674
        %2680 = vrot.lane.b32.xlu0 %v2657, 96
        %v2681 = vpop.permute.xlu0 %2680
        %2682 = vrot.lane.b32.xlu0 %v2660, 96
        %v2683 = vpop.permute.xlu0 %2682
        %v2686 = vsel %vm885, %v2355, %v2665
        %v2687 = vsel %vm885, %v2358, %v2667
        %v2688 = vsel %vm1308, %v2686, %v2673
        %v2689 = vsel %vm1308, %v2687, %v2675
        %v2690 = vsel %vm1311, %v2688, %v2681
        %v2691 = vsel %vm1311, %v2689, %v2683
        %s2692 = scalar_lea.vmem %s6, 128
        %v2693 = vld [vmem:[%s2692] sm:$0xff]
        %v2694 = vld [vmem:[%s2692 + $0x8] sm:$0xff]
        %v2695 = vld [vmem:[%s2692 + $0x10] sm:$0xff]
        %v2696 = vld [vmem:[%s2692 + $0x18] sm:$0xff]
        %v2697 = vld [vmem:[%s2692 + $0x20] sm:$0xff]
        %v2698 = vld [vmem:[%s2692 + $0x28] sm:$0xff]
        %v2699 = vld [vmem:[%s2692 + $0x30] sm:$0xff]
        %v2700 = vld [vmem:[%s2692 + $0x38] sm:$0xff]
        %v2701 = vld [vmem:[%s2692 + $0x40] sm:$0xff]
        %v2702 = vld [vmem:[%s2692 + $0x48] sm:$0xff]
        %v2703 = vld [vmem:[%s2692 + $0x50] sm:$0xff]
        %v2704 = vld [vmem:[%s2692 + $0x58] sm:$0xff]
        %v2705 = vld [vmem:[%s2692 + $0x60] sm:$0xff]
        %v2706 = vld [vmem:[%s2692 + $0x68] sm:$0xff]
        %v2707 = vld [vmem:[%s2692 + $0x70] sm:$0xff]
        %v2708 = vld [vmem:[%s2692 + $0x78] sm:$0xff]
        %s2709 = scalar_lea.vmem %s7, 1
        %v2710 = vld [vmem:[%s2709] sm:$0x1]
        %v2712 = vperm.slane %v2710, 0
        %2714 = vmatpush.msra.mxu0 %v2708
        %2715 = vmatpush.msra.mxu0 %v2707
        %2716 = vmatpush.msra.mxu0 %v2706
        %2717 = vmatpush.msra.mxu0 %v2705
        %2718 = vmatpush.msra.mxu0 %v2704
        %2719 = vmatpush.msra.mxu0 %v2703
        %2720 = vmatpush.msra.mxu0 %v2702
        %2721 = vmatpush.msra.mxu0 %v2701
        %2722 = vmatpush.msra.mxu0 %v2700
        %2723 = vmatpush.msra.mxu0 %v2699
        %2724 = vmatpush.msra.mxu0 %v2698
        %2725 = vmatpush.msra.mxu0 %v2697
        %2726 = vmatpush.msra.mxu0 %v2696
        %2727 = vmatpush.msra.mxu0 %v2695
        %2728 = vmatpush.msra.mxu0 %v2694
        %2729 = vmatpush.msra.mxu0 %v2693
        %2730 = vmatmul.f32.gmra.mxu0 %v2690
        %v2731 = vpop.f32.mrf.mxu0
        %v2732 = vadd.f32 %v2712, %v2731
        %2733 = vmatmul.f32.gmra.mxu0 %v2691
        %v2734 = vpop.f32.mrf.mxu0
        %v2735 = vadd.f32 %v2712, %v2734
        %2736 = vdwg.mxu0
        %v2737 = vadd.f32 %v2732, %v2141
        %v2738 = vadd.f32 %v2735, %v2142
        %s2739 = scalar_lea.vmem %s8, 1
        %v2740 = vld [vmem:[%s2739] sm:$0x1]
        %s2741 = scalar_lea.vmem %s9, 1
        %v2742 = vld [vmem:[%s2741] sm:$0x1]
        %2743 = vadd.xlane.f32.xlu0 %v2737
        %v2744 = vpop.xlane.xlu0 %2743
        %2745 = vadd.xlane.f32.xlu0 %v2738
        %v2746 = vpop.xlane.xlu0 %2745
        %v2747 = vmul.f32 %v2744, %v711
        %v2748 = vmul.f32 %v2746, %v711
        %v2749 = vsub.f32 %v2737, %v2747
        %v2750 = vsub.f32 %v2738, %v2748
        %v2751 = vmul.f32 %v2749, %v2749
        %v2752 = vmul.f32 %v2750, %v2750
        %2753 = vadd.xlane.f32.xlu0 %v2751
        %v2754 = vpop.xlane.xlu0 %2753
        %2755 = vadd.xlane.f32.xlu0 %v2752
        %v2756 = vpop.xlane.xlu0 %2755
        %v2757 = vmul.f32 %v2754, %v711
        %v2758 = vmul.f32 %v2756, %v711
        %v2759 = vadd.f32 %v2757, 1e-12
        %v2760 = vadd.f32 %v2758, 1e-12
        %v2761 = vrsqrt.pop %v2759
        %v2762 = vmul.f32 %v2761, %v2759
        %v2763 = vmul.f32 %v2762, %v2761
        %v2764 = vmul.f32 0.5, %v2763
        %v2765 = vsub.f32 1.5, %v2764
        %v2766 = vmul.f32 %v2761, %v2765
        %vm2767 = vweird.f32 %v2759
        %vm2768 = vweird.f32 %v2761
        %vm2769 = vmor %vm2767, %vm2768
        %v2770 = vsel %vm2769, %v2761, %v2766
        %v2771 = vrsqrt.pop %v2760
        %v2772 = vmul.f32 %v2771, %v2760
        %v2773 = vmul.f32 %v2772, %v2771
        %v2774 = vmul.f32 0.5, %v2773
        %v2775 = vsub.f32 1.5, %v2774
        %v2776 = vmul.f32 %v2771, %v2775
        %vm2777 = vweird.f32 %v2760
        %vm2778 = vweird.f32 %v2771
        %vm2779 = vmor %vm2777, %vm2778
        %v2780 = vsel %vm2779, %v2771, %v2776
        %v2781 = vmul.f32 %v2749, %v2770
        %v2782 = vmul.f32 %v2750, %v2780
        %v2784 = vperm.slane %v2740, 0
        %v2786 = vmul.f32 %v2781, %v2784
        %v2787 = vmul.f32 %v2782, %v2784
        %v2789 = vperm.slane %v2742, 0
        %v2791 = vadd.f32 %v2786, %v2789
        %v2792 = vadd.f32 %v2787, %v2789
        %s2793 = scalar_lea.vmem [#allocation4], 512
        %v2794 = vld [vmem:[%s2793] sm:$0xff]
        %v2795 = vld [vmem:[%s2793 + $0x8] sm:$0xff]
        %v2796 = vld [vmem:[%s2793 + $0x10] sm:$0xff]
        %v2797 = vld [vmem:[%s2793 + $0x18] sm:$0xff]
        %v2798 = vld [vmem:[%s2793 + $0x20] sm:$0xff]
        %v2799 = vld [vmem:[%s2793 + $0x28] sm:$0xff]
        %v2800 = vld [vmem:[%s2793 + $0x30] sm:$0xff]
        %v2801 = vld [vmem:[%s2793 + $0x38] sm:$0xff]
        %v2802 = vld [vmem:[%s2793 + $0x40] sm:$0xff]
        %v2803 = vld [vmem:[%s2793 + $0x48] sm:$0xff]
        %v2804 = vld [vmem:[%s2793 + $0x50] sm:$0xff]
        %v2805 = vld [vmem:[%s2793 + $0x58] sm:$0xff]
        %v2806 = vld [vmem:[%s2793 + $0x60] sm:$0xff]
        %v2807 = vld [vmem:[%s2793 + $0x68] sm:$0xff]
        %v2808 = vld [vmem:[%s2793 + $0x70] sm:$0xff]
        %v2809 = vld [vmem:[%s2793 + $0x78] sm:$0xff]
        %v2810 = vld [vmem:[%s2793 + $0x80] sm:$0xff]
        %v2811 = vld [vmem:[%s2793 + $0x88] sm:$0xff]
        %v2812 = vld [vmem:[%s2793 + $0x90] sm:$0xff]
        %v2813 = vld [vmem:[%s2793 + $0x98] sm:$0xff]
        %v2814 = vld [vmem:[%s2793 + $0xa0] sm:$0xff]
        %v2815 = vld [vmem:[%s2793 + $0xa8] sm:$0xff]
        %v2816 = vld [vmem:[%s2793 + $0xb0] sm:$0xff]
        %v2817 = vld [vmem:[%s2793 + $0xb8] sm:$0xff]
        %v2818 = vld [vmem:[%s2793 + $0xc0] sm:$0xff]
        %v2819 = vld [vmem:[%s2793 + $0xc8] sm:$0xff]
        %v2820 = vld [vmem:[%s2793 + $0xd0] sm:$0xff]
        %v2821 = vld [vmem:[%s2793 + $0xd8] sm:$0xff]
        %v2822 = vld [vmem:[%s2793 + $0xe0] sm:$0xff]
        %v2823 = vld [vmem:[%s2793 + $0xe8] sm:$0xff]
        %v2824 = vld [vmem:[%s2793 + $0xf0] sm:$0xff]
        %v2825 = vld [vmem:[%s2793 + $0xf8] sm:$0xff]
        %v2826 = vld [vmem:[%s2793 + $0x100] sm:$0xff]
        %v2827 = vld [vmem:[%s2793 + $0x108] sm:$0xff]
        %v2828 = vld [vmem:[%s2793 + $0x110] sm:$0xff]
        %v2829 = vld [vmem:[%s2793 + $0x118] sm:$0xff]
        %v2830 = vld [vmem:[%s2793 + $0x120] sm:$0xff]
        %v2831 = vld [vmem:[%s2793 + $0x128] sm:$0xff]
        %v2832 = vld [vmem:[%s2793 + $0x130] sm:$0xff]
        %v2833 = vld [vmem:[%s2793 + $0x138] sm:$0xff]
        %v2834 = vld [vmem:[%s2793 + $0x140] sm:$0xff]
        %v2835 = vld [vmem:[%s2793 + $0x148] sm:$0xff]
        %v2836 = vld [vmem:[%s2793 + $0x150] sm:$0xff]
        %v2837 = vld [vmem:[%s2793 + $0x158] sm:$0xff]
        %v2838 = vld [vmem:[%s2793 + $0x160] sm:$0xff]
        %v2839 = vld [vmem:[%s2793 + $0x168] sm:$0xff]
        %v2840 = vld [vmem:[%s2793 + $0x170] sm:$0xff]
        %v2841 = vld [vmem:[%s2793 + $0x178] sm:$0xff]
        %v2842 = vld [vmem:[%s2793 + $0x180] sm:$0xff]
        %v2843 = vld [vmem:[%s2793 + $0x188] sm:$0xff]
        %v2844 = vld [vmem:[%s2793 + $0x190] sm:$0xff]
        %v2845 = vld [vmem:[%s2793 + $0x198] sm:$0xff]
        %v2846 = vld [vmem:[%s2793 + $0x1a0] sm:$0xff]
        %v2847 = vld [vmem:[%s2793 + $0x1a8] sm:$0xff]
        %v2848 = vld [vmem:[%s2793 + $0x1b0] sm:$0xff]
        %v2849 = vld [vmem:[%s2793 + $0x1b8] sm:$0xff]
        %v2850 = vld [vmem:[%s2793 + $0x1c0] sm:$0xff]
        %v2851 = vld [vmem:[%s2793 + $0x1c8] sm:$0xff]
        %v2852 = vld [vmem:[%s2793 + $0x1d0] sm:$0xff]
        %v2853 = vld [vmem:[%s2793 + $0x1d8] sm:$0xff]
        %v2854 = vld [vmem:[%s2793 + $0x1e0] sm:$0xff]
        %v2855 = vld [vmem:[%s2793 + $0x1e8] sm:$0xff]
        %v2856 = vld [vmem:[%s2793 + $0x1f0] sm:$0xff]
        %v2857 = vld [vmem:[%s2793 + $0x1f8] sm:$0xff]
        %s2858 = scalar_lea.vmem %s11, 4
        %v2859 = vld [vmem:[%s2858] sm:$0xf]
        %v2861 = vperm.slane %v2859, 0
        %v2862 = vperm.slane %v2859, 1
        %v2863 = vperm.slane %v2859, 2
        %v2864 = vperm.slane %v2859, 3
        %2869 = vmatpush.msra.mxu0 %v2854
        %2870 = vmatpush.msra.mxu0 %v2850
        %2871 = vmatpush.msra.mxu0 %v2846
        %2872 = vmatpush.msra.mxu0 %v2842
        %2873 = vmatpush.msra.mxu0 %v2838
        %2874 = vmatpush.msra.mxu0 %v2834
        %2875 = vmatpush.msra.mxu0 %v2830
        %2876 = vmatpush.msra.mxu0 %v2826
        %2877 = vmatpush.msra.mxu0 %v2822
        %2878 = vmatpush.msra.mxu0 %v2818
        %2879 = vmatpush.msra.mxu0 %v2814
        %2880 = vmatpush.msra.mxu0 %v2810
        %2881 = vmatpush.msra.mxu0 %v2806
        %2882 = vmatpush.msra.mxu0 %v2802
        %2883 = vmatpush.msra.mxu0 %v2798
        %2884 = vmatpush.msra.mxu0 %v2794
        %2885 = vmatmul.f32.gmra.mxu0 %v2791
        %v2886 = vpop.f32.mrf.mxu0
        %v2887 = vadd.f32 %v2861, %v2886
        %2888 = vmatmul.f32.gmra.mxu0 %v2792
        %v2889 = vpop.f32.mrf.mxu0
        %v2890 = vadd.f32 %v2861, %v2889
        %2891 = vdwg.mxu0
        %2892 = vmatpush.msra.mxu0 %v2855
        %2893 = vmatpush.msra.mxu0 %v2851
        %2894 = vmatpush.msra.mxu0 %v2847
        %2895 = vmatpush.msra.mxu0 %v2843
        %2896 = vmatpush.msra.mxu0 %v2839
        %2897 = vmatpush.msra.mxu0 %v2835
        %2898 = vmatpush.msra.mxu0 %v2831
        %2899 = vmatpush.msra.mxu0 %v2827
        %2900 = vmatpush.msra.mxu0 %v2823
        %2901 = vmatpush.msra.mxu0 %v2819
        %2902 = vmatpush.msra.mxu0 %v2815
        %2903 = vmatpush.msra.mxu0 %v2811
        %2904 = vmatpush.msra.mxu0 %v2807
        %2905 = vmatpush.msra.mxu0 %v2803
        %2906 = vmatpush.msra.mxu0 %v2799
        %2907 = vmatpush.msra.mxu0 %v2795
        %2908 = vmatmul.f32.gmra.mxu0 %v2791
        %v2909 = vpop.f32.mrf.mxu0
        %v2910 = vadd.f32 %v2862, %v2909
        %2911 = vmatmul.f32.gmra.mxu0 %v2792
        %v2912 = vpop.f32.mrf.mxu0
        %v2913 = vadd.f32 %v2862, %v2912
        %2914 = vdwg.mxu0
        %2915 = vmatpush.msra.mxu0 %v2856
        %2916 = vmatpush.msra.mxu0 %v2852
        %2917 = vmatpush.msra.mxu0 %v2848
        %2918 = vmatpush.msra.mxu0 %v2844
        %2919 = vmatpush.msra.mxu0 %v2840
        %2920 = vmatpush.msra.mxu0 %v2836
        %2921 = vmatpush.msra.mxu0 %v2832
        %2922 = vmatpush.msra.mxu0 %v2828
        %2923 = vmatpush.msra.mxu0 %v2824
        %2924 = vmatpush.msra.mxu0 %v2820
        %2925 = vmatpush.msra.mxu0 %v2816
        %2926 = vmatpush.msra.mxu0 %v2812
        %2927 = vmatpush.msra.mxu0 %v2808
        %2928 = vmatpush.msra.mxu0 %v2804
        %2929 = vmatpush.msra.mxu0 %v2800
        %2930 = vmatpush.msra.mxu0 %v2796
        %2931 = vmatmul.f32.gmra.mxu0 %v2791
        %v2932 = vpop.f32.mrf.mxu0
        %v2933 = vadd.f32 %v2863, %v2932
        %2934 = vmatmul.f32.gmra.mxu0 %v2792
        %v2935 = vpop.f32.mrf.mxu0
        %v2936 = vadd.f32 %v2863, %v2935
        %2937 = vdwg.mxu0
        %2938 = vmatpush.msra.mxu0 %v2857
        %2939 = vmatpush.msra.mxu0 %v2853
        %2940 = vmatpush.msra.mxu0 %v2849
        %2941 = vmatpush.msra.mxu0 %v2845
        %2942 = vmatpush.msra.mxu0 %v2841
        %2943 = vmatpush.msra.mxu0 %v2837
        %2944 = vmatpush.msra.mxu0 %v2833
        %2945 = vmatpush.msra.mxu0 %v2829
        %2946 = vmatpush.msra.mxu0 %v2825
        %2947 = vmatpush.msra.mxu0 %v2821
        %2948 = vmatpush.msra.mxu0 %v2817
        %2949 = vmatpush.msra.mxu0 %v2813
        %2950 = vmatpush.msra.mxu0 %v2809
        %2951 = vmatpush.msra.mxu0 %v2805
        %2952 = vmatpush.msra.mxu0 %v2801
        %2953 = vmatpush.msra.mxu0 %v2797
        %2954 = vmatmul.f32.gmra.mxu0 %v2791
        %v2955 = vpop.f32.mrf.mxu0
        %v2956 = vadd.f32 %v2864, %v2955
        %2957 = vmatmul.f32.gmra.mxu0 %v2792
        %v2958 = vpop.f32.mrf.mxu0
        %v2959 = vadd.f32 %v2864, %v2958
        %2960 = vdwg.mxu0
        %v2961 = vmul.f32 %v2887, 0.5
        %v2962 = vmul.f32 %v2910, 0.5
        %v2963 = vmul.f32 %v2933, 0.5
        %v2964 = vmul.f32 %v2956, 0.5
        %v2965 = vmul.f32 %v2890, 0.5
        %v2966 = vmul.f32 %v2913, 0.5
        %v2967 = vmul.f32 %v2936, 0.5
        %v2968 = vmul.f32 %v2959, 0.5
        %v2969 = vmul.f32 %v2887, 0.70710677
        %v2970 = vmul.f32 %v2910, 0.70710677
        %v2971 = vmul.f32 %v2933, 0.70710677
        %v2972 = vmul.f32 %v2956, 0.70710677
        %v2973 = vmul.f32 %v2890, 0.70710677
        %v2974 = vmul.f32 %v2913, 0.70710677
        %v2975 = vmul.f32 %v2936, 0.70710677
        %v2976 = vmul.f32 %v2959, 0.70710677
        %v2977 = vmul.f32 %v2969, %v2969
        %v2978 = vmin.f32 16.0, %v2977
        %v2979 = vmul.f32 %v2978, 2.1237322e-06
        %v2980 = vadd.f32 %v2979, 0.00028619796
        %v2981 = vmul.f32 %v2978, %v2980
        %v2982 = vadd.f32 %v2981, 0.0036580483
        %v2983 = vmul.f32 %v2978, %v2982
        %v2984 = vadd.f32 %v2983, 0.05243302
        %v2985 = vmul.f32 %v2978, %v2984
        %v2986 = vadd.f32 %v2985, 0.18741608
        %v2987 = vmul.f32 %v2978, %v2986
        %v2988 = vadd.f32 %v2987, 1.1283791
        %v2989 = vmul.f32 %v2969, %v2988
        %v2990 = vmul.f32 %v2978, 3.8918573e-05
        %v2991 = vadd.f32 %v2990, 0.001143296
        %v2992 = vmul.f32 %v2978, %v2991
        %v2993 = vadd.f32 %v2992, 0.014752088
        %v2994 = vmul.f32 %v2978, %v2993
        %v2995 = vadd.f32 %v2994, 0.112945676
        %v2996 = vmul.f32 %v2978, %v2995
        %v2997 = vadd.f32 %v2996, 0.4994258
        %v2998 = vmul.f32 %v2978, %v2997
        %v2999 = vadd.f32 %v2998, 1.0
        %v3000 = vrcp.pop %v2999
        %v3001 = vmul.f32 %v2999, %v3000
        %v3002 = vsub.f32 1.0, %v3001
        %v3003 = vmul.f32 %v3000, %v3002
        %v3004 = vadd.f32 %v3000, %v3003
        %vm3005 = vweird.f32 %v2999
        %vm3006 = vweird.f32 %v3000
        %vm3007 = vmor %vm3005, %vm3006
        %v3008 = vsel %vm3007, %v3000, %v3004
        %v3009 = vand.u32 2147483647, %v2999
        %vm3010 = vcmp.eq.f32.partialorder %v3009, 8.507059e+37
        %v3011 = vand.u32 %v2999, 2147483648
        %v3012 = vor.u32 1.1754944e-38, %v3011
        %v3013 = vsel %vm3010, %v3012, %v3008
        %v3014 = vmul.f32 %v2989, %v3013
        %v3015 = vmin.f32 %v3014, 1.0
        %v3016 = vmax.f32 %v3015, -1.0
        %v3017 = vmul.f32 %v2970, %v2970
        %v3018 = vmin.f32 16.0, %v3017
        %v3019 = vmul.f32 %v3018, 2.1237322e-06
        %v3020 = vadd.f32 %v3019, 0.00028619796
        %v3021 = vmul.f32 %v3018, %v3020
        %v3022 = vadd.f32 %v3021, 0.0036580483
        %v3023 = vmul.f32 %v3018, %v3022
        %v3024 = vadd.f32 %v3023, 0.05243302
        %v3025 = vmul.f32 %v3018, %v3024
        %v3026 = vadd.f32 %v3025, 0.18741608
        %v3027 = vmul.f32 %v3018, %v3026
        %v3028 = vadd.f32 %v3027, 1.1283791
        %v3029 = vmul.f32 %v2970, %v3028
        %v3030 = vmul.f32 %v3018, 3.8918573e-05
        %v3031 = vadd.f32 %v3030, 0.001143296
        %v3032 = vmul.f32 %v3018, %v3031
        %v3033 = vadd.f32 %v3032, 0.014752088
        %v3034 = vmul.f32 %v3018, %v3033
        %v3035 = vadd.f32 %v3034, 0.112945676
        %v3036 = vmul.f32 %v3018, %v3035
        %v3037 = vadd.f32 %v3036, 0.4994258
        %v3038 = vmul.f32 %v3018, %v3037
        %v3039 = vadd.f32 %v3038, 1.0
        %v3040 = vrcp.pop %v3039
        %v3041 = vmul.f32 %v3039, %v3040
        %v3042 = vsub.f32 1.0, %v3041
        %v3043 = vmul.f32 %v3040, %v3042
        %v3044 = vadd.f32 %v3040, %v3043
        %vm3045 = vweird.f32 %v3039
        %vm3046 = vweird.f32 %v3040
        %vm3047 = vmor %vm3045, %vm3046
        %v3048 = vsel %vm3047, %v3040, %v3044
        %v3049 = vand.u32 2147483647, %v3039
        %vm3050 = vcmp.eq.f32.partialorder %v3049, 8.507059e+37
        %v3051 = vand.u32 %v3039, 2147483648
        %v3052 = vor.u32 1.1754944e-38, %v3051
        %v3053 = vsel %vm3050, %v3052, %v3048
        %v3054 = vmul.f32 %v3029, %v3053
        %v3055 = vmin.f32 %v3054, 1.0
        %v3056 = vmax.f32 %v3055, -1.0
        %v3057 = vmul.f32 %v2971, %v2971
        %v3058 = vmin.f32 16.0, %v3057
        %v3059 = vmul.f32 %v3058, 2.1237322e-06
        %v3060 = vadd.f32 %v3059, 0.00028619796
        %v3061 = vmul.f32 %v3058, %v3060
        %v3062 = vadd.f32 %v3061, 0.0036580483
        %v3063 = vmul.f32 %v3058, %v3062
        %v3064 = vadd.f32 %v3063, 0.05243302
        %v3065 = vmul.f32 %v3058, %v3064
        %v3066 = vadd.f32 %v3065, 0.18741608
        %v3067 = vmul.f32 %v3058, %v3066
        %v3068 = vadd.f32 %v3067, 1.1283791
        %v3069 = vmul.f32 %v2971, %v3068
        %v3070 = vmul.f32 %v3058, 3.8918573e-05
        %v3071 = vadd.f32 %v3070, 0.001143296
        %v3072 = vmul.f32 %v3058, %v3071
        %v3073 = vadd.f32 %v3072, 0.014752088
        %v3074 = vmul.f32 %v3058, %v3073
        %v3075 = vadd.f32 %v3074, 0.112945676
        %v3076 = vmul.f32 %v3058, %v3075
        %v3077 = vadd.f32 %v3076, 0.4994258
        %v3078 = vmul.f32 %v3058, %v3077
        %v3079 = vadd.f32 %v3078, 1.0
        %v3080 = vrcp.pop %v3079
        %v3081 = vmul.f32 %v3079, %v3080
        %v3082 = vsub.f32 1.0, %v3081
        %v3083 = vmul.f32 %v3080, %v3082
        %v3084 = vadd.f32 %v3080, %v3083
        %vm3085 = vweird.f32 %v3079
        %vm3086 = vweird.f32 %v3080
        %vm3087 = vmor %vm3085, %vm3086
        %v3088 = vsel %vm3087, %v3080, %v3084
        %v3089 = vand.u32 2147483647, %v3079
        %vm3090 = vcmp.eq.f32.partialorder %v3089, 8.507059e+37
        %v3091 = vand.u32 %v3079, 2147483648
        %v3092 = vor.u32 1.1754944e-38, %v3091
        %v3093 = vsel %vm3090, %v3092, %v3088
        %v3094 = vmul.f32 %v3069, %v3093
        %v3095 = vmin.f32 %v3094, 1.0
        %v3096 = vmax.f32 %v3095, -1.0
        %v3097 = vmul.f32 %v2972, %v2972
        %v3098 = vmin.f32 16.0, %v3097
        %v3099 = vmul.f32 %v3098, 2.1237322e-06
        %v3100 = vadd.f32 %v3099, 0.00028619796
        %v3101 = vmul.f32 %v3098, %v3100
        %v3102 = vadd.f32 %v3101, 0.0036580483
        %v3103 = vmul.f32 %v3098, %v3102
        %v3104 = vadd.f32 %v3103, 0.05243302
        %v3105 = vmul.f32 %v3098, %v3104
        %v3106 = vadd.f32 %v3105, 0.18741608
        %v3107 = vmul.f32 %v3098, %v3106
        %v3108 = vadd.f32 %v3107, 1.1283791
        %v3109 = vmul.f32 %v2972, %v3108
        %v3110 = vmul.f32 %v3098, 3.8918573e-05
        %v3111 = vadd.f32 %v3110, 0.001143296
        %v3112 = vmul.f32 %v3098, %v3111
        %v3113 = vadd.f32 %v3112, 0.014752088
        %v3114 = vmul.f32 %v3098, %v3113
        %v3115 = vadd.f32 %v3114, 0.112945676
        %v3116 = vmul.f32 %v3098, %v3115
        %v3117 = vadd.f32 %v3116, 0.4994258
        %v3118 = vmul.f32 %v3098, %v3117
        %v3119 = vadd.f32 %v3118, 1.0
        %v3120 = vrcp.pop %v3119
        %v3121 = vmul.f32 %v3119, %v3120
        %v3122 = vsub.f32 1.0, %v3121
        %v3123 = vmul.f32 %v3120, %v3122
        %v3124 = vadd.f32 %v3120, %v3123
        %vm3125 = vweird.f32 %v3119
        %vm3126 = vweird.f32 %v3120
        %vm3127 = vmor %vm3125, %vm3126
        %v3128 = vsel %vm3127, %v3120, %v3124
        %v3129 = vand.u32 2147483647, %v3119
        %vm3130 = vcmp.eq.f32.partialorder %v3129, 8.507059e+37
        %v3131 = vand.u32 %v3119, 2147483648
        %v3132 = vor.u32 1.1754944e-38, %v3131
        %v3133 = vsel %vm3130, %v3132, %v3128
        %v3134 = vmul.f32 %v3109, %v3133
        %v3135 = vmin.f32 %v3134, 1.0
        %v3136 = vmax.f32 %v3135, -1.0
        %v3137 = vmul.f32 %v2973, %v2973
        %v3138 = vmin.f32 16.0, %v3137
        %v3139 = vmul.f32 %v3138, 2.1237322e-06
        %v3140 = vadd.f32 %v3139, 0.00028619796
        %v3141 = vmul.f32 %v3138, %v3140
        %v3142 = vadd.f32 %v3141, 0.0036580483
        %v3143 = vmul.f32 %v3138, %v3142
        %v3144 = vadd.f32 %v3143, 0.05243302
        %v3145 = vmul.f32 %v3138, %v3144
        %v3146 = vadd.f32 %v3145, 0.18741608
        %v3147 = vmul.f32 %v3138, %v3146
        %v3148 = vadd.f32 %v3147, 1.1283791
        %v3149 = vmul.f32 %v2973, %v3148
        %v3150 = vmul.f32 %v3138, 3.8918573e-05
        %v3151 = vadd.f32 %v3150, 0.001143296
        %v3152 = vmul.f32 %v3138, %v3151
        %v3153 = vadd.f32 %v3152, 0.014752088
        %v3154 = vmul.f32 %v3138, %v3153
        %v3155 = vadd.f32 %v3154, 0.112945676
        %v3156 = vmul.f32 %v3138, %v3155
        %v3157 = vadd.f32 %v3156, 0.4994258
        %v3158 = vmul.f32 %v3138, %v3157
        %v3159 = vadd.f32 %v3158, 1.0
        %v3160 = vrcp.pop %v3159
        %v3161 = vmul.f32 %v3159, %v3160
        %v3162 = vsub.f32 1.0, %v3161
        %v3163 = vmul.f32 %v3160, %v3162
        %v3164 = vadd.f32 %v3160, %v3163
        %vm3165 = vweird.f32 %v3159
        %vm3166 = vweird.f32 %v3160
        %vm3167 = vmor %vm3165, %vm3166
        %v3168 = vsel %vm3167, %v3160, %v3164
        %v3169 = vand.u32 2147483647, %v3159
        %vm3170 = vcmp.eq.f32.partialorder %v3169, 8.507059e+37
        %v3171 = vand.u32 %v3159, 2147483648
        %v3172 = vor.u32 1.1754944e-38, %v3171
        %v3173 = vsel %vm3170, %v3172, %v3168
        %v3174 = vmul.f32 %v3149, %v3173
        %v3175 = vmin.f32 %v3174, 1.0
        %v3176 = vmax.f32 %v3175, -1.0
        %v3177 = vmul.f32 %v2974, %v2974
        %v3178 = vmin.f32 16.0, %v3177
        %v3179 = vmul.f32 %v3178, 2.1237322e-06
        %v3180 = vadd.f32 %v3179, 0.00028619796
        %v3181 = vmul.f32 %v3178, %v3180
        %v3182 = vadd.f32 %v3181, 0.0036580483
        %v3183 = vmul.f32 %v3178, %v3182
        %v3184 = vadd.f32 %v3183, 0.05243302
        %v3185 = vmul.f32 %v3178, %v3184
        %v3186 = vadd.f32 %v3185, 0.18741608
        %v3187 = vmul.f32 %v3178, %v3186
        %v3188 = vadd.f32 %v3187, 1.1283791
        %v3189 = vmul.f32 %v2974, %v3188
        %v3190 = vmul.f32 %v3178, 3.8918573e-05
        %v3191 = vadd.f32 %v3190, 0.001143296
        %v3192 = vmul.f32 %v3178, %v3191
        %v3193 = vadd.f32 %v3192, 0.014752088
        %v3194 = vmul.f32 %v3178, %v3193
        %v3195 = vadd.f32 %v3194, 0.112945676
        %v3196 = vmul.f32 %v3178, %v3195
        %v3197 = vadd.f32 %v3196, 0.4994258
        %v3198 = vmul.f32 %v3178, %v3197
        %v3199 = vadd.f32 %v3198, 1.0
        %v3200 = vrcp.pop %v3199
        %v3201 = vmul.f32 %v3199, %v3200
        %v3202 = vsub.f32 1.0, %v3201
        %v3203 = vmul.f32 %v3200, %v3202
        %v3204 = vadd.f32 %v3200, %v3203
        %vm3205 = vweird.f32 %v3199
        %vm3206 = vweird.f32 %v3200
        %vm3207 = vmor %vm3205, %vm3206
        %v3208 = vsel %vm3207, %v3200, %v3204
        %v3209 = vand.u32 2147483647, %v3199
        %vm3210 = vcmp.eq.f32.partialorder %v3209, 8.507059e+37
        %v3211 = vand.u32 %v3199, 2147483648
        %v3212 = vor.u32 1.1754944e-38, %v3211
        %v3213 = vsel %vm3210, %v3212, %v3208
        %v3214 = vmul.f32 %v3189, %v3213
        %v3215 = vmin.f32 %v3214, 1.0
        %v3216 = vmax.f32 %v3215, -1.0
        %v3217 = vmul.f32 %v2975, %v2975
        %v3218 = vmin.f32 16.0, %v3217
        %v3219 = vmul.f32 %v3218, 2.1237322e-06
        %v3220 = vadd.f32 %v3219, 0.00028619796
        %v3221 = vmul.f32 %v3218, %v3220
        %v3222 = vadd.f32 %v3221, 0.0036580483
        %v3223 = vmul.f32 %v3218, %v3222
        %v3224 = vadd.f32 %v3223, 0.05243302
        %v3225 = vmul.f32 %v3218, %v3224
        %v3226 = vadd.f32 %v3225, 0.18741608
        %v3227 = vmul.f32 %v3218, %v3226
        %v3228 = vadd.f32 %v3227, 1.1283791
        %v3229 = vmul.f32 %v2975, %v3228
        %v3230 = vmul.f32 %v3218, 3.8918573e-05
        %v3231 = vadd.f32 %v3230, 0.001143296
        %v3232 = vmul.f32 %v3218, %v3231
        %v3233 = vadd.f32 %v3232, 0.014752088
        %v3234 = vmul.f32 %v3218, %v3233
        %v3235 = vadd.f32 %v3234, 0.112945676
        %v3236 = vmul.f32 %v3218, %v3235
        %v3237 = vadd.f32 %v3236, 0.4994258
        %v3238 = vmul.f32 %v3218, %v3237
        %v3239 = vadd.f32 %v3238, 1.0
        %v3240 = vrcp.pop %v3239
        %v3241 = vmul.f32 %v3239, %v3240
        %v3242 = vsub.f32 1.0, %v3241
        %v3243 = vmul.f32 %v3240, %v3242
        %v3244 = vadd.f32 %v3240, %v3243
        %vm3245 = vweird.f32 %v3239
        %vm3246 = vweird.f32 %v3240
        %vm3247 = vmor %vm3245, %vm3246
        %v3248 = vsel %vm3247, %v3240, %v3244
        %v3249 = vand.u32 2147483647, %v3239
        %vm3250 = vcmp.eq.f32.partialorder %v3249, 8.507059e+37
        %v3251 = vand.u32 %v3239, 2147483648
        %v3252 = vor.u32 1.1754944e-38, %v3251
        %v3253 = vsel %vm3250, %v3252, %v3248
        %v3254 = vmul.f32 %v3229, %v3253
        %v3255 = vmin.f32 %v3254, 1.0
        %v3256 = vmax.f32 %v3255, -1.0
        %v3257 = vmul.f32 %v2976, %v2976
        %v3258 = vmin.f32 16.0, %v3257
        %v3259 = vmul.f32 %v3258, 2.1237322e-06
        %v3260 = vadd.f32 %v3259, 0.00028619796
        %v3261 = vmul.f32 %v3258, %v3260
        %v3262 = vadd.f32 %v3261, 0.0036580483
        %v3263 = vmul.f32 %v3258, %v3262
        %v3264 = vadd.f32 %v3263, 0.05243302
        %v3265 = vmul.f32 %v3258, %v3264
        %v3266 = vadd.f32 %v3265, 0.18741608
        %v3267 = vmul.f32 %v3258, %v3266
        %v3268 = vadd.f32 %v3267, 1.1283791
        %v3269 = vmul.f32 %v2976, %v3268
        %v3270 = vmul.f32 %v3258, 3.8918573e-05
        %v3271 = vadd.f32 %v3270, 0.001143296
        %v3272 = vmul.f32 %v3258, %v3271
        %v3273 = vadd.f32 %v3272, 0.014752088
        %v3274 = vmul.f32 %v3258, %v3273
        %v3275 = vadd.f32 %v3274, 0.112945676
        %v3276 = vmul.f32 %v3258, %v3275
        %v3277 = vadd.f32 %v3276, 0.4994258
        %v3278 = vmul.f32 %v3258, %v3277
        %v3279 = vadd.f32 %v3278, 1.0
        %v3280 = vrcp.pop %v3279
        %v3281 = vmul.f32 %v3279, %v3280
        %v3282 = vsub.f32 1.0, %v3281
        %v3283 = vmul.f32 %v3280, %v3282
        %v3284 = vadd.f32 %v3280, %v3283
        %vm3285 = vweird.f32 %v3279
        %vm3286 = vweird.f32 %v3280
        %vm3287 = vmor %vm3285, %vm3286
        %v3288 = vsel %vm3287, %v3280, %v3284
        %v3289 = vand.u32 2147483647, %v3279
        %vm3290 = vcmp.eq.f32.partialorder %v3289, 8.507059e+37
        %v3291 = vand.u32 %v3279, 2147483648
        %v3292 = vor.u32 1.1754944e-38, %v3291
        %v3293 = vsel %vm3290, %v3292, %v3288
        %v3294 = vmul.f32 %v3269, %v3293
        %v3295 = vmin.f32 %v3294, 1.0
        %v3296 = vmax.f32 %v3295, -1.0
        %v3297 = vadd.f32 %v3016, 1.0
        %v3298 = vadd.f32 %v3056, 1.0
        %v3299 = vadd.f32 %v3096, 1.0
        %v3300 = vadd.f32 %v3136, 1.0
        %v3301 = vadd.f32 %v3176, 1.0
        %v3302 = vadd.f32 %v3216, 1.0
        %v3303 = vadd.f32 %v3256, 1.0
        %v3304 = vadd.f32 %v3296, 1.0
        %v3305 = vmul.f32 %v2961, %v3297
        %v3306 = vmul.f32 %v2962, %v3298
        %v3307 = vmul.f32 %v2963, %v3299
        %v3308 = vmul.f32 %v2964, %v3300
        %v3309 = vmul.f32 %v2965, %v3301
        %v3310 = vmul.f32 %v2966, %v3302
        %v3311 = vmul.f32 %v2967, %v3303
        %v3312 = vmul.f32 %v2968, %v3304
        %s3313 = scalar_lea.vmem [#allocation6], 512
        %v3314 = vld [vmem:[%s3313] sm:$0xff]
        %v3315 = vld [vmem:[%s3313 + $0x8] sm:$0xff]
        %v3316 = vld [vmem:[%s3313 + $0x10] sm:$0xff]
        %v3317 = vld [vmem:[%s3313 + $0x18] sm:$0xff]
        %v3318 = vld [vmem:[%s3313 + $0x20] sm:$0xff]
        %v3319 = vld [vmem:[%s3313 + $0x28] sm:$0xff]
        %v3320 = vld [vmem:[%s3313 + $0x30] sm:$0xff]
        %v3321 = vld [vmem:[%s3313 + $0x38] sm:$0xff]
        %v3322 = vld [vmem:[%s3313 + $0x40] sm:$0xff]
        %v3323 = vld [vmem:[%s3313 + $0x48] sm:$0xff]
        %v3324 = vld [vmem:[%s3313 + $0x50] sm:$0xff]
        %v3325 = vld [vmem:[%s3313 + $0x58] sm:$0xff]
        %v3326 = vld [vmem:[%s3313 + $0x60] sm:$0xff]
        %v3327 = vld [vmem:[%s3313 + $0x68] sm:$0xff]
        %v3328 = vld [vmem:[%s3313 + $0x70] sm:$0xff]
        %v3329 = vld [vmem:[%s3313 + $0x78] sm:$0xff]
        %v3330 = vld [vmem:[%s3313 + $0x80] sm:$0xff]
        %v3331 = vld [vmem:[%s3313 + $0x88] sm:$0xff]
        %v3332 = vld [vmem:[%s3313 + $0x90] sm:$0xff]
        %v3333 = vld [vmem:[%s3313 + $0x98] sm:$0xff]
        %v3334 = vld [vmem:[%s3313 + $0xa0] sm:$0xff]
        %v3335 = vld [vmem:[%s3313 + $0xa8] sm:$0xff]
        %v3336 = vld [vmem:[%s3313 + $0xb0] sm:$0xff]
        %v3337 = vld [vmem:[%s3313 + $0xb8] sm:$0xff]
        %v3338 = vld [vmem:[%s3313 + $0xc0] sm:$0xff]
        %v3339 = vld [vmem:[%s3313 + $0xc8] sm:$0xff]
        %v3340 = vld [vmem:[%s3313 + $0xd0] sm:$0xff]
        %v3341 = vld [vmem:[%s3313 + $0xd8] sm:$0xff]
        %v3342 = vld [vmem:[%s3313 + $0xe0] sm:$0xff]
        %v3343 = vld [vmem:[%s3313 + $0xe8] sm:$0xff]
        %v3344 = vld [vmem:[%s3313 + $0xf0] sm:$0xff]
        %v3345 = vld [vmem:[%s3313 + $0xf8] sm:$0xff]
        %v3346 = vld [vmem:[%s3313 + $0x100] sm:$0xff]
        %v3347 = vld [vmem:[%s3313 + $0x108] sm:$0xff]
        %v3348 = vld [vmem:[%s3313 + $0x110] sm:$0xff]
        %v3349 = vld [vmem:[%s3313 + $0x118] sm:$0xff]
        %v3350 = vld [vmem:[%s3313 + $0x120] sm:$0xff]
        %v3351 = vld [vmem:[%s3313 + $0x128] sm:$0xff]
        %v3352 = vld [vmem:[%s3313 + $0x130] sm:$0xff]
        %v3353 = vld [vmem:[%s3313 + $0x138] sm:$0xff]
        %v3354 = vld [vmem:[%s3313 + $0x140] sm:$0xff]
        %v3355 = vld [vmem:[%s3313 + $0x148] sm:$0xff]
        %v3356 = vld [vmem:[%s3313 + $0x150] sm:$0xff]
        %v3357 = vld [vmem:[%s3313 + $0x158] sm:$0xff]
        %v3358 = vld [vmem:[%s3313 + $0x160] sm:$0xff]
        %v3359 = vld [vmem:[%s3313 + $0x168] sm:$0xff]
        %v3360 = vld [vmem:[%s3313 + $0x170] sm:$0xff]
        %v3361 = vld [vmem:[%s3313 + $0x178] sm:$0xff]
        %v3362 = vld [vmem:[%s3313 + $0x180] sm:$0xff]
        %v3363 = vld [vmem:[%s3313 + $0x188] sm:$0xff]
        %v3364 = vld [vmem:[%s3313 + $0x190] sm:$0xff]
        %v3365 = vld [vmem:[%s3313 + $0x198] sm:$0xff]
        %v3366 = vld [vmem:[%s3313 + $0x1a0] sm:$0xff]
        %v3367 = vld [vmem:[%s3313 + $0x1a8] sm:$0xff]
        %v3368 = vld [vmem:[%s3313 + $0x1b0] sm:$0xff]
        %v3369 = vld [vmem:[%s3313 + $0x1b8] sm:$0xff]
        %v3370 = vld [vmem:[%s3313 + $0x1c0] sm:$0xff]
        %v3371 = vld [vmem:[%s3313 + $0x1c8] sm:$0xff]
        %v3372 = vld [vmem:[%s3313 + $0x1d0] sm:$0xff]
        %v3373 = vld [vmem:[%s3313 + $0x1d8] sm:$0xff]
        %v3374 = vld [vmem:[%s3313 + $0x1e0] sm:$0xff]
        %v3375 = vld [vmem:[%s3313 + $0x1e8] sm:$0xff]
        %v3376 = vld [vmem:[%s3313 + $0x1f0] sm:$0xff]
        %v3377 = vld [vmem:[%s3313 + $0x1f8] sm:$0xff]
        %s3378 = scalar_lea.vmem %s13, 1
        %v3379 = vld [vmem:[%s3378] sm:$0x1]
        %v3381 = vperm.slane %v3379, 0
        %3383 = vmatpush.msra.mxu0 %v3329
        %3384 = vmatpush.msra.mxu0 %v3328
        %3385 = vmatpush.msra.mxu0 %v3327
        %3386 = vmatpush.msra.mxu0 %v3326
        %3387 = vmatpush.msra.mxu0 %v3325
        %3388 = vmatpush.msra.mxu0 %v3324
        %3389 = vmatpush.msra.mxu0 %v3323
        %3390 = vmatpush.msra.mxu0 %v3322
        %3391 = vmatpush.msra.mxu0 %v3321
        %3392 = vmatpush.msra.mxu0 %v3320
        %3393 = vmatpush.msra.mxu0 %v3319
        %3394 = vmatpush.msra.mxu0 %v3318
        %3395 = vmatpush.msra.mxu0 %v3317
        %3396 = vmatpush.msra.mxu0 %v3316
        %3397 = vmatpush.msra.mxu0 %v3315
        %3398 = vmatpush.msra.mxu0 %v3314
        %3399 = vmatmul.f32.gmra.mxu0 %v3305
        %v3400 = vpop.f32.mrf.mxu0
        %v3401 = vadd.f32 %v3381, %v3400
        %3402 = vmatmul.f32.gmra.mxu0 %v3309
        %v3403 = vpop.f32.mrf.mxu0
        %v3404 = vadd.f32 %v3381, %v3403
        %3405 = vdwg.mxu0
        %3406 = vmatpush.msra.mxu0 %v3345
        %3407 = vmatpush.msra.mxu0 %v3344
        %3408 = vmatpush.msra.mxu0 %v3343
        %3409 = vmatpush.msra.mxu0 %v3342
        %3410 = vmatpush.msra.mxu0 %v3341
        %3411 = vmatpush.msra.mxu0 %v3340
        %3412 = vmatpush.msra.mxu0 %v3339
        %3413 = vmatpush.msra.mxu0 %v3338
        %3414 = vmatpush.msra.mxu0 %v3337
        %3415 = vmatpush.msra.mxu0 %v3336
        %3416 = vmatpush.msra.mxu0 %v3335
        %3417 = vmatpush.msra.mxu0 %v3334
        %3418 = vmatpush.msra.mxu0 %v3333
        %3419 = vmatpush.msra.mxu0 %v3332
        %3420 = vmatpush.msra.mxu0 %v3331
        %3421 = vmatpush.msra.mxu0 %v3330
        %3422 = vmatmul.f32.gmra.mxu0 %v3306
        %v3423 = vpop.f32.mrf.mxu0
        %v3424 = vadd.f32 %v3401, %v3423
        %3425 = vmatmul.f32.gmra.mxu0 %v3310
        %v3426 = vpop.f32.mrf.mxu0
        %v3427 = vadd.f32 %v3404, %v3426
        %3428 = vdwg.mxu0
        %3429 = vmatpush.msra.mxu0 %v3361
        %3430 = vmatpush.msra.mxu0 %v3360
        %3431 = vmatpush.msra.mxu0 %v3359
        %3432 = vmatpush.msra.mxu0 %v3358
        %3433 = vmatpush.msra.mxu0 %v3357
        %3434 = vmatpush.msra.mxu0 %v3356
        %3435 = vmatpush.msra.mxu0 %v3355
        %3436 = vmatpush.msra.mxu0 %v3354
        %3437 = vmatpush.msra.mxu0 %v3353
        %3438 = vmatpush.msra.mxu0 %v3352
        %3439 = vmatpush.msra.mxu0 %v3351
        %3440 = vmatpush.msra.mxu0 %v3350
        %3441 = vmatpush.msra.mxu0 %v3349
        %3442 = vmatpush.msra.mxu0 %v3348
        %3443 = vmatpush.msra.mxu0 %v3347
        %3444 = vmatpush.msra.mxu0 %v3346
        %3445 = vmatmul.f32.gmra.mxu0 %v3307
        %v3446 = vpop.f32.mrf.mxu0
        %v3447 = vadd.f32 %v3424, %v3446
        %3448 = vmatmul.f32.gmra.mxu0 %v3311
        %v3449 = vpop.f32.mrf.mxu0
        %v3450 = vadd.f32 %v3427, %v3449
        %3451 = vdwg.mxu0
        %3452 = vmatpush.msra.mxu0 %v3377
        %3453 = vmatpush.msra.mxu0 %v3376
        %3454 = vmatpush.msra.mxu0 %v3375
        %3455 = vmatpush.msra.mxu0 %v3374
        %3456 = vmatpush.msra.mxu0 %v3373
        %3457 = vmatpush.msra.mxu0 %v3372
        %3458 = vmatpush.msra.mxu0 %v3371
        %3459 = vmatpush.msra.mxu0 %v3370
        %3460 = vmatpush.msra.mxu0 %v3369
        %3461 = vmatpush.msra.mxu0 %v3368
        %3462 = vmatpush.msra.mxu0 %v3367
        %3463 = vmatpush.msra.mxu0 %v3366
        %3464 = vmatpush.msra.mxu0 %v3365
        %3465 = vmatpush.msra.mxu0 %v3364
        %3466 = vmatpush.msra.mxu0 %v3363
        %3467 = vmatpush.msra.mxu0 %v3362
        %3468 = vmatmul.f32.gmra.mxu0 %v3308
        %v3469 = vpop.f32.mrf.mxu0
        %v3470 = vadd.f32 %v3447, %v3469
        %3471 = vmatmul.f32.gmra.mxu0 %v3312
        %v3472 = vpop.f32.mrf.mxu0
        %v3473 = vadd.f32 %v3450, %v3472
        %3474 = vdwg.mxu0
        %v3475 = vadd.f32 %v3470, %v2791
        %v3476 = vadd.f32 %v3473, %v2792
        %s3477 = scalar_lea.vmem %s14, 1
        %v3478 = vld [vmem:[%s3477] sm:$0x1]
        %s3479 = scalar_lea.vmem %s15, 1
        %v3480 = vld [vmem:[%s3479] sm:$0x1]
        %3481 = vadd.xlane.f32.xlu0 %v3475
        %v3482 = vpop.xlane.xlu0 %3481
        %3483 = vadd.xlane.f32.xlu0 %v3476
        %v3484 = vpop.xlane.xlu0 %3483
        %v3485 = vmul.f32 %v3482, %v711
        %v3486 = vmul.f32 %v3484, %v711
        %v3487 = vsub.f32 %v3475, %v3485
        %v3488 = vsub.f32 %v3476, %v3486
        %v3489 = vmul.f32 %v3487, %v3487
        %v3490 = vmul.f32 %v3488, %v3488
        %3491 = vadd.xlane.f32.xlu0 %v3489
        %v3492 = vpop.xlane.xlu0 %3491
        %3493 = vadd.xlane.f32.xlu0 %v3490
        %v3494 = vpop.xlane.xlu0 %3493
        %v3495 = vmul.f32 %v3492, %v711
        %v3496 = vmul.f32 %v3494, %v711
        %v3497 = vadd.f32 %v3495, 1e-12
        %v3498 = vadd.f32 %v3496, 1e-12
        %v3499 = vrsqrt.pop %v3497
        %v3500 = vmul.f32 %v3499, %v3497
        %v3501 = vmul.f32 %v3500, %v3499
        %v3502 = vmul.f32 0.5, %v3501
        %v3503 = vsub.f32 1.5, %v3502
        %v3504 = vmul.f32 %v3499, %v3503
        %vm3505 = vweird.f32 %v3497
        %vm3506 = vweird.f32 %v3499
        %vm3507 = vmor %vm3505, %vm3506
        %v3508 = vsel %vm3507, %v3499, %v3504
        %v3509 = vrsqrt.pop %v3498
        %v3510 = vmul.f32 %v3509, %v3498
        %v3511 = vmul.f32 %v3510, %v3509
        %v3512 = vmul.f32 0.5, %v3511
        %v3513 = vsub.f32 1.5, %v3512
        %v3514 = vmul.f32 %v3509, %v3513
        %vm3515 = vweird.f32 %v3498
        %vm3516 = vweird.f32 %v3509
        %vm3517 = vmor %vm3515, %vm3516
        %v3518 = vsel %vm3517, %v3509, %v3514
        %v3519 = vmul.f32 %v3487, %v3508
        %v3520 = vmul.f32 %v3488, %v3518
        %v3522 = vperm.slane %v3478, 0
        %v3524 = vmul.f32 %v3519, %v3522
        %v3525 = vmul.f32 %v3520, %v3522
        %v3527 = vperm.slane %v3480, 0
        %v3529 = vadd.f32 %v3524, %v3527
        %v3530 = vadd.f32 %v3525, %v3527
        %v3531 = vld [vmem:[%s16] sm:$0xff]
        %v3532 = vld [vmem:[%s16 + $0x8] sm:$0xff]
        %v3533 = vld [vmem:[%s16 + $0x10] sm:$0xff]
        %v3534 = vld [vmem:[%s16 + $0x18] sm:$0xff]
        %v3535 = vld [vmem:[%s16 + $0x20] sm:$0xff]
        %v3536 = vld [vmem:[%s16 + $0x28] sm:$0xff]
        %v3537 = vld [vmem:[%s16 + $0x30] sm:$0xff]
        %v3538 = vld [vmem:[%s16 + $0x38] sm:$0xff]
        %v3539 = vld [vmem:[%s16 + $0x40] sm:$0xff]
        %v3540 = vld [vmem:[%s16 + $0x48] sm:$0xff]
        %v3541 = vld [vmem:[%s16 + $0x50] sm:$0xff]
        %v3542 = vld [vmem:[%s16 + $0x58] sm:$0xff]
        %v3543 = vld [vmem:[%s16 + $0x60] sm:$0xff]
        %v3544 = vld [vmem:[%s16 + $0x68] sm:$0xff]
        %v3545 = vld [vmem:[%s16 + $0x70] sm:$0xff]
        %v3546 = vld [vmem:[%s16 + $0x78] sm:$0xff]
        %v3547 = vld [vmem:[%s17] sm:$0x1]
        %v3549 = vperm.slane %v3547, 0
        %3551 = vmatpush.msra.mxu0 %v3546
        %3552 = vmatpush.msra.mxu0 %v3545
        %3553 = vmatpush.msra.mxu0 %v3544
        %3554 = vmatpush.msra.mxu0 %v3543
        %3555 = vmatpush.msra.mxu0 %v3542
        %3556 = vmatpush.msra.mxu0 %v3541
        %3557 = vmatpush.msra.mxu0 %v3540
        %3558 = vmatpush.msra.mxu0 %v3539
        %3559 = vmatpush.msra.mxu0 %v3538
        %3560 = vmatpush.msra.mxu0 %v3537
        %3561 = vmatpush.msra.mxu0 %v3536
        %3562 = vmatpush.msra.mxu0 %v3535
        %3563 = vmatpush.msra.mxu0 %v3534
        %3564 = vmatpush.msra.mxu0 %v3533
        %3565 = vmatpush.msra.mxu0 %v3532
        %3566 = vmatpush.msra.mxu0 %v3531
        %3567 = vmatmul.f32.gmra.mxu0 %v3529
        %v3568 = vpop.f32.mrf.mxu0
        %v3569 = vadd.f32 %v3549, %v3568
        %3570 = vmatmul.f32.gmra.mxu0 %v3530
        %v3571 = vpop.f32.mrf.mxu0
        %v3572 = vadd.f32 %v3549, %v3571
        %3573 = vdwg.mxu0
        %v3574 = vtanh.pop %v3569
        %v3575 = vtanh.pop %v3572
        %v3576 = vld [vmem:[%s18] sm:$0xff]
        %v3577 = vld [vmem:[%s18 + $0x8] sm:$0xff]
        %v3578 = vld [vmem:[%s18 + $0x10] sm:$0xff]
        %v3579 = vld [vmem:[%s18 + $0x18] sm:$0xff]
        %v3580 = vld [vmem:[%s18 + $0x20] sm:$0xff]
        %v3581 = vld [vmem:[%s18 + $0x28] sm:$0xff]
        %v3582 = vld [vmem:[%s18 + $0x30] sm:$0xff]
        %v3583 = vld [vmem:[%s18 + $0x38] sm:$0xff]
        %v3584 = vld [vmem:[%s18 + $0x40] sm:$0xff]
        %v3585 = vld [vmem:[%s18 + $0x48] sm:$0xff]
        %v3586 = vld [vmem:[%s18 + $0x50] sm:$0xff]
        %v3587 = vld [vmem:[%s18 + $0x58] sm:$0xff]
        %v3588 = vld [vmem:[%s18 + $0x60] sm:$0xff]
        %v3589 = vld [vmem:[%s18 + $0x68] sm:$0xff]
        %v3590 = vld [vmem:[%s18 + $0x70] sm:$0xff]
        %v3591 = vld [vmem:[%s18 + $0x78] sm:$0xff]
        %v3592 = vld [vmem:[%s19] sm:$0x1]
        %v3594 = vperm.slane %v3592, 0
        %3596 = vmatpush.msra.mxu0 %v3591
        %3597 = vmatpush.msra.mxu0 %v3590
        %3598 = vmatpush.msra.mxu0 %v3589
        %3599 = vmatpush.msra.mxu0 %v3588
        %3600 = vmatpush.msra.mxu0 %v3587
        %3601 = vmatpush.msra.mxu0 %v3586
        %3602 = vmatpush.msra.mxu0 %v3585
        %3603 = vmatpush.msra.mxu0 %v3584
        %3604 = vmatpush.msra.mxu0 %v3583
        %3605 = vmatpush.msra.mxu0 %v3582
        %3606 = vmatpush.msra.mxu0 %v3581
        %3607 = vmatpush.msra.mxu0 %v3580
        %3608 = vmatpush.msra.mxu0 %v3579
        %3609 = vmatpush.msra.mxu0 %v3578
        %3610 = vmatpush.msra.mxu0 %v3577
        %3611 = vmatpush.msra.mxu0 %v3576
        %3612 = vmatmul.f32.gmra.mxu0 %v3574
        %v3613 = vpop.f32.mrf.mxu0
        %v3614 = vadd.f32 %v3594, %v3613
        %3615 = vmatmul.f32.gmra.mxu0 %v3575
        %v3616 = vpop.f32.mrf.mxu0
        %v3617 = vadd.f32 %v3594, %v3616
        %3618 = vdwg.mxu0
        %3619 = vst [vmem:[%s695] sm:$0xff] %v3614
        %3620 = vst [vmem:[%s695 + $0x8] sm:$0xff] %v3617
        %s3621 = smul.u32 2, %s33
        %p3622 = scmp.lt.s32.totalorder %s3621, 3
        %s3623 = scalar_select %p3622, %s3621, 3
        %s3624 = smul.addr %s3623, 8
        %s3625 = scalar_lea.vmem %s20, %s3624
        // Predicated region
        $region113: #{distilbert_class_forward.1} parent=99 // pred_check
          %p3626 = pneg %p481
        $region114: #{distilbert_class_forward.1} parent=99 // pred_check_branch
          %3628 = sbr.rel (%p3626) target = $region116
        $region115: #{distilbert_class_forward.1} parent=99 // pred_region
          %s3629 = smul.u32 2, %s33
        $region116: #{distilbert_class_forward.1} parent=99 // pred_fallthru
          _
      $region100: #{distilbert_class_forward.1} parent=5 // pred_fallthru
        _
      %p3630 = scmp.le.s32.totalorder 2, %s28
      // Predicated region
      $region117: #{distilbert_class_forward.1} parent=5 // pred_check
        %p3631 = pneg %p3630
      $region118: #{distilbert_class_forward.1} parent=5 // pred_check_branch
        %3633 = sbr.rel (%p3631) target = $region120
      $region119: #{distilbert_class_forward.1} parent=5 // pred_region
        %s3634 = ssub.s32 %s28, 2
        // Predicated region
        $region121: #{distilbert_class_forward.1} parent=119 // pred_check
          %p3635 = pneg %p487
        $region122: #{distilbert_class_forward.1} parent=119 // pred_check_branch
          %3637 = sbr.rel (%p3635) target = $region124
        $region123: #{distilbert_class_forward.1} parent=119 // pred_region
          %s3638 = smul.u32 2, %s34
          %p3639 = scmp.lt.s32.totalorder %s3638, 3
          %s3640 = scalar_select %p3639, %s3638, 3
          %s3641 = smul.addr %s3640, 8
          %s3642 = scalar_lea.vmem %s20, %s3641
        $region124: #{distilbert_class_forward.1} parent=119 // pred_fallthru
          _
      $region120: #{distilbert_class_forward.1} parent=5 // pred_fallthru
        _
    $region6: #{distilbert_class_forward.1} parent=1 // loop_footer
      %s32 = sadd.s32 1, %s28
    $region7: #{distilbert_class_forward.1} parent=1 // loop_footer_branch
      %27 = sbr.rel target = $region3
    $region8: #{distilbert_class_forward.1} parent=1 // loop_exit
      _
    %3643 = vsyncpa [#allocation3], 1
    %s3644 = scalar_lea.sflag [#allocation3], 1
    %3645 = vsyncpa %s3644, 1
    %3646 = vsyncpa [#allocation5], 1

</llo_original>
